<compile_context>
chip_gen: v7x
topology: tpu7x:2x2x1
jax: 0.10.0
libtpu: 0.0.40
codegen_flags: <defaults>
</compile_context>

<pallas_src>
import math

import jax
import jax.numpy as jnp
from jax import lax
from jax.experimental import pallas as pl
from jax.experimental.pallas import tpu as pltpu

# ----------------------------- config (small) -----------------------------
B, S = 2, 8              # batch, sequence length
H, NH, DH = 32, 4, 8     # hidden, num heads, head dim
FFN = 64                 # intermediate size
VOCAB = 100              # token vocabulary (synthetic)
WORD_V = 50              # word vocabulary (token_map domain, synthetic)
MAXPOS = 32
LAYERS = 2
EPS = 1e-5

HP = 128                 # lane-padded hidden width
FP = 128                 # lane-padded FFN width
VP = 128                 # lane-padded vocab width (for the one-hot gather)
M = B * S

_VMEM = pl.BlockSpec(memory_space=pltpu.MemorySpace.VMEM)


# ------------------------------ fused kernel ------------------------------
def _net_kernel(tok_ref, wemb_ref, pos_ref, eg_ref, eb_ref,
                wqkv_ref, bqkv_ref, wo_ref, bo_ref, g1_ref, b1_ref,
                wi_ref, bi_ref, wout_ref, bout_ref, g2_ref, b2_ref,
                out_ref):
    f32 = jnp.float32
    inv_h = 1.0 / H
    # mask selecting the H real hidden columns out of the HP padded lanes
    hmask = (lax.broadcasted_iota(jnp.int32, (1, HP), 1) < H).astype(f32)

    def add_ln(a, res, gamma, beta):
        # padded columns of `a` and `res` are zero by construction, so the sums
        # below only see the H real columns; gamma/beta are zero in the pad.
        y = a + res
        mu = jnp.sum(y, axis=-1, keepdims=True) * inv_h
        d = (y - mu) * hmask
        var = jnp.sum(d * d, axis=-1, keepdims=True) * inv_h
        return d * lax.rsqrt(var + EPS) * gamma + beta

    # --- embeddings: padded one-hot gather on the MXU, fused with +pos/type, LN
    onehot = (lax.broadcasted_iota(jnp.int32, (M, VP), 1) == tok_ref[...]).astype(f32)
    emb = jnp.dot(onehot, wemb_ref[...], preferred_element_type=f32)      # (M, HP)
    x = add_ln(emb, pos_ref[...], eg_ref[...], eb_ref[...])

    for l in range(LAYERS):
        # --- fused QKV projection (1/sqrt(DH) already folded into Wq) ---
        qkv = jnp.dot(x, wqkv_ref[l], preferred_element_type=f32) + bqkv_ref[l]  # (M, 3H)

        # --- attention: all (batch, head) blocks unrolled in one invocation ---
        ctx_rows = []
        for b in range(B):
            r = b * S
            heads = []
            for h in range(NH):
                c = h * DH
                q = qkv[r:r + S, c:c + DH]                        # (S, DH)
                k = qkv[r:r + S, H + c:H + c + DH]
                v = qkv[r:r + S, 2 * H + c:2 * H + c + DH]
                s = jnp.dot(q, k.T, preferred_element_type=f32)   # (S, S), pre-scaled
                p = jnp.exp(s - jnp.max(s, axis=-1, keepdims=True))
                p = p * pl.reciprocal(jnp.sum(p, axis=-1, keepdims=True), approx=True)
                heads.append(jnp.dot(p, v, preferred_element_type=f32))
            ctx_rows.append(jnp.concatenate(heads, axis=1))        # (S, H)
        ctx = jnp.concatenate(ctx_rows, axis=0)                    # (M, H)

        attn = jnp.dot(ctx, wo_ref[l], preferred_element_type=f32) + bo_ref[l]   # (M, HP)
        x = add_ln(attn, x, g1_ref[l], b1_ref[l])

        # --- FFN (exact GELU, as in HF RoBERTa) ---
        ffn = jnp.dot(x, wi_ref[l], preferred_element_type=f32) + bi_ref[l]      # (M, FP)
        ffn = 0.5 * ffn * (1.0 + lax.erf(ffn * (1.0 / math.sqrt(2.0))))
        ffn = jnp.dot(ffn, wout_ref[l], preferred_element_type=f32) + bout_ref[l]  # (M, HP)
        x = add_ln(ffn, x, g2_ref[l], b2_ref[l])

    out_ref[...] = x   # (M, HP) — lane-dense store; padding sliced off in glue


# ------------------------------ parameters ------------------------------
def make_params():
    kit = iter(jax.random.split(jax.random.PRNGKey(42), 256))

    def nrm(shape, scale=0.02):
        return (scale * jax.random.normal(next(kit), shape)).astype(jnp.float32)

    def pad2(x, r, c):
        return jnp.pad(x, ((0, r - x.shape[0]), (0, c - x.shape[1])))

    word_emb = nrm((VOCAB, H))
    pos_emb = nrm((MAXPOS, H))
    type_emb = nrm((1, H))
    pos_type = jnp.tile(pos_emb[:S], (B, 1)) + type_emb            # (M, H), static

    scale = 1.0 / math.sqrt(DH)
    gamma_p = jnp.pad(jnp.ones((1, H), jnp.float32), ((0, 0), (0, HP - H)))
    zeros_hp = jnp.zeros((1, HP), jnp.float32)

    params = {
        "wemb": pad2(word_emb, VP, HP),        # (VP, HP)
        "pos_type": pad2(pos_type, M, HP),     # (M, HP)
        "emb_g": gamma_p,
        "emb_b": zeros_hp,
    }

    wqkv, bqkv, wo, bo, g1, b1, wi, bi, wout, bout, g2, b2 = ([] for _ in range(12))
    for _ in range(LAYERS):
        Wq, Wk, Wv, Wo = nrm((H, H)), nrm((H, H)), nrm((H, H)), nrm((H, H))
        Wi, Wout = nrm((H, FFN)), nrm((FFN, H))
        # concatenate QKV; fold the attention scale into Wq (bq is zero anyway)
        Wqkv = jnp.concatenate([Wq * scale, Wk, Wv], axis=1)       # (H, 3H)
        wqkv.append(jnp.pad(Wqkv, ((0, HP - H), (0, 0))))          # (HP, 3H)
        bqkv.append(jnp.zeros((1, 3 * H), jnp.float32))
        wo.append(jnp.pad(Wo, ((0, 0), (0, HP - H))))              # (H, HP)
        bo.append(zeros_hp)
        g1.append(gamma_p); b1.append(zeros_hp)
        wi.append(pad2(Wi, HP, FP))                                # (HP, FP)
        bi.append(jnp.zeros((1, FP), jnp.float32))
        wout.append(pad2(Wout, FP, HP))                            # (FP, HP)
        bout.append(zeros_hp)
        g2.append(gamma_p); b2.append(zeros_hp)

    for name, lst in [("wqkv", wqkv), ("bqkv", bqkv), ("wo", wo), ("bo", bo),
                      ("g1", g1), ("b1", b1), ("wi", wi), ("bi", bi),
                      ("wout", wout), ("bout", bout), ("g2", g2), ("b2", b2)]:
        params[name] = jnp.stack(lst, axis=0)
    return params


# ------------------------------ forward pass ------------------------------
def forward(words, token_map, params):
    # tokens = torch.gather(token_map.expand(B, -1), 1, words)  (row-wise map lookup, glue)
    tokens = jnp.take(token_map, words, axis=0).reshape(M, 1).astype(jnp.int32)

    out_p = pl.pallas_call(
        _net_kernel,
        out_shape=jax.ShapeDtypeStruct((M, HP), jnp.float32),
        in_specs=[_VMEM] * 17,
        out_specs=_VMEM,
    )(tokens,
      params["wemb"], params["pos_type"], params["emb_g"], params["emb_b"],
      params["wqkv"], params["bqkv"], params["wo"], params["bo"],
      params["g1"], params["b1"], params["wi"], params["bi"],
      params["wout"], params["bout"], params["g2"], params["b2"])

    return out_p[:, :H].reshape(B, S, H)   # last_hidden_state


# ---------------------------------- main ----------------------------------
if __name__ == "__main__":
    params = make_params()

    # synthetic token_word_map(word_path, token_path): word id -> token id
    token_map = ((jnp.arange(WORD_V) * 7 + 3) % VOCAB).astype(jnp.int32)

    words = jax.random.randint(jax.random.PRNGKey(0), (B, S), 0, WORD_V,
                               dtype=jnp.int32)

    out = jax.jit(lambda w: forward(w, token_map, params))(words)
    out = jax.block_until_ready(out)
    assert out.shape == (B, S, H) and out.dtype == jnp.float32
    assert bool(jnp.all(jnp.isfinite(out)))
    print("KERNEL_OK")
</pallas_src>

<mosaic_0001>
module attributes {stable_mosaic.version = 11 : i64} {
  func.func @_net_kernel(%arg0: memref<16x1xi32, #tpu.memory_space<vmem>>, %arg1: memref<128x128xf32, #tpu.memory_space<vmem>>, %arg2: memref<16x128xf32, #tpu.memory_space<vmem>>, %arg3: memref<1x128xf32, #tpu.memory_space<vmem>>, %arg4: memref<1x128xf32, #tpu.memory_space<vmem>>, %arg5: memref<2x128x96xf32, #tpu.memory_space<vmem>>, %arg6: memref<2x1x96xf32, #tpu.memory_space<vmem>>, %arg7: memref<2x32x128xf32, #tpu.memory_space<vmem>>, %arg8: memref<2x1x128xf32, #tpu.memory_space<vmem>>, %arg9: memref<2x1x128xf32, #tpu.memory_space<vmem>>, %arg10: memref<2x1x128xf32, #tpu.memory_space<vmem>>, %arg11: memref<2x128x128xf32, #tpu.memory_space<vmem>>, %arg12: memref<2x1x128xf32, #tpu.memory_space<vmem>>, %arg13: memref<2x128x128xf32, #tpu.memory_space<vmem>>, %arg14: memref<2x1x128xf32, #tpu.memory_space<vmem>>, %arg15: memref<2x1x128xf32, #tpu.memory_space<vmem>>, %arg16: memref<2x1x128xf32, #tpu.memory_space<vmem>>, %arg17: memref<16x128xf32, #tpu.memory_space<vmem>>) attributes {dimension_semantics = [], scalar_prefetch = 0 : i64, scratch_operands = 0 : i64, tpu.core_type = #tpu.core_type<tc>} {
    %0 = tpu.iota {dimensions = array<i32: 1>} : vector<1x128xi32>
    %c32_i32 = arith.constant 32 : i32
    %1 = vector.broadcast %c32_i32 : i32 to vector<1x128xi32>
    %2 = arith.cmpi slt, %0, %1 : vector<1x128xi32>
    %3 = arith.extui %2 : vector<1x128xi1> to vector<1x128xi32>
    %4 = arith.sitofp %3 : vector<1x128xi32> to vector<1x128xf32>
    %5 = tpu.iota {dimensions = array<i32: 1>} : vector<16x128xi32>
    %c0 = arith.constant 0 : index
    %c0_0 = arith.constant 0 : index
    %6 = vector.load %arg0[%c0, %c0_0] : memref<16x1xi32, #tpu.memory_space<vmem>>, vector<16x1xi32>
    %7 = vector.broadcast %6 : vector<16x1xi32> to vector<16x128xi32>
    %8 = arith.cmpi eq, %5, %7 : vector<16x128xi32>
    %9 = arith.extui %8 : vector<16x128xi1> to vector<16x128xi32>
    %10 = arith.sitofp %9 : vector<16x128xi32> to vector<16x128xf32>
    %c0_1 = arith.constant 0 : index
    %c0_2 = arith.constant 0 : index
    %11 = vector.load %arg1[%c0_1, %c0_2] : memref<128x128xf32, #tpu.memory_space<vmem>>, vector<128x128xf32>
    %cst = arith.constant dense<0.000000e+00> : vector<16x128xf32>
    %12 = tpu.matmul %10, %11, %cst {dimension_numbers = #tpu.dot_dimension_numbers<[1], [0], [0], [1], [0, 0, 1, 1], [], []>} : vector<16x128xf32>, vector<128x128xf32>, vector<16x128xf32> -> vector<16x128xf32>
    %c0_3 = arith.constant 0 : index
    %c0_4 = arith.constant 0 : index
    %13 = vector.load %arg2[%c0_3, %c0_4] : memref<16x128xf32, #tpu.memory_space<vmem>>, vector<16x128xf32>
    %c0_5 = arith.constant 0 : index
    %c0_6 = arith.constant 0 : index
    %14 = vector.load %arg3[%c0_5, %c0_6] : memref<1x128xf32, #tpu.memory_space<vmem>>, vector<1x128xf32>
    %c0_7 = arith.constant 0 : index
    %c0_8 = arith.constant 0 : index
    %15 = vector.load %arg4[%c0_7, %c0_8] : memref<1x128xf32, #tpu.memory_space<vmem>>, vector<1x128xf32>
    %16 = arith.addf %12, %13 : vector<16x128xf32>
    %cst_9 = arith.constant dense<0.000000e+00> : vector<16xf32>
    %17 = vector.multi_reduction <add>, %16, %cst_9 [1] : vector<16x128xf32> to vector<16xf32>
    %18 = vector.shape_cast %17 : vector<16xf32> to vector<16x1xf32>
    %cst_10 = arith.constant 3.125000e-02 : f32
    %19 = vector.broadcast %cst_10 : f32 to vector<16x1xf32>
    %20 = arith.mulf %18, %19 : vector<16x1xf32>
    %21 = vector.broadcast %20 : vector<16x1xf32> to vector<16x128xf32>
    %22 = arith.subf %16, %21 : vector<16x128xf32>
    %23 = vector.broadcast %4 : vector<1x128xf32> to vector<16x128xf32>
    %24 = arith.mulf %22, %23 : vector<16x128xf32>
    %25 = arith.mulf %24, %24 : vector<16x128xf32>
    %cst_11 = arith.constant dense<0.000000e+00> : vector<16xf32>
    %26 = vector.multi_reduction <add>, %25, %cst_11 [1] : vector<16x128xf32> to vector<16xf32>
    %27 = vector.shape_cast %26 : vector<16xf32> to vector<16x1xf32>
    %cst_12 = arith.constant 3.125000e-02 : f32
    %28 = vector.broadcast %cst_12 : f32 to vector<16x1xf32>
    %29 = arith.mulf %27, %28 : vector<16x1xf32>
    %cst_13 = arith.constant 9.99999974E-6 : f32
    %30 = vector.broadcast %cst_13 : f32 to vector<16x1xf32>
    %31 = arith.addf %29, %30 : vector<16x1xf32>
    %32 = math.rsqrt %31 : vector<16x1xf32>
    %33 = vector.broadcast %32 : vector<16x1xf32> to vector<16x128xf32>
    %34 = arith.mulf %24, %33 : vector<16x128xf32>
    %35 = vector.broadcast %14 : vector<1x128xf32> to vector<16x128xf32>
    %36 = arith.mulf %34, %35 : vector<16x128xf32>
    %37 = vector.broadcast %15 : vector<1x128xf32> to vector<16x128xf32>
    %38 = arith.addf %36, %37 : vector<16x128xf32>
    %c0_14 = arith.constant 0 : index
    %c0_15 = arith.constant 0 : index
    %c0_16 = arith.constant 0 : index
    %39 = vector.load %arg5[%c0_14, %c0_15, %c0_16] : memref<2x128x96xf32, #tpu.memory_space<vmem>>, vector<1x128x96xf32>
    %40 = vector.shape_cast %39 : vector<1x128x96xf32> to vector<128x96xf32>
    %cst_17 = arith.constant dense<0.000000e+00> : vector<16x96xf32>
    %41 = tpu.matmul %38, %40, %cst_17 {dimension_numbers = #tpu.dot_dimension_numbers<[1], [0], [0], [1], [0, 0, 1, 1], [], []>} : vector<16x128xf32>, vector<128x96xf32>, vector<16x96xf32> -> vector<16x96xf32>
    %c0_18 = arith.constant 0 : index
    %c0_19 = arith.constant 0 : index
    %c0_20 = arith.constant 0 : index
    %42 = vector.load %arg6[%c0_18, %c0_19, %c0_20] : memref<2x1x96xf32, #tpu.memory_space<vmem>>, vector<1x1x96xf32>
    %43 = vector.shape_cast %42 : vector<1x1x96xf32> to vector<1x96xf32>
    %44 = vector.broadcast %43 : vector<1x96xf32> to vector<16x96xf32>
    %45 = arith.addf %41, %44 : vector<16x96xf32>
    %46 = vector.extract_strided_slice %45 {offsets = [0, 0], sizes = [8, 8], strides = [1, 1]} : vector<16x96xf32> to vector<8x8xf32>
    %47 = vector.extract_strided_slice %45 {offsets = [0, 32], sizes = [8, 8], strides = [1, 1]} : vector<16x96xf32> to vector<8x8xf32>
    %48 = vector.extract_strided_slice %45 {offsets = [0, 64], sizes = [8, 8], strides = [1, 1]} : vector<16x96xf32> to vector<8x8xf32>
    %49 = tpu.transpose %47, [1, 0] : vector<8x8xf32> -> vector<8x8xf32>
    %cst_21 = arith.constant dense<0.000000e+00> : vector<8x8xf32>
    %50 = tpu.matmul %46, %49, %cst_21 {dimension_numbers = #tpu.dot_dimension_numbers<[1], [0], [0], [1], [0, 0, 1, 1], [], []>} : vector<8x8xf32>, vector<8x8xf32>, vector<8x8xf32> -> vector<8x8xf32>
    %cst_22 = arith.constant dense<0xFF800000> : vector<8xf32>
    %51 = vector.multi_reduction <maximumf>, %50, %cst_22 [1] : vector<8x8xf32> to vector<8xf32>
    %52 = vector.shape_cast %51 : vector<8xf32> to vector<8x1xf32>
    %53 = vector.broadcast %52 : vector<8x1xf32> to vector<8x8xf32>
    %54 = arith.subf %50, %53 : vector<8x8xf32>
    %55 = math.exp %54 : vector<8x8xf32>
    %cst_23 = arith.constant dense<0.000000e+00> : vector<8xf32>
    %56 = vector.multi_reduction <add>, %55, %cst_23 [1] : vector<8x8xf32> to vector<8xf32>
    %57 = vector.shape_cast %56 : vector<8xf32> to vector<8x1xf32>
    %58 = tpu.reciprocal %57 {approx = true} : vector<8x1xf32> -> vector<8x1xf32>
    %59 = vector.broadcast %58 : vector<8x1xf32> to vector<8x8xf32>
    %60 = arith.mulf %55, %59 : vector<8x8xf32>
    %cst_24 = arith.constant dense<0.000000e+00> : vector<8x8xf32>
    %61 = tpu.matmul %60, %48, %cst_24 {dimension_numbers = #tpu.dot_dimension_numbers<[1], [0], [0], [1], [0, 0, 1, 1], [], []>} : vector<8x8xf32>, vector<8x8xf32>, vector<8x8xf32> -> vector<8x8xf32>
    %62 = vector.extract_strided_slice %45 {offsets = [0, 8], sizes = [8, 8], strides = [1, 1]} : vector<16x96xf32> to vector<8x8xf32>
    %63 = vector.extract_strided_slice %45 {offsets = [0, 40], sizes = [8, 8], strides = [1, 1]} : vector<16x96xf32> to vector<8x8xf32>
    %64 = vector.extract_strided_slice %45 {offsets = [0, 72], sizes = [8, 8], strides = [1, 1]} : vector<16x96xf32> to vector<8x8xf32>
    %65 = tpu.transpose %63, [1, 0] : vector<8x8xf32> -> vector<8x8xf32>
    %cst_25 = arith.constant dense<0.000000e+00> : vector<8x8xf32>
    %66 = tpu.matmul %62, %65, %cst_25 {dimension_numbers = #tpu.dot_dimension_numbers<[1], [0], [0], [1], [0, 0, 1, 1], [], []>} : vector<8x8xf32>, vector<8x8xf32>, vector<8x8xf32> -> vector<8x8xf32>
    %cst_26 = arith.constant dense<0xFF800000> : vector<8xf32>
    %67 = vector.multi_reduction <maximumf>, %66, %cst_26 [1] : vector<8x8xf32> to vector<8xf32>
    %68 = vector.shape_cast %67 : vector<8xf32> to vector<8x1xf32>
    %69 = vector.broadcast %68 : vector<8x1xf32> to vector<8x8xf32>
    %70 = arith.subf %66, %69 : vector<8x8xf32>
    %71 = math.exp %70 : vector<8x8xf32>
    %cst_27 = arith.constant dense<0.000000e+00> : vector<8xf32>
    %72 = vector.multi_reduction <add>, %71, %cst_27 [1] : vector<8x8xf32> to vector<8xf32>
    %73 = vector.shape_cast %72 : vector<8xf32> to vector<8x1xf32>
    %74 = tpu.reciprocal %73 {approx = true} : vector<8x1xf32> -> vector<8x1xf32>
    %75 = vector.broadcast %74 : vector<8x1xf32> to vector<8x8xf32>
    %76 = arith.mulf %71, %75 : vector<8x8xf32>
    %cst_28 = arith.constant dense<0.000000e+00> : vector<8x8xf32>
    %77 = tpu.matmul %76, %64, %cst_28 {dimension_numbers = #tpu.dot_dimension_numbers<[1], [0], [0], [1], [0, 0, 1, 1], [], []>} : vector<8x8xf32>, vector<8x8xf32>, vector<8x8xf32> -> vector<8x8xf32>
    %78 = vector.extract_strided_slice %45 {offsets = [0, 16], sizes = [8, 8], strides = [1, 1]} : vector<16x96xf32> to vector<8x8xf32>
    %79 = vector.extract_strided_slice %45 {offsets = [0, 48], sizes = [8, 8], strides = [1, 1]} : vector<16x96xf32> to vector<8x8xf32>
    %80 = vector.extract_strided_slice %45 {offsets = [0, 80], sizes = [8, 8], strides = [1, 1]} : vector<16x96xf32> to vector<8x8xf32>
    %81 = tpu.transpose %79, [1, 0] : vector<8x8xf32> -> vector<8x8xf32>
    %cst_29 = arith.constant dense<0.000000e+00> : vector<8x8xf32>
    %82 = tpu.matmul %78, %81, %cst_29 {dimension_numbers = #tpu.dot_dimension_numbers<[1], [0], [0], [1], [0, 0, 1, 1], [], []>} : vector<8x8xf32>, vector<8x8xf32>, vector<8x8xf32> -> vector<8x8xf32>
    %cst_30 = arith.constant dense<0xFF800000> : vector<8xf32>
    %83 = vector.multi_reduction <maximumf>, %82, %cst_30 [1] : vector<8x8xf32> to vector<8xf32>
    %84 = vector.shape_cast %83 : vector<8xf32> to vector<8x1xf32>
    %85 = vector.broadcast %84 : vector<8x1xf32> to vector<8x8xf32>
    %86 = arith.subf %82, %85 : vector<8x8xf32>
    %87 = math.exp %86 : vector<8x8xf32>
    %cst_31 = arith.constant dense<0.000000e+00> : vector<8xf32>
    %88 = vector.multi_reduction <add>, %87, %cst_31 [1] : vector<8x8xf32> to vector<8xf32>
    %89 = vector.shape_cast %88 : vector<8xf32> to vector<8x1xf32>
    %90 = tpu.reciprocal %89 {approx = true} : vector<8x1xf32> -> vector<8x1xf32>
    %91 = vector.broadcast %90 : vector<8x1xf32> to vector<8x8xf32>
    %92 = arith.mulf %87, %91 : vector<8x8xf32>
    %cst_32 = arith.constant dense<0.000000e+00> : vector<8x8xf32>
    %93 = tpu.matmul %92, %80, %cst_32 {dimension_numbers = #tpu.dot_dimension_numbers<[1], [0], [0], [1], [0, 0, 1, 1], [], []>} : vector<8x8xf32>, vector<8x8xf32>, vector<8x8xf32> -> vector<8x8xf32>
    %94 = vector.extract_strided_slice %45 {offsets = [0, 24], sizes = [8, 8], strides = [1, 1]} : vector<16x96xf32> to vector<8x8xf32>
    %95 = vector.extract_strided_slice %45 {offsets = [0, 56], sizes = [8, 8], strides = [1, 1]} : vector<16x96xf32> to vector<8x8xf32>
    %96 = vector.extract_strided_slice %45 {offsets = [0, 88], sizes = [8, 8], strides = [1, 1]} : vector<16x96xf32> to vector<8x8xf32>
    %97 = tpu.transpose %95, [1, 0] : vector<8x8xf32> -> vector<8x8xf32>
    %cst_33 = arith.constant dense<0.000000e+00> : vector<8x8xf32>
    %98 = tpu.matmul %94, %97, %cst_33 {dimension_numbers = #tpu.dot_dimension_numbers<[1], [0], [0], [1], [0, 0, 1, 1], [], []>} : vector<8x8xf32>, vector<8x8xf32>, vector<8x8xf32> -> vector<8x8xf32>
    %cst_34 = arith.constant dense<0xFF800000> : vector<8xf32>
    %99 = vector.multi_reduction <maximumf>, %98, %cst_34 [1] : vector<8x8xf32> to vector<8xf32>
    %100 = vector.shape_cast %99 : vector<8xf32> to vector<8x1xf32>
    %101 = vector.broadcast %100 : vector<8x1xf32> to vector<8x8xf32>
    %102 = arith.subf %98, %101 : vector<8x8xf32>
    %103 = math.exp %102 : vector<8x8xf32>
    %cst_35 = arith.constant dense<0.000000e+00> : vector<8xf32>
    %104 = vector.multi_reduction <add>, %103, %cst_35 [1] : vector<8x8xf32> to vector<8xf32>
    %105 = vector.shape_cast %104 : vector<8xf32> to vector<8x1xf32>
    %106 = tpu.reciprocal %105 {approx = true} : vector<8x1xf32> -> vector<8x1xf32>
    %107 = vector.broadcast %106 : vector<8x1xf32> to vector<8x8xf32>
    %108 = arith.mulf %103, %107 : vector<8x8xf32>
    %cst_36 = arith.constant dense<0.000000e+00> : vector<8x8xf32>
    %109 = tpu.matmul %108, %96, %cst_36 {dimension_numbers = #tpu.dot_dimension_numbers<[1], [0], [0], [1], [0, 0, 1, 1], [], []>} : vector<8x8xf32>, vector<8x8xf32>, vector<8x8xf32> -> vector<8x8xf32>
    %110 = tpu.concatenate %61, %77, %93, %109 in 1 : vector<8x8xf32>, vector<8x8xf32>, vector<8x8xf32>, vector<8x8xf32> -> vector<8x32xf32>
    %111 = vector.extract_strided_slice %45 {offsets = [8, 0], sizes = [8, 8], strides = [1, 1]} : vector<16x96xf32> to vector<8x8xf32>
    %112 = vector.extract_strided_slice %45 {offsets = [8, 32], sizes = [8, 8], strides = [1, 1]} : vector<16x96xf32> to vector<8x8xf32>
    %113 = vector.extract_strided_slice %45 {offsets = [8, 64], sizes = [8, 8], strides = [1, 1]} : vector<16x96xf32> to vector<8x8xf32>
    %114 = tpu.transpose %112, [1, 0] : vector<8x8xf32> -> vector<8x8xf32>
    %cst_37 = arith.constant dense<0.000000e+00> : vector<8x8xf32>
    %115 = tpu.matmul %111, %114, %cst_37 {dimension_numbers = #tpu.dot_dimension_numbers<[1], [0], [0], [1], [0, 0, 1, 1], [], []>} : vector<8x8xf32>, vector<8x8xf32>, vector<8x8xf32> -> vector<8x8xf32>
    %cst_38 = arith.constant dense<0xFF800000> : vector<8xf32>
    %116 = vector.multi_reduction <maximumf>, %115, %cst_38 [1] : vector<8x8xf32> to vector<8xf32>
    %117 = vector.shape_cast %116 : vector<8xf32> to vector<8x1xf32>
    %118 = vector.broadcast %117 : vector<8x1xf32> to vector<8x8xf32>
    %119 = arith.subf %115, %118 : vector<8x8xf32>
    %120 = math.exp %119 : vector<8x8xf32>
    %cst_39 = arith.constant dense<0.000000e+00> : vector<8xf32>
    %121 = vector.multi_reduction <add>, %120, %cst_39 [1] : vector<8x8xf32> to vector<8xf32>
    %122 = vector.shape_cast %121 : vector<8xf32> to vector<8x1xf32>
    %123 = tpu.reciprocal %122 {approx = true} : vector<8x1xf32> -> vector<8x1xf32>
    %124 = vector.broadcast %123 : vector<8x1xf32> to vector<8x8xf32>
    %125 = arith.mulf %120, %124 : vector<8x8xf32>
    %cst_40 = arith.constant dense<0.000000e+00> : vector<8x8xf32>
    %126 = tpu.matmul %125, %113, %cst_40 {dimension_numbers = #tpu.dot_dimension_numbers<[1], [0], [0], [1], [0, 0, 1, 1], [], []>} : vector<8x8xf32>, vector<8x8xf32>, vector<8x8xf32> -> vector<8x8xf32>
    %127 = vector.extract_strided_slice %45 {offsets = [8, 8], sizes = [8, 8], strides = [1, 1]} : vector<16x96xf32> to vector<8x8xf32>
    %128 = vector.extract_strided_slice %45 {offsets = [8, 40], sizes = [8, 8], strides = [1, 1]} : vector<16x96xf32> to vector<8x8xf32>
    %129 = vector.extract_strided_slice %45 {offsets = [8, 72], sizes = [8, 8], strides = [1, 1]} : vector<16x96xf32> to vector<8x8xf32>
    %130 = tpu.transpose %128, [1, 0] : vector<8x8xf32> -> vector<8x8xf32>
    %cst_41 = arith.constant dense<0.000000e+00> : vector<8x8xf32>
    %131 = tpu.matmul %127, %130, %cst_41 {dimension_numbers = #tpu.dot_dimension_numbers<[1], [0], [0], [1], [0, 0, 1, 1], [], []>} : vector<8x8xf32>, vector<8x8xf32>, vector<8x8xf32> -> vector<8x8xf32>
    %cst_42 = arith.constant dense<0xFF800000> : vector<8xf32>
    %132 = vector.multi_reduction <maximumf>, %131, %cst_42 [1] : vector<8x8xf32> to vector<8xf32>
    %133 = vector.shape_cast %132 : vector<8xf32> to vector<8x1xf32>
    %134 = vector.broadcast %133 : vector<8x1xf32> to vector<8x8xf32>
    %135 = arith.subf %131, %134 : vector<8x8xf32>
    %136 = math.exp %135 : vector<8x8xf32>
    %cst_43 = arith.constant dense<0.000000e+00> : vector<8xf32>
    %137 = vector.multi_reduction <add>, %136, %cst_43 [1] : vector<8x8xf32> to vector<8xf32>
    %138 = vector.shape_cast %137 : vector<8xf32> to vector<8x1xf32>
    %139 = tpu.reciprocal %138 {approx = true} : vector<8x1xf32> -> vector<8x1xf32>
    %140 = vector.broadcast %139 : vector<8x1xf32> to vector<8x8xf32>
    %141 = arith.mulf %136, %140 : vector<8x8xf32>
    %cst_44 = arith.constant dense<0.000000e+00> : vector<8x8xf32>
    %142 = tpu.matmul %141, %129, %cst_44 {dimension_numbers = #tpu.dot_dimension_numbers<[1], [0], [0], [1], [0, 0, 1, 1], [], []>} : vector<8x8xf32>, vector<8x8xf32>, vector<8x8xf32> -> vector<8x8xf32>
    %143 = vector.extract_strided_slice %45 {offsets = [8, 16], sizes = [8, 8], strides = [1, 1]} : vector<16x96xf32> to vector<8x8xf32>
    %144 = vector.extract_strided_slice %45 {offsets = [8, 48], sizes = [8, 8], strides = [1, 1]} : vector<16x96xf32> to vector<8x8xf32>
    %145 = vector.extract_strided_slice %45 {offsets = [8, 80], sizes = [8, 8], strides = [1, 1]} : vector<16x96xf32> to vector<8x8xf32>
    %146 = tpu.transpose %144, [1, 0] : vector<8x8xf32> -> vector<8x8xf32>
    %cst_45 = arith.constant dense<0.000000e+00> : vector<8x8xf32>
    %147 = tpu.matmul %143, %146, %cst_45 {dimension_numbers = #tpu.dot_dimension_numbers<[1], [0], [0], [1], [0, 0, 1, 1], [], []>} : vector<8x8xf32>, vector<8x8xf32>, vector<8x8xf32> -> vector<8x8xf32>
    %cst_46 = arith.constant dense<0xFF800000> : vector<8xf32>
    %148 = vector.multi_reduction <maximumf>, %147, %cst_46 [1] : vector<8x8xf32> to vector<8xf32>
    %149 = vector.shape_cast %148 : vector<8xf32> to vector<8x1xf32>
    %150 = vector.broadcast %149 : vector<8x1xf32> to vector<8x8xf32>
    %151 = arith.subf %147, %150 : vector<8x8xf32>
    %152 = math.exp %151 : vector<8x8xf32>
    %cst_47 = arith.constant dense<0.000000e+00> : vector<8xf32>
    %153 = vector.multi_reduction <add>, %152, %cst_47 [1] : vector<8x8xf32> to vector<8xf32>
    %154 = vector.shape_cast %153 : vector<8xf32> to vector<8x1xf32>
    %155 = tpu.reciprocal %154 {approx = true} : vector<8x1xf32> -> vector<8x1xf32>
    %156 = vector.broadcast %155 : vector<8x1xf32> to vector<8x8xf32>
    %157 = arith.mulf %152, %156 : vector<8x8xf32>
    %cst_48 = arith.constant dense<0.000000e+00> : vector<8x8xf32>
    %158 = tpu.matmul %157, %145, %cst_48 {dimension_numbers = #tpu.dot_dimension_numbers<[1], [0], [0], [1], [0, 0, 1, 1], [], []>} : vector<8x8xf32>, vector<8x8xf32>, vector<8x8xf32> -> vector<8x8xf32>
    %159 = vector.extract_strided_slice %45 {offsets = [8, 24], sizes = [8, 8], strides = [1, 1]} : vector<16x96xf32> to vector<8x8xf32>
    %160 = vector.extract_strided_slice %45 {offsets = [8, 56], sizes = [8, 8], strides = [1, 1]} : vector<16x96xf32> to vector<8x8xf32>
    %161 = vector.extract_strided_slice %45 {offsets = [8, 88], sizes = [8, 8], strides = [1, 1]} : vector<16x96xf32> to vector<8x8xf32>
    %162 = tpu.transpose %160, [1, 0] : vector<8x8xf32> -> vector<8x8xf32>
    %cst_49 = arith.constant dense<0.000000e+00> : vector<8x8xf32>
    %163 = tpu.matmul %159, %162, %cst_49 {dimension_numbers = #tpu.dot_dimension_numbers<[1], [0], [0], [1], [0, 0, 1, 1], [], []>} : vector<8x8xf32>, vector<8x8xf32>, vector<8x8xf32> -> vector<8x8xf32>
    %cst_50 = arith.constant dense<0xFF800000> : vector<8xf32>
    %164 = vector.multi_reduction <maximumf>, %163, %cst_50 [1] : vector<8x8xf32> to vector<8xf32>
    %165 = vector.shape_cast %164 : vector<8xf32> to vector<8x1xf32>
    %166 = vector.broadcast %165 : vector<8x1xf32> to vector<8x8xf32>
    %167 = arith.subf %163, %166 : vector<8x8xf32>
    %168 = math.exp %167 : vector<8x8xf32>
    %cst_51 = arith.constant dense<0.000000e+00> : vector<8xf32>
    %169 = vector.multi_reduction <add>, %168, %cst_51 [1] : vector<8x8xf32> to vector<8xf32>
    %170 = vector.shape_cast %169 : vector<8xf32> to vector<8x1xf32>
    %171 = tpu.reciprocal %170 {approx = true} : vector<8x1xf32> -> vector<8x1xf32>
    %172 = vector.broadcast %171 : vector<8x1xf32> to vector<8x8xf32>
    %173 = arith.mulf %168, %172 : vector<8x8xf32>
    %cst_52 = arith.constant dense<0.000000e+00> : vector<8x8xf32>
    %174 = tpu.matmul %173, %161, %cst_52 {dimension_numbers = #tpu.dot_dimension_numbers<[1], [0], [0], [1], [0, 0, 1, 1], [], []>} : vector<8x8xf32>, vector<8x8xf32>, vector<8x8xf32> -> vector<8x8xf32>
    %175 = tpu.concatenate %126, %142, %158, %174 in 1 : vector<8x8xf32>, vector<8x8xf32>, vector<8x8xf32>, vector<8x8xf32> -> vector<8x32xf32>
    %176 = tpu.concatenate %110, %175 in 0 : vector<8x32xf32>, vector<8x32xf32> -> vector<16x32xf32>
    %c0_53 = arith.constant 0 : index
    %c0_54 = arith.constant 0 : index
    %c0_55 = arith.constant 0 : index
    %177 = vector.load %arg7[%c0_53, %c0_54, %c0_55] : memref<2x32x128xf32, #tpu.memory_space<vmem>>, vector<1x32x128xf32>
    %178 = vector.shape_cast %177 : vector<1x32x128xf32> to vector<32x128xf32>
    %cst_56 = arith.constant dense<0.000000e+00> : vector<16x128xf32>
    %179 = tpu.matmul %176, %178, %cst_56 {dimension_numbers = #tpu.dot_dimension_numbers<[1], [0], [0], [1], [0, 0, 1, 1], [], []>} : vector<16x32xf32>, vector<32x128xf32>, vector<16x128xf32> -> vector<16x128xf32>
    %c0_57 = arith.constant 0 : index
    %c0_58 = arith.constant 0 : index
    %c0_59 = arith.constant 0 : index
    %180 = vector.load %arg8[%c0_57, %c0_58, %c0_59] : memref<2x1x128xf32, #tpu.memory_space<vmem>>, vector<1x1x128xf32>
    %181 = vector.shape_cast %180 : vector<1x1x128xf32> to vector<1x128xf32>
    %182 = vector.broadcast %181 : vector<1x128xf32> to vector<16x128xf32>
    %183 = arith.addf %179, %182 : vector<16x128xf32>
    %c0_60 = arith.constant 0 : index
    %c0_61 = arith.constant 0 : index
    %c0_62 = arith.constant 0 : index
    %184 = vector.load %arg9[%c0_60, %c0_61, %c0_62] : memref<2x1x128xf32, #tpu.memory_space<vmem>>, vector<1x1x128xf32>
    %185 = vector.shape_cast %184 : vector<1x1x128xf32> to vector<1x128xf32>
    %c0_63 = arith.constant 0 : index
    %c0_64 = arith.constant 0 : index
    %c0_65 = arith.constant 0 : index
    %186 = vector.load %arg10[%c0_63, %c0_64, %c0_65] : memref<2x1x128xf32, #tpu.memory_space<vmem>>, vector<1x1x128xf32>
    %187 = vector.shape_cast %186 : vector<1x1x128xf32> to vector<1x128xf32>
    %188 = arith.addf %183, %38 : vector<16x128xf32>
    %cst_66 = arith.constant dense<0.000000e+00> : vector<16xf32>
    %189 = vector.multi_reduction <add>, %188, %cst_66 [1] : vector<16x128xf32> to vector<16xf32>
    %190 = vector.shape_cast %189 : vector<16xf32> to vector<16x1xf32>
    %cst_67 = arith.constant 3.125000e-02 : f32
    %191 = vector.broadcast %cst_67 : f32 to vector<16x1xf32>
    %192 = arith.mulf %190, %191 : vector<16x1xf32>
    %193 = vector.broadcast %192 : vector<16x1xf32> to vector<16x128xf32>
    %194 = arith.subf %188, %193 : vector<16x128xf32>
    %195 = vector.broadcast %4 : vector<1x128xf32> to vector<16x128xf32>
    %196 = arith.mulf %194, %195 : vector<16x128xf32>
    %197 = arith.mulf %196, %196 : vector<16x128xf32>
    %cst_68 = arith.constant dense<0.000000e+00> : vector<16xf32>
    %198 = vector.multi_reduction <add>, %197, %cst_68 [1] : vector<16x128xf32> to vector<16xf32>
    %199 = vector.shape_cast %198 : vector<16xf32> to vector<16x1xf32>
    %cst_69 = arith.constant 3.125000e-02 : f32
    %200 = vector.broadcast %cst_69 : f32 to vector<16x1xf32>
    %201 = arith.mulf %199, %200 : vector<16x1xf32>
    %cst_70 = arith.constant 9.99999974E-6 : f32
    %202 = vector.broadcast %cst_70 : f32 to vector<16x1xf32>
    %203 = arith.addf %201, %202 : vector<16x1xf32>
    %204 = math.rsqrt %203 : vector<16x1xf32>
    %205 = vector.broadcast %204 : vector<16x1xf32> to vector<16x128xf32>
    %206 = arith.mulf %196, %205 : vector<16x128xf32>
    %207 = vector.broadcast %185 : vector<1x128xf32> to vector<16x128xf32>
    %208 = arith.mulf %206, %207 : vector<16x128xf32>
    %209 = vector.broadcast %187 : vector<1x128xf32> to vector<16x128xf32>
    %210 = arith.addf %208, %209 : vector<16x128xf32>
    %c0_71 = arith.constant 0 : index
    %c0_72 = arith.constant 0 : index
    %c0_73 = arith.constant 0 : index
    %211 = vector.load %arg11[%c0_71, %c0_72, %c0_73] : memref<2x128x128xf32, #tpu.memory_space<vmem>>, vector<1x128x128xf32>
    %212 = vector.shape_cast %211 : vector<1x128x128xf32> to vector<128x128xf32>
    %cst_74 = arith.constant dense<0.000000e+00> : vector<16x128xf32>
    %213 = tpu.matmul %210, %212, %cst_74 {dimension_numbers = #tpu.dot_dimension_numbers<[1], [0], [0], [1], [0, 0, 1, 1], [], []>} : vector<16x128xf32>, vector<128x128xf32>, vector<16x128xf32> -> vector<16x128xf32>
    %c0_75 = arith.constant 0 : index
    %c0_76 = arith.constant 0 : index
    %c0_77 = arith.constant 0 : index
    %214 = vector.load %arg12[%c0_75, %c0_76, %c0_77] : memref<2x1x128xf32, #tpu.memory_space<vmem>>, vector<1x1x128xf32>
    %215 = vector.shape_cast %214 : vector<1x1x128xf32> to vector<1x128xf32>
    %216 = vector.broadcast %215 : vector<1x128xf32> to vector<16x128xf32>
    %217 = arith.addf %213, %216 : vector<16x128xf32>
    %cst_78 = arith.constant 5.000000e-01 : f32
    %218 = vector.broadcast %cst_78 : f32 to vector<16x128xf32>
    %219 = arith.mulf %218, %217 : vector<16x128xf32>
    %cst_79 = arith.constant 0.707106769 : f32
    %220 = vector.broadcast %cst_79 : f32 to vector<16x128xf32>
    %221 = arith.mulf %217, %220 : vector<16x128xf32>
    %222 = math.erf %221 : vector<16x128xf32>
    %cst_80 = arith.constant 1.000000e+00 : f32
    %223 = vector.broadcast %cst_80 : f32 to vector<16x128xf32>
    %224 = arith.addf %223, %222 : vector<16x128xf32>
    %225 = arith.mulf %219, %224 : vector<16x128xf32>
    %c0_81 = arith.constant 0 : index
    %c0_82 = arith.constant 0 : index
    %c0_83 = arith.constant 0 : index
    %226 = vector.load %arg13[%c0_81, %c0_82, %c0_83] : memref<2x128x128xf32, #tpu.memory_space<vmem>>, vector<1x128x128xf32>
    %227 = vector.shape_cast %226 : vector<1x128x128xf32> to vector<128x128xf32>
    %cst_84 = arith.constant dense<0.000000e+00> : vector<16x128xf32>
    %228 = tpu.matmul %225, %227, %cst_84 {dimension_numbers = #tpu.dot_dimension_numbers<[1], [0], [0], [1], [0, 0, 1, 1], [], []>} : vector<16x128xf32>, vector<128x128xf32>, vector<16x128xf32> -> vector<16x128xf32>
    %c0_85 = arith.constant 0 : index
    %c0_86 = arith.constant 0 : index
    %c0_87 = arith.constant 0 : index
    %229 = vector.load %arg14[%c0_85, %c0_86, %c0_87] : memref<2x1x128xf32, #tpu.memory_space<vmem>>, vector<1x1x128xf32>
    %230 = vector.shape_cast %229 : vector<1x1x128xf32> to vector<1x128xf32>
    %231 = vector.broadcast %230 : vector<1x128xf32> to vector<16x128xf32>
    %232 = arith.addf %228, %231 : vector<16x128xf32>
    %c0_88 = arith.constant 0 : index
    %c0_89 = arith.constant 0 : index
    %c0_90 = arith.constant 0 : index
    %233 = vector.load %arg15[%c0_88, %c0_89, %c0_90] : memref<2x1x128xf32, #tpu.memory_space<vmem>>, vector<1x1x128xf32>
    %234 = vector.shape_cast %233 : vector<1x1x128xf32> to vector<1x128xf32>
    %c0_91 = arith.constant 0 : index
    %c0_92 = arith.constant 0 : index
    %c0_93 = arith.constant 0 : index
    %235 = vector.load %arg16[%c0_91, %c0_92, %c0_93] : memref<2x1x128xf32, #tpu.memory_space<vmem>>, vector<1x1x128xf32>
    %236 = vector.shape_cast %235 : vector<1x1x128xf32> to vector<1x128xf32>
    %237 = arith.addf %232, %210 : vector<16x128xf32>
    %cst_94 = arith.constant dense<0.000000e+00> : vector<16xf32>
    %238 = vector.multi_reduction <add>, %237, %cst_94 [1] : vector<16x128xf32> to vector<16xf32>
    %239 = vector.shape_cast %238 : vector<16xf32> to vector<16x1xf32>
    %cst_95 = arith.constant 3.125000e-02 : f32
    %240 = vector.broadcast %cst_95 : f32 to vector<16x1xf32>
    %241 = arith.mulf %239, %240 : vector<16x1xf32>
    %242 = vector.broadcast %241 : vector<16x1xf32> to vector<16x128xf32>
    %243 = arith.subf %237, %242 : vector<16x128xf32>
    %244 = vector.broadcast %4 : vector<1x128xf32> to vector<16x128xf32>
    %245 = arith.mulf %243, %244 : vector<16x128xf32>
    %246 = arith.mulf %245, %245 : vector<16x128xf32>
    %cst_96 = arith.constant dense<0.000000e+00> : vector<16xf32>
    %247 = vector.multi_reduction <add>, %246, %cst_96 [1] : vector<16x128xf32> to vector<16xf32>
    %248 = vector.shape_cast %247 : vector<16xf32> to vector<16x1xf32>
    %cst_97 = arith.constant 3.125000e-02 : f32
    %249 = vector.broadcast %cst_97 : f32 to vector<16x1xf32>
    %250 = arith.mulf %248, %249 : vector<16x1xf32>
    %cst_98 = arith.constant 9.99999974E-6 : f32
    %251 = vector.broadcast %cst_98 : f32 to vector<16x1xf32>
    %252 = arith.addf %250, %251 : vector<16x1xf32>
    %253 = math.rsqrt %252 : vector<16x1xf32>
    %254 = vector.broadcast %253 : vector<16x1xf32> to vector<16x128xf32>
    %255 = arith.mulf %245, %254 : vector<16x128xf32>
    %256 = vector.broadcast %234 : vector<1x128xf32> to vector<16x128xf32>
    %257 = arith.mulf %255, %256 : vector<16x128xf32>
    %258 = vector.broadcast %236 : vector<1x128xf32> to vector<16x128xf32>
    %259 = arith.addf %257, %258 : vector<16x128xf32>
    %c1 = arith.constant 1 : index
    %c0_99 = arith.constant 0 : index
    %c0_100 = arith.constant 0 : index
    %260 = vector.load %arg5[%c1, %c0_99, %c0_100] : memref<2x128x96xf32, #tpu.memory_space<vmem>>, vector<1x128x96xf32>
    %261 = vector.shape_cast %260 : vector<1x128x96xf32> to vector<128x96xf32>
    %cst_101 = arith.constant dense<0.000000e+00> : vector<16x96xf32>
    %262 = tpu.matmul %259, %261, %cst_101 {dimension_numbers = #tpu.dot_dimension_numbers<[1], [0], [0], [1], [0, 0, 1, 1], [], []>} : vector<16x128xf32>, vector<128x96xf32>, vector<16x96xf32> -> vector<16x96xf32>
    %c1_102 = arith.constant 1 : index
    %c0_103 = arith.constant 0 : index
    %c0_104 = arith.constant 0 : index
    %263 = vector.load %arg6[%c1_102, %c0_103, %c0_104] : memref<2x1x96xf32, #tpu.memory_space<vmem>>, vector<1x1x96xf32>
    %264 = vector.shape_cast %263 : vector<1x1x96xf32> to vector<1x96xf32>
    %265 = vector.broadcast %264 : vector<1x96xf32> to vector<16x96xf32>
    %266 = arith.addf %262, %265 : vector<16x96xf32>
    %267 = vector.extract_strided_slice %266 {offsets = [0, 0], sizes = [8, 8], strides = [1, 1]} : vector<16x96xf32> to vector<8x8xf32>
    %268 = vector.extract_strided_slice %266 {offsets = [0, 32], sizes = [8, 8], strides = [1, 1]} : vector<16x96xf32> to vector<8x8xf32>
    %269 = vector.extract_strided_slice %266 {offsets = [0, 64], sizes = [8, 8], strides = [1, 1]} : vector<16x96xf32> to vector<8x8xf32>
    %270 = tpu.transpose %268, [1, 0] : vector<8x8xf32> -> vector<8x8xf32>
    %cst_105 = arith.constant dense<0.000000e+00> : vector<8x8xf32>
    %271 = tpu.matmul %267, %270, %cst_105 {dimension_numbers = #tpu.dot_dimension_numbers<[1], [0], [0], [1], [0, 0, 1, 1], [], []>} : vector<8x8xf32>, vector<8x8xf32>, vector<8x8xf32> -> vector<8x8xf32>
    %cst_106 = arith.constant dense<0xFF800000> : vector<8xf32>
    %272 = vector.multi_reduction <maximumf>, %271, %cst_106 [1] : vector<8x8xf32> to vector<8xf32>
    %273 = vector.shape_cast %272 : vector<8xf32> to vector<8x1xf32>
    %274 = vector.broadcast %273 : vector<8x1xf32> to vector<8x8xf32>
    %275 = arith.subf %271, %274 : vector<8x8xf32>
    %276 = math.exp %275 : vector<8x8xf32>
    %cst_107 = arith.constant dense<0.000000e+00> : vector<8xf32>
    %277 = vector.multi_reduction <add>, %276, %cst_107 [1] : vector<8x8xf32> to vector<8xf32>
    %278 = vector.shape_cast %277 : vector<8xf32> to vector<8x1xf32>
    %279 = tpu.reciprocal %278 {approx = true} : vector<8x1xf32> -> vector<8x1xf32>
    %280 = vector.broadcast %279 : vector<8x1xf32> to vector<8x8xf32>
    %281 = arith.mulf %276, %280 : vector<8x8xf32>
    %cst_108 = arith.constant dense<0.000000e+00> : vector<8x8xf32>
    %282 = tpu.matmul %281, %269, %cst_108 {dimension_numbers = #tpu.dot_dimension_numbers<[1], [0], [0], [1], [0, 0, 1, 1], [], []>} : vector<8x8xf32>, vector<8x8xf32>, vector<8x8xf32> -> vector<8x8xf32>
    %283 = vector.extract_strided_slice %266 {offsets = [0, 8], sizes = [8, 8], strides = [1, 1]} : vector<16x96xf32> to vector<8x8xf32>
    %284 = vector.extract_strided_slice %266 {offsets = [0, 40], sizes = [8, 8], strides = [1, 1]} : vector<16x96xf32> to vector<8x8xf32>
    %285 = vector.extract_strided_slice %266 {offsets = [0, 72], sizes = [8, 8], strides = [1, 1]} : vector<16x96xf32> to vector<8x8xf32>
    %286 = tpu.transpose %284, [1, 0] : vector<8x8xf32> -> vector<8x8xf32>
    %cst_109 = arith.constant dense<0.000000e+00> : vector<8x8xf32>
    %287 = tpu.matmul %283, %286, %cst_109 {dimension_numbers = #tpu.dot_dimension_numbers<[1], [0], [0], [1], [0, 0, 1, 1], [], []>} : vector<8x8xf32>, vector<8x8xf32>, vector<8x8xf32> -> vector<8x8xf32>
    %cst_110 = arith.constant dense<0xFF800000> : vector<8xf32>
    %288 = vector.multi_reduction <maximumf>, %287, %cst_110 [1] : vector<8x8xf32> to vector<8xf32>
    %289 = vector.shape_cast %288 : vector<8xf32> to vector<8x1xf32>
    %290 = vector.broadcast %289 : vector<8x1xf32> to vector<8x8xf32>
    %291 = arith.subf %287, %290 : vector<8x8xf32>
    %292 = math.exp %291 : vector<8x8xf32>
    %cst_111 = arith.constant dense<0.000000e+00> : vector<8xf32>
    %293 = vector.multi_reduction <add>, %292, %cst_111 [1] : vector<8x8xf32> to vector<8xf32>
    %294 = vector.shape_cast %293 : vector<8xf32> to vector<8x1xf32>
    %295 = tpu.reciprocal %294 {approx = true} : vector<8x1xf32> -> vector<8x1xf32>
    %296 = vector.broadcast %295 : vector<8x1xf32> to vector<8x8xf32>
    %297 = arith.mulf %292, %296 : vector<8x8xf32>
    %cst_112 = arith.constant dense<0.000000e+00> : vector<8x8xf32>
    %298 = tpu.matmul %297, %285, %cst_112 {dimension_numbers = #tpu.dot_dimension_numbers<[1], [0], [0], [1], [0, 0, 1, 1], [], []>} : vector<8x8xf32>, vector<8x8xf32>, vector<8x8xf32> -> vector<8x8xf32>
    %299 = vector.extract_strided_slice %266 {offsets = [0, 16], sizes = [8, 8], strides = [1, 1]} : vector<16x96xf32> to vector<8x8xf32>
    %300 = vector.extract_strided_slice %266 {offsets = [0, 48], sizes = [8, 8], strides = [1, 1]} : vector<16x96xf32> to vector<8x8xf32>
    %301 = vector.extract_strided_slice %266 {offsets = [0, 80], sizes = [8, 8], strides = [1, 1]} : vector<16x96xf32> to vector<8x8xf32>
    %302 = tpu.transpose %300, [1, 0] : vector<8x8xf32> -> vector<8x8xf32>
    %cst_113 = arith.constant dense<0.000000e+00> : vector<8x8xf32>
    %303 = tpu.matmul %299, %302, %cst_113 {dimension_numbers = #tpu.dot_dimension_numbers<[1], [0], [0], [1], [0, 0, 1, 1], [], []>} : vector<8x8xf32>, vector<8x8xf32>, vector<8x8xf32> -> vector<8x8xf32>
    %cst_114 = arith.constant dense<0xFF800000> : vector<8xf32>
    %304 = vector.multi_reduction <maximumf>, %303, %cst_114 [1] : vector<8x8xf32> to vector<8xf32>
    %305 = vector.shape_cast %304 : vector<8xf32> to vector<8x1xf32>
    %306 = vector.broadcast %305 : vector<8x1xf32> to vector<8x8xf32>
    %307 = arith.subf %303, %306 : vector<8x8xf32>
    %308 = math.exp %307 : vector<8x8xf32>
    %cst_115 = arith.constant dense<0.000000e+00> : vector<8xf32>
    %309 = vector.multi_reduction <add>, %308, %cst_115 [1] : vector<8x8xf32> to vector<8xf32>
    %310 = vector.shape_cast %309 : vector<8xf32> to vector<8x1xf32>
    %311 = tpu.reciprocal %310 {approx = true} : vector<8x1xf32> -> vector<8x1xf32>
    %312 = vector.broadcast %311 : vector<8x1xf32> to vector<8x8xf32>
    %313 = arith.mulf %308, %312 : vector<8x8xf32>
    %cst_116 = arith.constant dense<0.000000e+00> : vector<8x8xf32>
    %314 = tpu.matmul %313, %301, %cst_116 {dimension_numbers = #tpu.dot_dimension_numbers<[1], [0], [0], [1], [0, 0, 1, 1], [], []>} : vector<8x8xf32>, vector<8x8xf32>, vector<8x8xf32> -> vector<8x8xf32>
    %315 = vector.extract_strided_slice %266 {offsets = [0, 24], sizes = [8, 8], strides = [1, 1]} : vector<16x96xf32> to vector<8x8xf32>
    %316 = vector.extract_strided_slice %266 {offsets = [0, 56], sizes = [8, 8], strides = [1, 1]} : vector<16x96xf32> to vector<8x8xf32>
    %317 = vector.extract_strided_slice %266 {offsets = [0, 88], sizes = [8, 8], strides = [1, 1]} : vector<16x96xf32> to vector<8x8xf32>
    %318 = tpu.transpose %316, [1, 0] : vector<8x8xf32> -> vector<8x8xf32>
    %cst_117 = arith.constant dense<0.000000e+00> : vector<8x8xf32>
    %319 = tpu.matmul %315, %318, %cst_117 {dimension_numbers = #tpu.dot_dimension_numbers<[1], [0], [0], [1], [0, 0, 1, 1], [], []>} : vector<8x8xf32>, vector<8x8xf32>, vector<8x8xf32> -> vector<8x8xf32>
    %cst_118 = arith.constant dense<0xFF800000> : vector<8xf32>
    %320 = vector.multi_reduction <maximumf>, %319, %cst_118 [1] : vector<8x8xf32> to vector<8xf32>
    %321 = vector.shape_cast %320 : vector<8xf32> to vector<8x1xf32>
    %322 = vector.broadcast %321 : vector<8x1xf32> to vector<8x8xf32>
    %323 = arith.subf %319, %322 : vector<8x8xf32>
    %324 = math.exp %323 : vector<8x8xf32>
    %cst_119 = arith.constant dense<0.000000e+00> : vector<8xf32>
    %325 = vector.multi_reduction <add>, %324, %cst_119 [1] : vector<8x8xf32> to vector<8xf32>
    %326 = vector.shape_cast %325 : vector<8xf32> to vector<8x1xf32>
    %327 = tpu.reciprocal %326 {approx = true} : vector<8x1xf32> -> vector<8x1xf32>
    %328 = vector.broadcast %327 : vector<8x1xf32> to vector<8x8xf32>
    %329 = arith.mulf %324, %328 : vector<8x8xf32>
    %cst_120 = arith.constant dense<0.000000e+00> : vector<8x8xf32>
    %330 = tpu.matmul %329, %317, %cst_120 {dimension_numbers = #tpu.dot_dimension_numbers<[1], [0], [0], [1], [0, 0, 1, 1], [], []>} : vector<8x8xf32>, vector<8x8xf32>, vector<8x8xf32> -> vector<8x8xf32>
    %331 = tpu.concatenate %282, %298, %314, %330 in 1 : vector<8x8xf32>, vector<8x8xf32>, vector<8x8xf32>, vector<8x8xf32> -> vector<8x32xf32>
    %332 = vector.extract_strided_slice %266 {offsets = [8, 0], sizes = [8, 8], strides = [1, 1]} : vector<16x96xf32> to vector<8x8xf32>
    %333 = vector.extract_strided_slice %266 {offsets = [8, 32], sizes = [8, 8], strides = [1, 1]} : vector<16x96xf32> to vector<8x8xf32>
    %334 = vector.extract_strided_slice %266 {offsets = [8, 64], sizes = [8, 8], strides = [1, 1]} : vector<16x96xf32> to vector<8x8xf32>
    %335 = tpu.transpose %333, [1, 0] : vector<8x8xf32> -> vector<8x8xf32>
    %cst_121 = arith.constant dense<0.000000e+00> : vector<8x8xf32>
    %336 = tpu.matmul %332, %335, %cst_121 {dimension_numbers = #tpu.dot_dimension_numbers<[1], [0], [0], [1], [0, 0, 1, 1], [], []>} : vector<8x8xf32>, vector<8x8xf32>, vector<8x8xf32> -> vector<8x8xf32>
    %cst_122 = arith.constant dense<0xFF800000> : vector<8xf32>
    %337 = vector.multi_reduction <maximumf>, %336, %cst_122 [1] : vector<8x8xf32> to vector<8xf32>
    %338 = vector.shape_cast %337 : vector<8xf32> to vector<8x1xf32>
    %339 = vector.broadcast %338 : vector<8x1xf32> to vector<8x8xf32>
    %340 = arith.subf %336, %339 : vector<8x8xf32>
    %341 = math.exp %340 : vector<8x8xf32>
    %cst_123 = arith.constant dense<0.000000e+00> : vector<8xf32>
    %342 = vector.multi_reduction <add>, %341, %cst_123 [1] : vector<8x8xf32> to vector<8xf32>
    %343 = vector.shape_cast %342 : vector<8xf32> to vector<8x1xf32>
    %344 = tpu.reciprocal %343 {approx = true} : vector<8x1xf32> -> vector<8x1xf32>
    %345 = vector.broadcast %344 : vector<8x1xf32> to vector<8x8xf32>
    %346 = arith.mulf %341, %345 : vector<8x8xf32>
    %cst_124 = arith.constant dense<0.000000e+00> : vector<8x8xf32>
    %347 = tpu.matmul %346, %334, %cst_124 {dimension_numbers = #tpu.dot_dimension_numbers<[1], [0], [0], [1], [0, 0, 1, 1], [], []>} : vector<8x8xf32>, vector<8x8xf32>, vector<8x8xf32> -> vector<8x8xf32>
    %348 = vector.extract_strided_slice %266 {offsets = [8, 8], sizes = [8, 8], strides = [1, 1]} : vector<16x96xf32> to vector<8x8xf32>
    %349 = vector.extract_strided_slice %266 {offsets = [8, 40], sizes = [8, 8], strides = [1, 1]} : vector<16x96xf32> to vector<8x8xf32>
    %350 = vector.extract_strided_slice %266 {offsets = [8, 72], sizes = [8, 8], strides = [1, 1]} : vector<16x96xf32> to vector<8x8xf32>
    %351 = tpu.transpose %349, [1, 0] : vector<8x8xf32> -> vector<8x8xf32>
    %cst_125 = arith.constant dense<0.000000e+00> : vector<8x8xf32>
    %352 = tpu.matmul %348, %351, %cst_125 {dimension_numbers = #tpu.dot_dimension_numbers<[1], [0], [0], [1], [0, 0, 1, 1], [], []>} : vector<8x8xf32>, vector<8x8xf32>, vector<8x8xf32> -> vector<8x8xf32>
    %cst_126 = arith.constant dense<0xFF800000> : vector<8xf32>
    %353 = vector.multi_reduction <maximumf>, %352, %cst_126 [1] : vector<8x8xf32> to vector<8xf32>
    %354 = vector.shape_cast %353 : vector<8xf32> to vector<8x1xf32>
    %355 = vector.broadcast %354 : vector<8x1xf32> to vector<8x8xf32>
    %356 = arith.subf %352, %355 : vector<8x8xf32>
    %357 = math.exp %356 : vector<8x8xf32>
    %cst_127 = arith.constant dense<0.000000e+00> : vector<8xf32>
    %358 = vector.multi_reduction <add>, %357, %cst_127 [1] : vector<8x8xf32> to vector<8xf32>
    %359 = vector.shape_cast %358 : vector<8xf32> to vector<8x1xf32>
    %360 = tpu.reciprocal %359 {approx = true} : vector<8x1xf32> -> vector<8x1xf32>
    %361 = vector.broadcast %360 : vector<8x1xf32> to vector<8x8xf32>
    %362 = arith.mulf %357, %361 : vector<8x8xf32>
    %cst_128 = arith.constant dense<0.000000e+00> : vector<8x8xf32>
    %363 = tpu.matmul %362, %350, %cst_128 {dimension_numbers = #tpu.dot_dimension_numbers<[1], [0], [0], [1], [0, 0, 1, 1], [], []>} : vector<8x8xf32>, vector<8x8xf32>, vector<8x8xf32> -> vector<8x8xf32>
    %364 = vector.extract_strided_slice %266 {offsets = [8, 16], sizes = [8, 8], strides = [1, 1]} : vector<16x96xf32> to vector<8x8xf32>
    %365 = vector.extract_strided_slice %266 {offsets = [8, 48], sizes = [8, 8], strides = [1, 1]} : vector<16x96xf32> to vector<8x8xf32>
    %366 = vector.extract_strided_slice %266 {offsets = [8, 80], sizes = [8, 8], strides = [1, 1]} : vector<16x96xf32> to vector<8x8xf32>
    %367 = tpu.transpose %365, [1, 0] : vector<8x8xf32> -> vector<8x8xf32>
    %cst_129 = arith.constant dense<0.000000e+00> : vector<8x8xf32>
    %368 = tpu.matmul %364, %367, %cst_129 {dimension_numbers = #tpu.dot_dimension_numbers<[1], [0], [0], [1], [0, 0, 1, 1], [], []>} : vector<8x8xf32>, vector<8x8xf32>, vector<8x8xf32> -> vector<8x8xf32>
    %cst_130 = arith.constant dense<0xFF800000> : vector<8xf32>
    %369 = vector.multi_reduction <maximumf>, %368, %cst_130 [1] : vector<8x8xf32> to vector<8xf32>
    %370 = vector.shape_cast %369 : vector<8xf32> to vector<8x1xf32>
    %371 = vector.broadcast %370 : vector<8x1xf32> to vector<8x8xf32>
    %372 = arith.subf %368, %371 : vector<8x8xf32>
    %373 = math.exp %372 : vector<8x8xf32>
    %cst_131 = arith.constant dense<0.000000e+00> : vector<8xf32>
    %374 = vector.multi_reduction <add>, %373, %cst_131 [1] : vector<8x8xf32> to vector<8xf32>
    %375 = vector.shape_cast %374 : vector<8xf32> to vector<8x1xf32>
    %376 = tpu.reciprocal %375 {approx = true} : vector<8x1xf32> -> vector<8x1xf32>
    %377 = vector.broadcast %376 : vector<8x1xf32> to vector<8x8xf32>
    %378 = arith.mulf %373, %377 : vector<8x8xf32>
    %cst_132 = arith.constant dense<0.000000e+00> : vector<8x8xf32>
    %379 = tpu.matmul %378, %366, %cst_132 {dimension_numbers = #tpu.dot_dimension_numbers<[1], [0], [0], [1], [0, 0, 1, 1], [], []>} : vector<8x8xf32>, vector<8x8xf32>, vector<8x8xf32> -> vector<8x8xf32>
    %380 = vector.extract_strided_slice %266 {offsets = [8, 24], sizes = [8, 8], strides = [1, 1]} : vector<16x96xf32> to vector<8x8xf32>
    %381 = vector.extract_strided_slice %266 {offsets = [8, 56], sizes = [8, 8], strides = [1, 1]} : vector<16x96xf32> to vector<8x8xf32>
    %382 = vector.extract_strided_slice %266 {offsets = [8, 88], sizes = [8, 8], strides = [1, 1]} : vector<16x96xf32> to vector<8x8xf32>
    %383 = tpu.transpose %381, [1, 0] : vector<8x8xf32> -> vector<8x8xf32>
    %cst_133 = arith.constant dense<0.000000e+00> : vector<8x8xf32>
    %384 = tpu.matmul %380, %383, %cst_133 {dimension_numbers = #tpu.dot_dimension_numbers<[1], [0], [0], [1], [0, 0, 1, 1], [], []>} : vector<8x8xf32>, vector<8x8xf32>, vector<8x8xf32> -> vector<8x8xf32>
    %cst_134 = arith.constant dense<0xFF800000> : vector<8xf32>
    %385 = vector.multi_reduction <maximumf>, %384, %cst_134 [1] : vector<8x8xf32> to vector<8xf32>
    %386 = vector.shape_cast %385 : vector<8xf32> to vector<8x1xf32>
    %387 = vector.broadcast %386 : vector<8x1xf32> to vector<8x8xf32>
    %388 = arith.subf %384, %387 : vector<8x8xf32>
    %389 = math.exp %388 : vector<8x8xf32>
    %cst_135 = arith.constant dense<0.000000e+00> : vector<8xf32>
    %390 = vector.multi_reduction <add>, %389, %cst_135 [1] : vector<8x8xf32> to vector<8xf32>
    %391 = vector.shape_cast %390 : vector<8xf32> to vector<8x1xf32>
    %392 = tpu.reciprocal %391 {approx = true} : vector<8x1xf32> -> vector<8x1xf32>
    %393 = vector.broadcast %392 : vector<8x1xf32> to vector<8x8xf32>
    %394 = arith.mulf %389, %393 : vector<8x8xf32>
    %cst_136 = arith.constant dense<0.000000e+00> : vector<8x8xf32>
    %395 = tpu.matmul %394, %382, %cst_136 {dimension_numbers = #tpu.dot_dimension_numbers<[1], [0], [0], [1], [0, 0, 1, 1], [], []>} : vector<8x8xf32>, vector<8x8xf32>, vector<8x8xf32> -> vector<8x8xf32>
    %396 = tpu.concatenate %347, %363, %379, %395 in 1 : vector<8x8xf32>, vector<8x8xf32>, vector<8x8xf32>, vector<8x8xf32> -> vector<8x32xf32>
    %397 = tpu.concatenate %331, %396 in 0 : vector<8x32xf32>, vector<8x32xf32> -> vector<16x32xf32>
    %c1_137 = arith.constant 1 : index
    %c0_138 = arith.constant 0 : index
    %c0_139 = arith.constant 0 : index
    %398 = vector.load %arg7[%c1_137, %c0_138, %c0_139] : memref<2x32x128xf32, #tpu.memory_space<vmem>>, vector<1x32x128xf32>
    %399 = vector.shape_cast %398 : vector<1x32x128xf32> to vector<32x128xf32>
    %cst_140 = arith.constant dense<0.000000e+00> : vector<16x128xf32>
    %400 = tpu.matmul %397, %399, %cst_140 {dimension_numbers = #tpu.dot_dimension_numbers<[1], [0], [0], [1], [0, 0, 1, 1], [], []>} : vector<16x32xf32>, vector<32x128xf32>, vector<16x128xf32> -> vector<16x128xf32>
    %c1_141 = arith.constant 1 : index
    %c0_142 = arith.constant 0 : index
    %c0_143 = arith.constant 0 : index
    %401 = vector.load %arg8[%c1_141, %c0_142, %c0_143] : memref<2x1x128xf32, #tpu.memory_space<vmem>>, vector<1x1x128xf32>
    %402 = vector.shape_cast %401 : vector<1x1x128xf32> to vector<1x128xf32>
    %403 = vector.broadcast %402 : vector<1x128xf32> to vector<16x128xf32>
    %404 = arith.addf %400, %403 : vector<16x128xf32>
    %c1_144 = arith.constant 1 : index
    %c0_145 = arith.constant 0 : index
    %c0_146 = arith.constant 0 : index
    %405 = vector.load %arg9[%c1_144, %c0_145, %c0_146] : memref<2x1x128xf32, #tpu.memory_space<vmem>>, vector<1x1x128xf32>
    %406 = vector.shape_cast %405 : vector<1x1x128xf32> to vector<1x128xf32>
    %c1_147 = arith.constant 1 : index
    %c0_148 = arith.constant 0 : index
    %c0_149 = arith.constant 0 : index
    %407 = vector.load %arg10[%c1_147, %c0_148, %c0_149] : memref<2x1x128xf32, #tpu.memory_space<vmem>>, vector<1x1x128xf32>
    %408 = vector.shape_cast %407 : vector<1x1x128xf32> to vector<1x128xf32>
    %409 = arith.addf %404, %259 : vector<16x128xf32>
    %cst_150 = arith.constant dense<0.000000e+00> : vector<16xf32>
    %410 = vector.multi_reduction <add>, %409, %cst_150 [1] : vector<16x128xf32> to vector<16xf32>
    %411 = vector.shape_cast %410 : vector<16xf32> to vector<16x1xf32>
    %cst_151 = arith.constant 3.125000e-02 : f32
    %412 = vector.broadcast %cst_151 : f32 to vector<16x1xf32>
    %413 = arith.mulf %411, %412 : vector<16x1xf32>
    %414 = vector.broadcast %413 : vector<16x1xf32> to vector<16x128xf32>
    %415 = arith.subf %409, %414 : vector<16x128xf32>
    %416 = vector.broadcast %4 : vector<1x128xf32> to vector<16x128xf32>
    %417 = arith.mulf %415, %416 : vector<16x128xf32>
    %418 = arith.mulf %417, %417 : vector<16x128xf32>
    %cst_152 = arith.constant dense<0.000000e+00> : vector<16xf32>
    %419 = vector.multi_reduction <add>, %418, %cst_152 [1] : vector<16x128xf32> to vector<16xf32>
    %420 = vector.shape_cast %419 : vector<16xf32> to vector<16x1xf32>
    %cst_153 = arith.constant 3.125000e-02 : f32
    %421 = vector.broadcast %cst_153 : f32 to vector<16x1xf32>
    %422 = arith.mulf %420, %421 : vector<16x1xf32>
    %cst_154 = arith.constant 9.99999974E-6 : f32
    %423 = vector.broadcast %cst_154 : f32 to vector<16x1xf32>
    %424 = arith.addf %422, %423 : vector<16x1xf32>
    %425 = math.rsqrt %424 : vector<16x1xf32>
    %426 = vector.broadcast %425 : vector<16x1xf32> to vector<16x128xf32>
    %427 = arith.mulf %417, %426 : vector<16x128xf32>
    %428 = vector.broadcast %406 : vector<1x128xf32> to vector<16x128xf32>
    %429 = arith.mulf %427, %428 : vector<16x128xf32>
    %430 = vector.broadcast %408 : vector<1x128xf32> to vector<16x128xf32>
    %431 = arith.addf %429, %430 : vector<16x128xf32>
    %c1_155 = arith.constant 1 : index
    %c0_156 = arith.constant 0 : index
    %c0_157 = arith.constant 0 : index
    %432 = vector.load %arg11[%c1_155, %c0_156, %c0_157] : memref<2x128x128xf32, #tpu.memory_space<vmem>>, vector<1x128x128xf32>
    %433 = vector.shape_cast %432 : vector<1x128x128xf32> to vector<128x128xf32>
    %cst_158 = arith.constant dense<0.000000e+00> : vector<16x128xf32>
    %434 = tpu.matmul %431, %433, %cst_158 {dimension_numbers = #tpu.dot_dimension_numbers<[1], [0], [0], [1], [0, 0, 1, 1], [], []>} : vector<16x128xf32>, vector<128x128xf32>, vector<16x128xf32> -> vector<16x128xf32>
    %c1_159 = arith.constant 1 : index
    %c0_160 = arith.constant 0 : index
    %c0_161 = arith.constant 0 : index
    %435 = vector.load %arg12[%c1_159, %c0_160, %c0_161] : memref<2x1x128xf32, #tpu.memory_space<vmem>>, vector<1x1x128xf32>
    %436 = vector.shape_cast %435 : vector<1x1x128xf32> to vector<1x128xf32>
    %437 = vector.broadcast %436 : vector<1x128xf32> to vector<16x128xf32>
    %438 = arith.addf %434, %437 : vector<16x128xf32>
    %cst_162 = arith.constant 5.000000e-01 : f32
    %439 = vector.broadcast %cst_162 : f32 to vector<16x128xf32>
    %440 = arith.mulf %439, %438 : vector<16x128xf32>
    %cst_163 = arith.constant 0.707106769 : f32
    %441 = vector.broadcast %cst_163 : f32 to vector<16x128xf32>
    %442 = arith.mulf %438, %441 : vector<16x128xf32>
    %443 = math.erf %442 : vector<16x128xf32>
    %cst_164 = arith.constant 1.000000e+00 : f32
    %444 = vector.broadcast %cst_164 : f32 to vector<16x128xf32>
    %445 = arith.addf %444, %443 : vector<16x128xf32>
    %446 = arith.mulf %440, %445 : vector<16x128xf32>
    %c1_165 = arith.constant 1 : index
    %c0_166 = arith.constant 0 : index
    %c0_167 = arith.constant 0 : index
    %447 = vector.load %arg13[%c1_165, %c0_166, %c0_167] : memref<2x128x128xf32, #tpu.memory_space<vmem>>, vector<1x128x128xf32>
    %448 = vector.shape_cast %447 : vector<1x128x128xf32> to vector<128x128xf32>
    %cst_168 = arith.constant dense<0.000000e+00> : vector<16x128xf32>
    %449 = tpu.matmul %446, %448, %cst_168 {dimension_numbers = #tpu.dot_dimension_numbers<[1], [0], [0], [1], [0, 0, 1, 1], [], []>} : vector<16x128xf32>, vector<128x128xf32>, vector<16x128xf32> -> vector<16x128xf32>
    %c1_169 = arith.constant 1 : index
    %c0_170 = arith.constant 0 : index
    %c0_171 = arith.constant 0 : index
    %450 = vector.load %arg14[%c1_169, %c0_170, %c0_171] : memref<2x1x128xf32, #tpu.memory_space<vmem>>, vector<1x1x128xf32>
    %451 = vector.shape_cast %450 : vector<1x1x128xf32> to vector<1x128xf32>
    %452 = vector.broadcast %451 : vector<1x128xf32> to vector<16x128xf32>
    %453 = arith.addf %449, %452 : vector<16x128xf32>
    %c1_172 = arith.constant 1 : index
    %c0_173 = arith.constant 0 : index
    %c0_174 = arith.constant 0 : index
    %454 = vector.load %arg15[%c1_172, %c0_173, %c0_174] : memref<2x1x128xf32, #tpu.memory_space<vmem>>, vector<1x1x128xf32>
    %455 = vector.shape_cast %454 : vector<1x1x128xf32> to vector<1x128xf32>
    %c1_175 = arith.constant 1 : index
    %c0_176 = arith.constant 0 : index
    %c0_177 = arith.constant 0 : index
    %456 = vector.load %arg16[%c1_175, %c0_176, %c0_177] : memref<2x1x128xf32, #tpu.memory_space<vmem>>, vector<1x1x128xf32>
    %457 = vector.shape_cast %456 : vector<1x1x128xf32> to vector<1x128xf32>
    %458 = arith.addf %453, %431 : vector<16x128xf32>
    %cst_178 = arith.constant dense<0.000000e+00> : vector<16xf32>
    %459 = vector.multi_reduction <add>, %458, %cst_178 [1] : vector<16x128xf32> to vector<16xf32>
    %460 = vector.shape_cast %459 : vector<16xf32> to vector<16x1xf32>
    %cst_179 = arith.constant 3.125000e-02 : f32
    %461 = vector.broadcast %cst_179 : f32 to vector<16x1xf32>
    %462 = arith.mulf %460, %461 : vector<16x1xf32>
    %463 = vector.broadcast %462 : vector<16x1xf32> to vector<16x128xf32>
    %464 = arith.subf %458, %463 : vector<16x128xf32>
    %465 = vector.broadcast %4 : vector<1x128xf32> to vector<16x128xf32>
    %466 = arith.mulf %464, %465 : vector<16x128xf32>
    %467 = arith.mulf %466, %466 : vector<16x128xf32>
    %cst_180 = arith.constant dense<0.000000e+00> : vector<16xf32>
    %468 = vector.multi_reduction <add>, %467, %cst_180 [1] : vector<16x128xf32> to vector<16xf32>
    %469 = vector.shape_cast %468 : vector<16xf32> to vector<16x1xf32>
    %cst_181 = arith.constant 3.125000e-02 : f32
    %470 = vector.broadcast %cst_181 : f32 to vector<16x1xf32>
    %471 = arith.mulf %469, %470 : vector<16x1xf32>
    %cst_182 = arith.constant 9.99999974E-6 : f32
    %472 = vector.broadcast %cst_182 : f32 to vector<16x1xf32>
    %473 = arith.addf %471, %472 : vector<16x1xf32>
    %474 = math.rsqrt %473 : vector<16x1xf32>
    %475 = vector.broadcast %474 : vector<16x1xf32> to vector<16x128xf32>
    %476 = arith.mulf %466, %475 : vector<16x128xf32>
    %477 = vector.broadcast %455 : vector<1x128xf32> to vector<16x128xf32>
    %478 = arith.mulf %476, %477 : vector<16x128xf32>
    %479 = vector.broadcast %457 : vector<1x128xf32> to vector<16x128xf32>
    %480 = arith.addf %478, %479 : vector<16x128xf32>
    %c0_183 = arith.constant 0 : index
    %c0_184 = arith.constant 0 : index
    %481 = vector.load %arg17[%c0_183, %c0_184] : memref<16x128xf32, #tpu.memory_space<vmem>>, vector<16x128xf32>
    tpu.vector_store %arg17[%c0_183, %c0_184], %480 {strides = array<i32>} : memref<16x128xf32, #tpu.memory_space<vmem>>, vector<16x128xf32>,
    return
  }
}

</mosaic_0001>

<llo_original>
// kernel: _lambda_.1
$region0: #{_lambda_.1}
  #allocation0 [shape = 'u32[]', space=smem, size = 0x4, offset = 0x4, fixed_abs, tag = 'smem constant byte address 0x4 - core index']
  #allocation1 [shape = 'u32[144,128]{1,0:T(1,128)}', space=vmem, size = 0x12000, scoped, tag = 'internal scratch']
  %s0 = inlined_call_operand.vmem [shape: s32[16,1], index: 0, kind: input, shape index: {}]
  %s1 = inlined_call_operand.vmem [shape: f32[128,128], index: 1, kind: input, shape index: {}]
  %s2 = inlined_call_operand.vmem [shape: f32[16,128], index: 2, kind: input, shape index: {}]
  %s3 = inlined_call_operand.vmem [shape: f32[1,128], index: 3, kind: input, shape index: {}]
  %s4 = inlined_call_operand.vmem [shape: f32[1,128], index: 4, kind: input, shape index: {}]
  %s5 = inlined_call_operand.vmem [shape: f32[2,128,96], index: 5, kind: input, shape index: {}]
  %s6 = inlined_call_operand.vmem [shape: f32[2,1,96], index: 6, kind: input, shape index: {}]
  %s7 = inlined_call_operand.vmem [shape: f32[2,32,128], index: 7, kind: input, shape index: {}]
  %s8 = inlined_call_operand.vmem [shape: f32[2,1,128], index: 8, kind: input, shape index: {}, may-alias: {8,10,12,14,16}]
  %s9 = inlined_call_operand.vmem [shape: f32[2,1,128], index: 9, kind: input, shape index: {}, may-alias: {9,15}]
  %s10 = inlined_call_operand.vmem [shape: f32[2,1,128], index: 10, kind: input, shape index: {}, may-alias: {8,10,12,14,16}]
  %s11 = inlined_call_operand.vmem [shape: f32[2,128,128], index: 11, kind: input, shape index: {}]
  %s12 = inlined_call_operand.vmem [shape: f32[2,1,128], index: 12, kind: input, shape index: {}, may-alias: {8,10,12,14,16}]
  %s13 = inlined_call_operand.vmem [shape: f32[2,128,128], index: 13, kind: input, shape index: {}]
  %s14 = inlined_call_operand.vmem [shape: f32[2,1,128], index: 14, kind: input, shape index: {}, may-alias: {8,10,12,14,16}]
  %s15 = inlined_call_operand.vmem [shape: f32[2,1,128], index: 15, kind: input, shape index: {}, may-alias: {9,15}]
  %s16 = inlined_call_operand.vmem [shape: f32[2,1,128], index: 16, kind: input, shape index: {}, may-alias: {8,10,12,14,16}]
  %s17 = inlined_call_operand.vmem [shape: f32[16,128], index: 17, kind: output, shape index: {}]
  %s18 = sld [smem:[#allocation0]]
  $region78: #{_lambda_.1} parent=0
    _
  %s20 = ssub.s32 1, %s18
  %s21 = scalar_select 0, %s20, %s18
  // Predicated region
  $region2: #{_lambda_.1} parent=0 // pred_check
    _
  $region3: #{_lambda_.1} parent=0 // pred_check_branch
    %23 = sbr.rel (0) target = $region5
  $region4: #{_lambda_.1} parent=0 // pred_region
    _
  $region5: #{_lambda_.1} parent=0 // pred_fallthru
    _
  // Predicated region
  $region6: #{_lambda_.1} parent=0 // pred_check
    _
  $region7: #{_lambda_.1} parent=0 // pred_check_branch
    %25 = sbr.rel (0) target = $region9
  $region8: #{_lambda_.1} parent=0 // pred_region
    _
  $region9: #{_lambda_.1} parent=0 // pred_fallthru
    _
  // Predicated region
  $region10: #{_lambda_.1} parent=0 // pred_check
    _
  $region11: #{_lambda_.1} parent=0 // pred_check_branch
    %27 = sbr.rel (0) target = $region13
  $region12: #{_lambda_.1} parent=0 // pred_region
    _
  $region13: #{_lambda_.1} parent=0 // pred_fallthru
    _
  // Predicated region
  $region14: #{_lambda_.1} parent=0 // pred_check
    _
  $region15: #{_lambda_.1} parent=0 // pred_check_branch
    %29 = sbr.rel (0) target = $region17
  $region16: #{_lambda_.1} parent=0 // pred_region
    _
  $region17: #{_lambda_.1} parent=0 // pred_fallthru
    _
  // Predicated region
  $region18: #{_lambda_.1} parent=0 // pred_check
    _
  $region19: #{_lambda_.1} parent=0 // pred_check_branch
    %31 = sbr.rel (0) target = $region21
  $region20: #{_lambda_.1} parent=0 // pred_region
    _
  $region21: #{_lambda_.1} parent=0 // pred_fallthru
    _
  // Predicated region
  $region22: #{_lambda_.1} parent=0 // pred_check
    _
  $region23: #{_lambda_.1} parent=0 // pred_check_branch
    %33 = sbr.rel (0) target = $region25
  $region24: #{_lambda_.1} parent=0 // pred_region
    _
  $region25: #{_lambda_.1} parent=0 // pred_fallthru
    _
  // Predicated region
  $region26: #{_lambda_.1} parent=0 // pred_check
    _
  $region27: #{_lambda_.1} parent=0 // pred_check_branch
    %35 = sbr.rel (0) target = $region29
  $region28: #{_lambda_.1} parent=0 // pred_region
    _
  $region29: #{_lambda_.1} parent=0 // pred_fallthru
    _
  // Predicated region
  $region30: #{_lambda_.1} parent=0 // pred_check
    _
  $region31: #{_lambda_.1} parent=0 // pred_check_branch
    %37 = sbr.rel (0) target = $region33
  $region32: #{_lambda_.1} parent=0 // pred_region
    _
  $region33: #{_lambda_.1} parent=0 // pred_fallthru
    _
  // Predicated region
  $region34: #{_lambda_.1} parent=0 // pred_check
    _
  $region35: #{_lambda_.1} parent=0 // pred_check_branch
    %39 = sbr.rel (0) target = $region37
  $region36: #{_lambda_.1} parent=0 // pred_region
    _
  $region37: #{_lambda_.1} parent=0 // pred_fallthru
    _
  // Predicated region
  $region38: #{_lambda_.1} parent=0 // pred_check
    _
  $region39: #{_lambda_.1} parent=0 // pred_check_branch
    %41 = sbr.rel (0) target = $region41
  $region40: #{_lambda_.1} parent=0 // pred_region
    _
  $region41: #{_lambda_.1} parent=0 // pred_fallthru
    _
  // Predicated region
  $region42: #{_lambda_.1} parent=0 // pred_check
    _
  $region43: #{_lambda_.1} parent=0 // pred_check_branch
    %43 = sbr.rel (0) target = $region45
  $region44: #{_lambda_.1} parent=0 // pred_region
    _
  $region45: #{_lambda_.1} parent=0 // pred_fallthru
    _
  // Predicated region
  $region46: #{_lambda_.1} parent=0 // pred_check
    _
  $region47: #{_lambda_.1} parent=0 // pred_check_branch
    %45 = sbr.rel (0) target = $region49
  $region48: #{_lambda_.1} parent=0 // pred_region
    _
  $region49: #{_lambda_.1} parent=0 // pred_fallthru
    _
  // Predicated region
  $region50: #{_lambda_.1} parent=0 // pred_check
    _
  $region51: #{_lambda_.1} parent=0 // pred_check_branch
    %47 = sbr.rel (0) target = $region53
  $region52: #{_lambda_.1} parent=0 // pred_region
    _
  $region53: #{_lambda_.1} parent=0 // pred_fallthru
    _
  // Predicated region
  $region54: #{_lambda_.1} parent=0 // pred_check
    _
  $region55: #{_lambda_.1} parent=0 // pred_check_branch
    %49 = sbr.rel (0) target = $region57
  $region56: #{_lambda_.1} parent=0 // pred_region
    _
  $region57: #{_lambda_.1} parent=0 // pred_fallthru
    _
  // Predicated region
  $region58: #{_lambda_.1} parent=0 // pred_check
    _
  $region59: #{_lambda_.1} parent=0 // pred_check_branch
    %51 = sbr.rel (0) target = $region61
  $region60: #{_lambda_.1} parent=0 // pred_region
    _
  $region61: #{_lambda_.1} parent=0 // pred_fallthru
    _
  // Predicated region
  $region62: #{_lambda_.1} parent=0 // pred_check
    _
  $region63: #{_lambda_.1} parent=0 // pred_check_branch
    %53 = sbr.rel (0) target = $region65
  $region64: #{_lambda_.1} parent=0 // pred_region
    _
  $region65: #{_lambda_.1} parent=0 // pred_fallthru
    _
  // Predicated region
  $region66: #{_lambda_.1} parent=0 // pred_check
    _
  $region67: #{_lambda_.1} parent=0 // pred_check_branch
    %55 = sbr.rel (0) target = $region69
  $region68: #{_lambda_.1} parent=0 // pred_region
    _
  $region69: #{_lambda_.1} parent=0 // pred_fallthru
    _
  %v56 = vlaneseq
  %v57 = vand.u32 %v56, 127
  %vm58 = vcmp.lt.s32.totalorder %v57, 32
  %v59 = vsel %vm58, 1, 0
  %v60 = vcvt.s32.f32 %v59
  %v61 = vld [vmem:[%s0] sm:$0xff]
  %v62 = vld [vmem:[%s0 + $0x8] sm:$0xff]
  %63 = vset.pattern.permute.xlu0 0
  %64 = vperm.xlu0 %63, %v61
  %v65 = vpop.permute.xlu0 %64
  %66 = vset.pattern.permute.xlu0 0
  %67 = vperm.xlu0 %66, %v62
  %v68 = vpop.permute.xlu0 %67
  %vm69 = vcmp.eq.s32.totalorder %v57, %v65
  %vm70 = vcmp.eq.s32.totalorder %v57, %v68
  %v71 = vsel %vm69, 1, 0
  %v72 = vsel %vm70, 1, 0
  %v73 = vcvt.s32.f32 %v71
  %v74 = vcvt.s32.f32 %v72
  %v75 = vld [vmem:[%s1] sm:$0xff]
  %v76 = vld [vmem:[%s1 + $0x8] sm:$0xff]
  %v77 = vld [vmem:[%s1 + $0x10] sm:$0xff]
  %v78 = vld [vmem:[%s1 + $0x18] sm:$0xff]
  %v79 = vld [vmem:[%s1 + $0x20] sm:$0xff]
  %v80 = vld [vmem:[%s1 + $0x28] sm:$0xff]
  %v81 = vld [vmem:[%s1 + $0x30] sm:$0xff]
  %v82 = vld [vmem:[%s1 + $0x38] sm:$0xff]
  %v83 = vld [vmem:[%s1 + $0x40] sm:$0xff]
  %v84 = vld [vmem:[%s1 + $0x48] sm:$0xff]
  %v85 = vld [vmem:[%s1 + $0x50] sm:$0xff]
  %v86 = vld [vmem:[%s1 + $0x58] sm:$0xff]
  %v87 = vld [vmem:[%s1 + $0x60] sm:$0xff]
  %v88 = vld [vmem:[%s1 + $0x68] sm:$0xff]
  %v89 = vld [vmem:[%s1 + $0x70] sm:$0xff]
  %v90 = vld [vmem:[%s1 + $0x78] sm:$0xff]
  %v91 = vld [vmem:[%s2] sm:$0xff]
  %v92 = vld [vmem:[%s2 + $0x8] sm:$0xff]
  %v93 = vld [vmem:[%s3] sm:$0x1]
  %v94 = vld [vmem:[%s4] sm:$0x1]
  %95 = vmatprep.subr.mxu0 0.0
  %96 = vmatpush1.msra.mxu0 %v75
  %97 = vmatprep.subr.mxu0 0.0
  %98 = vmatpush1.msra.mxu0 %v76
  %99 = vmatprep.subr.mxu0 0.0
  %100 = vmatpush1.msra.mxu0 %v77
  %101 = vmatprep.subr.mxu0 0.0
  %102 = vmatpush1.msra.mxu0 %v78
  %103 = vmatprep.subr.mxu0 0.0
  %104 = vmatpush1.msra.mxu0 %v79
  %105 = vmatprep.subr.mxu0 0.0
  %106 = vmatpush1.msra.mxu0 %v80
  %107 = vmatprep.subr.mxu0 0.0
  %108 = vmatpush1.msra.mxu0 %v81
  %109 = vmatprep.subr.mxu0 0.0
  %110 = vmatpush1.msra.mxu0 %v82
  %111 = vmatprep.subr.mxu0 0.0
  %112 = vmatpush1.msra.mxu0 %v83
  %113 = vmatprep.subr.mxu0 0.0
  %114 = vmatpush1.msra.mxu0 %v84
  %115 = vmatprep.subr.mxu0 0.0
  %116 = vmatpush1.msra.mxu0 %v85
  %117 = vmatprep.subr.mxu0 0.0
  %118 = vmatpush1.msra.mxu0 %v86
  %119 = vmatprep.subr.mxu0 0.0
  %120 = vmatpush1.msra.mxu0 %v87
  %121 = vmatprep.subr.mxu0 0.0
  %122 = vmatpush1.msra.mxu0 %v88
  %123 = vmatprep.subr.mxu0 0.0
  %124 = vmatpush1.msra.mxu0 %v89
  %125 = vmatprep.subr.mxu0 0.0
  %126 = vmatpush1.msra.mxu0 %v90
  %127 = vmatprep.subr.mxu0 0.0
  %128 = vmatpush1.msra.mxu0 0.0
  %129 = vmatprep.subr.mxu0 0.0
  %130 = vmatpush1.msra.mxu0 0.0
  %131 = vmatprep.subr.mxu0 0.0
  %132 = vmatpush1.msra.mxu0 0.0
  %133 = vmatprep.subr.mxu0 0.0
  %134 = vmatpush1.msra.mxu0 0.0
  %135 = vmatprep.subr.mxu0 0.0
  %136 = vmatpush1.msra.mxu0 0.0
  %137 = vmatprep.subr.mxu0 0.0
  %138 = vmatpush1.msra.mxu0 0.0
  %139 = vmatprep.subr.mxu0 0.0
  %140 = vmatpush1.msra.mxu0 0.0
  %141 = vmatprep.subr.mxu0 0.0
  %142 = vmatpush1.msra.mxu0 0.0
  %143 = vmatprep.subr.mxu0 0.0
  %144 = vmatpush1.msra.mxu0 0.0
  %145 = vmatprep.subr.mxu0 0.0
  %146 = vmatpush1.msra.mxu0 0.0
  %147 = vmatprep.subr.mxu0 0.0
  %148 = vmatpush1.msra.mxu0 0.0
  %149 = vmatprep.subr.mxu0 0.0
  %150 = vmatpush1.msra.mxu0 0.0
  %151 = vmatprep.subr.mxu0 0.0
  %152 = vmatpush1.msra.mxu0 0.0
  %153 = vmatprep.subr.mxu0 0.0
  %154 = vmatpush1.msra.mxu0 0.0
  %155 = vmatprep.subr.mxu0 0.0
  %156 = vmatpush1.msra.mxu0 0.0
  %157 = vmatprep.subr.mxu0 0.0
  %158 = vmatpush1.msra.mxu0 0.0
  %159 = vmatprep.mubr.f32.mxu0 0.0
  %160 = vmatmul.mubr.f32.gmra.mrb[0].mxu0 %v73
  %v161 = vpop.f32.mrb[0].mxu0
  %v162 = vadd.f32 %v91, %v161
  %v163 = vpop.f32.mrb[0].mxu0
  %164 = vmatprep.mubr.f32.mxu0 0.0
  %165 = vmatmul.mubr.f32.gmra.mrb[0].mxu0 %v74
  %v166 = vpop.f32.mrb[0].mxu0
  %v167 = vadd.f32 %v92, %v166
  %v168 = vpop.f32.mrb[0].mxu0
  %169 = vdwg.mxu0
  %170 = vadd.xlane.f32.xlu0 %v162
  %v171 = vpop.xlane.xlu0 %170
  %172 = vadd.xlane.f32.xlu0 %v167
  %v173 = vpop.xlane.xlu0 %172
  %v174 = vmul.f32 %v171, 0.03125
  %v175 = vmul.f32 %v173, 0.03125
  %v176 = vsub.f32 %v162, %v174
  %v177 = vsub.f32 %v167, %v175
  %v178 = vmul.f32 %v176, %v60
  %v179 = vmul.f32 %v177, %v60
  %v180 = vmul.f32 %v178, %v178
  %v181 = vmul.f32 %v179, %v179
  %182 = vadd.xlane.f32.xlu0 %v180
  %v183 = vpop.xlane.xlu0 %182
  %184 = vadd.xlane.f32.xlu0 %v181
  %v185 = vpop.xlane.xlu0 %184
  %v186 = vmul.f32 %v183, 0.03125
  %v187 = vmul.f32 %v185, 0.03125
  %v188 = vadd.f32 %v186, 1e-05
  %v189 = vadd.f32 %v187, 1e-05
  %v190 = vrsqrt.pop %v188
  %v191 = vrsqrt.pop %v189
  %v192 = vmul.f32 %v178, %v190
  %v193 = vmul.f32 %v179, %v191
  %v195 = vlaneseq
  %v196 = vshrl.u32 %v195, 7
  %v197 = vsub.s32 0, %v196
  %v198 = vrot.slane %v93, %v197
  %v200 = vmul.f32 %v192, %v198
  %v201 = vmul.f32 %v193, %v198
  %v203 = vlaneseq
  %v204 = vshrl.u32 %v203, 7
  %v205 = vsub.s32 0, %v204
  %v206 = vrot.slane %v94, %v205
  %v208 = vadd.f32 %v200, %v206
  %v209 = vadd.f32 %v201, %v206
  %v210 = vld [vmem:[%s5] sm:$0xff]
  %v211 = vld [vmem:[%s5 + $0x8] sm:$0xff]
  %v212 = vld [vmem:[%s5 + $0x10] sm:$0xff]
  %v213 = vld [vmem:[%s5 + $0x18] sm:$0xff]
  %v214 = vld [vmem:[%s5 + $0x20] sm:$0xff]
  %v215 = vld [vmem:[%s5 + $0x28] sm:$0xff]
  %v216 = vld [vmem:[%s5 + $0x30] sm:$0xff]
  %v217 = vld [vmem:[%s5 + $0x38] sm:$0xff]
  %v218 = vld [vmem:[%s5 + $0x40] sm:$0xff]
  %v219 = vld [vmem:[%s5 + $0x48] sm:$0xff]
  %v220 = vld [vmem:[%s5 + $0x50] sm:$0xff]
  %v221 = vld [vmem:[%s5 + $0x58] sm:$0xff]
  %v222 = vld [vmem:[%s5 + $0x60] sm:$0xff]
  %v223 = vld [vmem:[%s5 + $0x68] sm:$0xff]
  %v224 = vld [vmem:[%s5 + $0x70] sm:$0xff]
  %v225 = vld [vmem:[%s5 + $0x78] sm:$0xff]
  %v226 = vld [vmem:[%s6] sm:$0x1]
  %v228 = vlaneseq
  %v229 = vshrl.u32 %v228, 7
  %v230 = vsub.s32 0, %v229
  %v231 = vrot.slane %v226, %v230
  %233 = vmatprep.subr.mxu0 0.0
  %234 = vmatpush1.msra.mxu0 %v210
  %235 = vmatprep.subr.mxu0 0.0
  %236 = vmatpush1.msra.mxu0 %v211
  %237 = vmatprep.subr.mxu0 0.0
  %238 = vmatpush1.msra.mxu0 %v212
  %239 = vmatprep.subr.mxu0 0.0
  %240 = vmatpush1.msra.mxu0 %v213
  %241 = vmatprep.subr.mxu0 0.0
  %242 = vmatpush1.msra.mxu0 %v214
  %243 = vmatprep.subr.mxu0 0.0
  %244 = vmatpush1.msra.mxu0 %v215
  %245 = vmatprep.subr.mxu0 0.0
  %246 = vmatpush1.msra.mxu0 %v216
  %247 = vmatprep.subr.mxu0 0.0
  %248 = vmatpush1.msra.mxu0 %v217
  %249 = vmatprep.subr.mxu0 0.0
  %250 = vmatpush1.msra.mxu0 %v218
  %251 = vmatprep.subr.mxu0 0.0
  %252 = vmatpush1.msra.mxu0 %v219
  %253 = vmatprep.subr.mxu0 0.0
  %254 = vmatpush1.msra.mxu0 %v220
  %255 = vmatprep.subr.mxu0 0.0
  %256 = vmatpush1.msra.mxu0 %v221
  %257 = vmatprep.subr.mxu0 0.0
  %258 = vmatpush1.msra.mxu0 %v222
  %259 = vmatprep.subr.mxu0 0.0
  %260 = vmatpush1.msra.mxu0 %v223
  %261 = vmatprep.subr.mxu0 0.0
  %262 = vmatpush1.msra.mxu0 %v224
  %263 = vmatprep.subr.mxu0 0.0
  %264 = vmatpush1.msra.mxu0 %v225
  %265 = vmatprep.subr.mxu0 0.0
  %266 = vmatpush1.msra.mxu0 0.0
  %267 = vmatprep.subr.mxu0 0.0
  %268 = vmatpush1.msra.mxu0 0.0
  %269 = vmatprep.subr.mxu0 0.0
  %270 = vmatpush1.msra.mxu0 0.0
  %271 = vmatprep.subr.mxu0 0.0
  %272 = vmatpush1.msra.mxu0 0.0
  %273 = vmatprep.subr.mxu0 0.0
  %274 = vmatpush1.msra.mxu0 0.0
  %275 = vmatprep.subr.mxu0 0.0
  %276 = vmatpush1.msra.mxu0 0.0
  %277 = vmatprep.subr.mxu0 0.0
  %278 = vmatpush1.msra.mxu0 0.0
  %279 = vmatprep.subr.mxu0 0.0
  %280 = vmatpush1.msra.mxu0 0.0
  %281 = vmatprep.subr.mxu0 0.0
  %282 = vmatpush1.msra.mxu0 0.0
  %283 = vmatprep.subr.mxu0 0.0
  %284 = vmatpush1.msra.mxu0 0.0
  %285 = vmatprep.subr.mxu0 0.0
  %286 = vmatpush1.msra.mxu0 0.0
  %287 = vmatprep.subr.mxu0 0.0
  %288 = vmatpush1.msra.mxu0 0.0
  %289 = vmatprep.subr.mxu0 0.0
  %290 = vmatpush1.msra.mxu0 0.0
  %291 = vmatprep.subr.mxu0 0.0
  %292 = vmatpush1.msra.mxu0 0.0
  %293 = vmatprep.subr.mxu0 0.0
  %294 = vmatpush1.msra.mxu0 0.0
  %295 = vmatprep.subr.mxu0 0.0
  %296 = vmatpush1.msra.mxu0 0.0
  %297 = vmatprep.mubr.f32.mxu0 0.0
  %298 = vmatmul.mubr.f32.gmra.mrb[0].mxu0 %v208
  %v299 = vpop.f32.mrb[0].mxu0
  %v300 = vadd.f32 %v231, %v299
  %v301 = vpop.f32.mrb[0].mxu0
  %302 = vmatprep.mubr.f32.mxu0 0.0
  %303 = vmatmul.mubr.f32.gmra.mrb[0].mxu0 %v209
  %v304 = vpop.f32.mrb[0].mxu0
  %v305 = vadd.f32 %v231, %v304
  %v306 = vpop.f32.mrb[0].mxu0
  %307 = vdwg.mxu0
  %309 = vrot.lane.b32.xlu0 %v300, 96
  %v310 = vpop.permute.xlu0 %309
  %vm311 = vcmask 64512
  %v312 = vsel %vm311, %v300, 0
  %v314 = vsel %vm311, %v310, 0
  %316 = vmatprep.subr.mxu0 0.0
  %317 = vmatpush1.xpose.msra.mxu0 %v314
  %318 = vmatprep.subr.mxu0 0.0
  %319 = vmatpush1.xpose.msra.mxu0 0.0
  %320 = vmatprep.subr.mxu0 0.0
  %321 = vmatpush1.xpose.msra.mxu0 0.0
  %322 = vmatprep.subr.mxu0 0.0
  %323 = vmatpush1.xpose.msra.mxu0 0.0
  %324 = vmatprep.subr.mxu0 0.0
  %325 = vmatpush1.xpose.msra.mxu0 0.0
  %326 = vmatprep.subr.mxu0 0.0
  %327 = vmatpush1.xpose.msra.mxu0 0.0
  %328 = vmatprep.subr.mxu0 0.0
  %329 = vmatpush1.xpose.msra.mxu0 0.0
  %330 = vmatprep.subr.mxu0 0.0
  %331 = vmatpush1.xpose.msra.mxu0 0.0
  %332 = vmatprep.subr.mxu0 0.0
  %333 = vmatpush1.xpose.msra.mxu0 0.0
  %334 = vmatprep.subr.mxu0 0.0
  %335 = vmatpush1.xpose.msra.mxu0 0.0
  %336 = vmatprep.subr.mxu0 0.0
  %337 = vmatpush1.xpose.msra.mxu0 0.0
  %338 = vmatprep.subr.mxu0 0.0
  %339 = vmatpush1.xpose.msra.mxu0 0.0
  %340 = vmatprep.subr.mxu0 0.0
  %341 = vmatpush1.xpose.msra.mxu0 0.0
  %342 = vmatprep.subr.mxu0 0.0
  %343 = vmatpush1.xpose.msra.mxu0 0.0
  %344 = vmatprep.subr.mxu0 0.0
  %345 = vmatpush1.xpose.msra.mxu0 0.0
  %346 = vmatprep.subr.mxu0 0.0
  %347 = vmatpush1.xpose.msra.mxu0 0.0
  %348 = vmatprep.subr.mxu0 0.0
  %349 = vmatpush1.xpose.msra.mxu0 0.0
  %350 = vmatprep.subr.mxu0 0.0
  %351 = vmatpush1.xpose.msra.mxu0 0.0
  %352 = vmatprep.subr.mxu0 0.0
  %353 = vmatpush1.xpose.msra.mxu0 0.0
  %354 = vmatprep.subr.mxu0 0.0
  %355 = vmatpush1.xpose.msra.mxu0 0.0
  %356 = vmatprep.subr.mxu0 0.0
  %357 = vmatpush1.xpose.msra.mxu0 0.0
  %358 = vmatprep.subr.mxu0 0.0
  %359 = vmatpush1.xpose.msra.mxu0 0.0
  %360 = vmatprep.subr.mxu0 0.0
  %361 = vmatpush1.xpose.msra.mxu0 0.0
  %362 = vmatprep.subr.mxu0 0.0
  %363 = vmatpush1.xpose.msra.mxu0 0.0
  %364 = vmatprep.subr.mxu0 0.0
  %365 = vmatpush1.xpose.msra.mxu0 0.0
  %366 = vmatprep.subr.mxu0 0.0
  %367 = vmatpush1.xpose.msra.mxu0 0.0
  %368 = vmatprep.subr.mxu0 0.0
  %369 = vmatpush1.xpose.msra.mxu0 0.0
  %370 = vmatprep.subr.mxu0 0.0
  %371 = vmatpush1.xpose.msra.mxu0 0.0
  %372 = vmatprep.subr.mxu0 0.0
  %373 = vmatpush1.xpose.msra.mxu0 0.0
  %374 = vmatprep.subr.mxu0 0.0
  %375 = vmatpush1.xpose.msra.mxu0 0.0
  %376 = vmatprep.subr.mxu0 0.0
  %377 = vmatpush1.xpose.msra.mxu0 0.0
  %378 = vmatprep.subr.mxu0 0.0
  %379 = vmatpush1.xpose.msra.mxu0 0.0
  %380 = vmatprep.mubr.f32.mxu0 0.0
  %381 = vmatmul.mubr.f32.gmra.mrb[0].mxu0 %v312
  %v382 = vpop.f32.mrb[0].mxu0
  %v383 = vadd.f32 0.0, %v382
  %v384 = vpop.f32.mrb[0].mxu0
  %385 = vdwg.mxu0
  %v386 = vsel %vm311, %v383, -inf
  %387 = vmax.xlane.f32.xlu0 %v386
  %v388 = vpop.xlane.xlu0 %387
  %v389 = vsub.f32 %v383, %v388
  %v390 = vmul.f32 %v389, 1.442695
  %v391 = vpow.pop %v390
  %v392 = vsel %vm311, %v391, 0.0
  %393 = vadd.xlane.f32.xlu0 %v392
  %v394 = vpop.xlane.xlu0 %393
  %v395 = vrcp.pop %v394
  %v396 = vmul.f32 %v391, %v395
  %397 = vrot.lane.b32.xlu0 %v300, 64
  %v398 = vpop.permute.xlu0 %397
  %v401 = vsel %vm311, %v396, 0
  %403 = vmatprep.subr.mxu0 0.0
  %404 = vmatpush1.msra.mxu0 %v398
  %405 = vmatprep.subr.mxu0 0.0
  %406 = vmatpush1.msra.mxu0 0.0
  %407 = vmatprep.subr.mxu0 0.0
  %408 = vmatpush1.msra.mxu0 0.0
  %409 = vmatprep.subr.mxu0 0.0
  %410 = vmatpush1.msra.mxu0 0.0
  %411 = vmatprep.subr.mxu0 0.0
  %412 = vmatpush1.msra.mxu0 0.0
  %413 = vmatprep.subr.mxu0 0.0
  %414 = vmatpush1.msra.mxu0 0.0
  %415 = vmatprep.subr.mxu0 0.0
  %416 = vmatpush1.msra.mxu0 0.0
  %417 = vmatprep.subr.mxu0 0.0
  %418 = vmatpush1.msra.mxu0 0.0
  %419 = vmatprep.subr.mxu0 0.0
  %420 = vmatpush1.msra.mxu0 0.0
  %421 = vmatprep.subr.mxu0 0.0
  %422 = vmatpush1.msra.mxu0 0.0
  %423 = vmatprep.subr.mxu0 0.0
  %424 = vmatpush1.msra.mxu0 0.0
  %425 = vmatprep.subr.mxu0 0.0
  %426 = vmatpush1.msra.mxu0 0.0
  %427 = vmatprep.subr.mxu0 0.0
  %428 = vmatpush1.msra.mxu0 0.0
  %429 = vmatprep.subr.mxu0 0.0
  %430 = vmatpush1.msra.mxu0 0.0
  %431 = vmatprep.subr.mxu0 0.0
  %432 = vmatpush1.msra.mxu0 0.0
  %433 = vmatprep.subr.mxu0 0.0
  %434 = vmatpush1.msra.mxu0 0.0
  %435 = vmatprep.subr.mxu0 0.0
  %436 = vmatpush1.msra.mxu0 0.0
  %437 = vmatprep.subr.mxu0 0.0
  %438 = vmatpush1.msra.mxu0 0.0
  %439 = vmatprep.subr.mxu0 0.0
  %440 = vmatpush1.msra.mxu0 0.0
  %441 = vmatprep.subr.mxu0 0.0
  %442 = vmatpush1.msra.mxu0 0.0
  %443 = vmatprep.subr.mxu0 0.0
  %444 = vmatpush1.msra.mxu0 0.0
  %445 = vmatprep.subr.mxu0 0.0
  %446 = vmatpush1.msra.mxu0 0.0
  %447 = vmatprep.subr.mxu0 0.0
  %448 = vmatpush1.msra.mxu0 0.0
  %449 = vmatprep.subr.mxu0 0.0
  %450 = vmatpush1.msra.mxu0 0.0
  %451 = vmatprep.subr.mxu0 0.0
  %452 = vmatpush1.msra.mxu0 0.0
  %453 = vmatprep.subr.mxu0 0.0
  %454 = vmatpush1.msra.mxu0 0.0
  %455 = vmatprep.subr.mxu0 0.0
  %456 = vmatpush1.msra.mxu0 0.0
  %457 = vmatprep.subr.mxu0 0.0
  %458 = vmatpush1.msra.mxu0 0.0
  %459 = vmatprep.subr.mxu0 0.0
  %460 = vmatpush1.msra.mxu0 0.0
  %461 = vmatprep.subr.mxu0 0.0
  %462 = vmatpush1.msra.mxu0 0.0
  %463 = vmatprep.subr.mxu0 0.0
  %464 = vmatpush1.msra.mxu0 0.0
  %465 = vmatprep.subr.mxu0 0.0
  %466 = vmatpush1.msra.mxu0 0.0
  %467 = vmatprep.mubr.f32.mxu0 0.0
  %468 = vmatmul.mubr.f32.gmra.mrb[0].mxu0 %v401
  %v469 = vpop.f32.mrb[0].mxu0
  %v470 = vadd.f32 0.0, %v469
  %v471 = vpop.f32.mrb[0].mxu0
  %472 = vdwg.mxu0
  %473 = vrot.lane.b32.xlu0 %v300, 120
  %v474 = vpop.permute.xlu0 %473
  %475 = vrot.lane.b32.xlu0 %v300, 88
  %v476 = vpop.permute.xlu0 %475
  %v477 = vsel %vm311, %v474, 0
  %v479 = vsel %vm311, %v476, 0
  %481 = vmatprep.subr.mxu0 0.0
  %482 = vmatpush1.xpose.msra.mxu0 %v479
  %483 = vmatprep.subr.mxu0 0.0
  %484 = vmatpush1.xpose.msra.mxu0 0.0
  %485 = vmatprep.subr.mxu0 0.0
  %486 = vmatpush1.xpose.msra.mxu0 0.0
  %487 = vmatprep.subr.mxu0 0.0
  %488 = vmatpush1.xpose.msra.mxu0 0.0
  %489 = vmatprep.subr.mxu0 0.0
  %490 = vmatpush1.xpose.msra.mxu0 0.0
  %491 = vmatprep.subr.mxu0 0.0
  %492 = vmatpush1.xpose.msra.mxu0 0.0
  %493 = vmatprep.subr.mxu0 0.0
  %494 = vmatpush1.xpose.msra.mxu0 0.0
  %495 = vmatprep.subr.mxu0 0.0
  %496 = vmatpush1.xpose.msra.mxu0 0.0
  %497 = vmatprep.subr.mxu0 0.0
  %498 = vmatpush1.xpose.msra.mxu0 0.0
  %499 = vmatprep.subr.mxu0 0.0
  %500 = vmatpush1.xpose.msra.mxu0 0.0
  %501 = vmatprep.subr.mxu0 0.0
  %502 = vmatpush1.xpose.msra.mxu0 0.0
  %503 = vmatprep.subr.mxu0 0.0
  %504 = vmatpush1.xpose.msra.mxu0 0.0
  %505 = vmatprep.subr.mxu0 0.0
  %506 = vmatpush1.xpose.msra.mxu0 0.0
  %507 = vmatprep.subr.mxu0 0.0
  %508 = vmatpush1.xpose.msra.mxu0 0.0
  %509 = vmatprep.subr.mxu0 0.0
  %510 = vmatpush1.xpose.msra.mxu0 0.0
  %511 = vmatprep.subr.mxu0 0.0
  %512 = vmatpush1.xpose.msra.mxu0 0.0
  %513 = vmatprep.subr.mxu0 0.0
  %514 = vmatpush1.xpose.msra.mxu0 0.0
  %515 = vmatprep.subr.mxu0 0.0
  %516 = vmatpush1.xpose.msra.mxu0 0.0
  %517 = vmatprep.subr.mxu0 0.0
  %518 = vmatpush1.xpose.msra.mxu0 0.0
  %519 = vmatprep.subr.mxu0 0.0
  %520 = vmatpush1.xpose.msra.mxu0 0.0
  %521 = vmatprep.subr.mxu0 0.0
  %522 = vmatpush1.xpose.msra.mxu0 0.0
  %523 = vmatprep.subr.mxu0 0.0
  %524 = vmatpush1.xpose.msra.mxu0 0.0
  %525 = vmatprep.subr.mxu0 0.0
  %526 = vmatpush1.xpose.msra.mxu0 0.0
  %527 = vmatprep.subr.mxu0 0.0
  %528 = vmatpush1.xpose.msra.mxu0 0.0
  %529 = vmatprep.subr.mxu0 0.0
  %530 = vmatpush1.xpose.msra.mxu0 0.0
  %531 = vmatprep.subr.mxu0 0.0
  %532 = vmatpush1.xpose.msra.mxu0 0.0
  %533 = vmatprep.subr.mxu0 0.0
  %534 = vmatpush1.xpose.msra.mxu0 0.0
  %535 = vmatprep.subr.mxu0 0.0
  %536 = vmatpush1.xpose.msra.mxu0 0.0
  %537 = vmatprep.subr.mxu0 0.0
  %538 = vmatpush1.xpose.msra.mxu0 0.0
  %539 = vmatprep.subr.mxu0 0.0
  %540 = vmatpush1.xpose.msra.mxu0 0.0
  %541 = vmatprep.subr.mxu0 0.0
  %542 = vmatpush1.xpose.msra.mxu0 0.0
  %543 = vmatprep.subr.mxu0 0.0
  %544 = vmatpush1.xpose.msra.mxu0 0.0
  %545 = vmatprep.mubr.f32.mxu0 0.0
  %546 = vmatmul.mubr.f32.gmra.mrb[0].mxu0 %v477
  %v547 = vpop.f32.mrb[0].mxu0
  %v548 = vadd.f32 0.0, %v547
  %v549 = vpop.f32.mrb[0].mxu0
  %550 = vdwg.mxu0
  %v551 = vsel %vm311, %v548, -inf
  %552 = vmax.xlane.f32.xlu0 %v551
  %v553 = vpop.xlane.xlu0 %552
  %v554 = vsub.f32 %v548, %v553
  %v555 = vmul.f32 %v554, 1.442695
  %v556 = vpow.pop %v555
  %v557 = vsel %vm311, %v556, 0.0
  %558 = vadd.xlane.f32.xlu0 %v557
  %v559 = vpop.xlane.xlu0 %558
  %v560 = vrcp.pop %v559
  %v561 = vmul.f32 %v556, %v560
  %562 = vrot.lane.b32.xlu0 %v300, 56
  %v563 = vpop.permute.xlu0 %562
  %v566 = vsel %vm311, %v561, 0
  %568 = vmatprep.subr.mxu0 0.0
  %569 = vmatpush1.msra.mxu0 %v563
  %570 = vmatprep.subr.mxu0 0.0
  %571 = vmatpush1.msra.mxu0 0.0
  %572 = vmatprep.subr.mxu0 0.0
  %573 = vmatpush1.msra.mxu0 0.0
  %574 = vmatprep.subr.mxu0 0.0
  %575 = vmatpush1.msra.mxu0 0.0
  %576 = vmatprep.subr.mxu0 0.0
  %577 = vmatpush1.msra.mxu0 0.0
  %578 = vmatprep.subr.mxu0 0.0
  %579 = vmatpush1.msra.mxu0 0.0
  %580 = vmatprep.subr.mxu0 0.0
  %581 = vmatpush1.msra.mxu0 0.0
  %582 = vmatprep.subr.mxu0 0.0
  %583 = vmatpush1.msra.mxu0 0.0
  %584 = vmatprep.subr.mxu0 0.0
  %585 = vmatpush1.msra.mxu0 0.0
  %586 = vmatprep.subr.mxu0 0.0
  %587 = vmatpush1.msra.mxu0 0.0
  %588 = vmatprep.subr.mxu0 0.0
  %589 = vmatpush1.msra.mxu0 0.0
  %590 = vmatprep.subr.mxu0 0.0
  %591 = vmatpush1.msra.mxu0 0.0
  %592 = vmatprep.subr.mxu0 0.0
  %593 = vmatpush1.msra.mxu0 0.0
  %594 = vmatprep.subr.mxu0 0.0
  %595 = vmatpush1.msra.mxu0 0.0
  %596 = vmatprep.subr.mxu0 0.0
  %597 = vmatpush1.msra.mxu0 0.0
  %598 = vmatprep.subr.mxu0 0.0
  %599 = vmatpush1.msra.mxu0 0.0
  %600 = vmatprep.subr.mxu0 0.0
  %601 = vmatpush1.msra.mxu0 0.0
  %602 = vmatprep.subr.mxu0 0.0
  %603 = vmatpush1.msra.mxu0 0.0
  %604 = vmatprep.subr.mxu0 0.0
  %605 = vmatpush1.msra.mxu0 0.0
  %606 = vmatprep.subr.mxu0 0.0
  %607 = vmatpush1.msra.mxu0 0.0
  %608 = vmatprep.subr.mxu0 0.0
  %609 = vmatpush1.msra.mxu0 0.0
  %610 = vmatprep.subr.mxu0 0.0
  %611 = vmatpush1.msra.mxu0 0.0
  %612 = vmatprep.subr.mxu0 0.0
  %613 = vmatpush1.msra.mxu0 0.0
  %614 = vmatprep.subr.mxu0 0.0
  %615 = vmatpush1.msra.mxu0 0.0
  %616 = vmatprep.subr.mxu0 0.0
  %617 = vmatpush1.msra.mxu0 0.0
  %618 = vmatprep.subr.mxu0 0.0
  %619 = vmatpush1.msra.mxu0 0.0
  %620 = vmatprep.subr.mxu0 0.0
  %621 = vmatpush1.msra.mxu0 0.0
  %622 = vmatprep.subr.mxu0 0.0
  %623 = vmatpush1.msra.mxu0 0.0
  %624 = vmatprep.subr.mxu0 0.0
  %625 = vmatpush1.msra.mxu0 0.0
  %626 = vmatprep.subr.mxu0 0.0
  %627 = vmatpush1.msra.mxu0 0.0
  %628 = vmatprep.subr.mxu0 0.0
  %629 = vmatpush1.msra.mxu0 0.0
  %630 = vmatprep.subr.mxu0 0.0
  %631 = vmatpush1.msra.mxu0 0.0
  %632 = vmatprep.mubr.f32.mxu0 0.0
  %633 = vmatmul.mubr.f32.gmra.mrb[0].mxu0 %v566
  %v634 = vpop.f32.mrb[0].mxu0
  %v635 = vadd.f32 0.0, %v634
  %v636 = vpop.f32.mrb[0].mxu0
  %637 = vdwg.mxu0
  %638 = vrot.lane.b32.xlu0 %v300, 112
  %v639 = vpop.permute.xlu0 %638
  %640 = vrot.lane.b32.xlu0 %v300, 80
  %v641 = vpop.permute.xlu0 %640
  %v642 = vsel %vm311, %v639, 0
  %v644 = vsel %vm311, %v641, 0
  %646 = vmatprep.subr.mxu0 0.0
  %647 = vmatpush1.xpose.msra.mxu0 %v644
  %648 = vmatprep.subr.mxu0 0.0
  %649 = vmatpush1.xpose.msra.mxu0 0.0
  %650 = vmatprep.subr.mxu0 0.0
  %651 = vmatpush1.xpose.msra.mxu0 0.0
  %652 = vmatprep.subr.mxu0 0.0
  %653 = vmatpush1.xpose.msra.mxu0 0.0
  %654 = vmatprep.subr.mxu0 0.0
  %655 = vmatpush1.xpose.msra.mxu0 0.0
  %656 = vmatprep.subr.mxu0 0.0
  %657 = vmatpush1.xpose.msra.mxu0 0.0
  %658 = vmatprep.subr.mxu0 0.0
  %659 = vmatpush1.xpose.msra.mxu0 0.0
  %660 = vmatprep.subr.mxu0 0.0
  %661 = vmatpush1.xpose.msra.mxu0 0.0
  %662 = vmatprep.subr.mxu0 0.0
  %663 = vmatpush1.xpose.msra.mxu0 0.0
  %664 = vmatprep.subr.mxu0 0.0
  %665 = vmatpush1.xpose.msra.mxu0 0.0
  %666 = vmatprep.subr.mxu0 0.0
  %667 = vmatpush1.xpose.msra.mxu0 0.0
  %668 = vmatprep.subr.mxu0 0.0
  %669 = vmatpush1.xpose.msra.mxu0 0.0
  %670 = vmatprep.subr.mxu0 0.0
  %671 = vmatpush1.xpose.msra.mxu0 0.0
  %672 = vmatprep.subr.mxu0 0.0
  %673 = vmatpush1.xpose.msra.mxu0 0.0
  %674 = vmatprep.subr.mxu0 0.0
  %675 = vmatpush1.xpose.msra.mxu0 0.0
  %676 = vmatprep.subr.mxu0 0.0
  %677 = vmatpush1.xpose.msra.mxu0 0.0
  %678 = vmatprep.subr.mxu0 0.0
  %679 = vmatpush1.xpose.msra.mxu0 0.0
  %680 = vmatprep.subr.mxu0 0.0
  %681 = vmatpush1.xpose.msra.mxu0 0.0
  %682 = vmatprep.subr.mxu0 0.0
  %683 = vmatpush1.xpose.msra.mxu0 0.0
  %684 = vmatprep.subr.mxu0 0.0
  %685 = vmatpush1.xpose.msra.mxu0 0.0
  %686 = vmatprep.subr.mxu0 0.0
  %687 = vmatpush1.xpose.msra.mxu0 0.0
  %688 = vmatprep.subr.mxu0 0.0
  %689 = vmatpush1.xpose.msra.mxu0 0.0
  %690 = vmatprep.subr.mxu0 0.0
  %691 = vmatpush1.xpose.msra.mxu0 0.0
  %692 = vmatprep.subr.mxu0 0.0
  %693 = vmatpush1.xpose.msra.mxu0 0.0
  %694 = vmatprep.subr.mxu0 0.0
  %695 = vmatpush1.xpose.msra.mxu0 0.0
  %696 = vmatprep.subr.mxu0 0.0
  %697 = vmatpush1.xpose.msra.mxu0 0.0
  %698 = vmatprep.subr.mxu0 0.0
  %699 = vmatpush1.xpose.msra.mxu0 0.0
  %700 = vmatprep.subr.mxu0 0.0
  %701 = vmatpush1.xpose.msra.mxu0 0.0
  %702 = vmatprep.subr.mxu0 0.0
  %703 = vmatpush1.xpose.msra.mxu0 0.0
  %704 = vmatprep.subr.mxu0 0.0
  %705 = vmatpush1.xpose.msra.mxu0 0.0
  %706 = vmatprep.subr.mxu0 0.0
  %707 = vmatpush1.xpose.msra.mxu0 0.0
  %708 = vmatprep.subr.mxu0 0.0
  %709 = vmatpush1.xpose.msra.mxu0 0.0
  %710 = vmatprep.mubr.f32.mxu0 0.0
  %711 = vmatmul.mubr.f32.gmra.mrb[0].mxu0 %v642
  %v712 = vpop.f32.mrb[0].mxu0
  %v713 = vadd.f32 0.0, %v712
  %v714 = vpop.f32.mrb[0].mxu0
  %715 = vdwg.mxu0
  %v716 = vsel %vm311, %v713, -inf
  %717 = vmax.xlane.f32.xlu0 %v716
  %v718 = vpop.xlane.xlu0 %717
  %v719 = vsub.f32 %v713, %v718
  %v720 = vmul.f32 %v719, 1.442695
  %v721 = vpow.pop %v720
  %v722 = vsel %vm311, %v721, 0.0
  %723 = vadd.xlane.f32.xlu0 %v722
  %v724 = vpop.xlane.xlu0 %723
  %v725 = vrcp.pop %v724
  %v726 = vmul.f32 %v721, %v725
  %727 = vrot.lane.b32.xlu0 %v300, 48
  %v728 = vpop.permute.xlu0 %727
  %v731 = vsel %vm311, %v726, 0
  %733 = vmatprep.subr.mxu0 0.0
  %734 = vmatpush1.msra.mxu0 %v728
  %735 = vmatprep.subr.mxu0 0.0
  %736 = vmatpush1.msra.mxu0 0.0
  %737 = vmatprep.subr.mxu0 0.0
  %738 = vmatpush1.msra.mxu0 0.0
  %739 = vmatprep.subr.mxu0 0.0
  %740 = vmatpush1.msra.mxu0 0.0
  %741 = vmatprep.subr.mxu0 0.0
  %742 = vmatpush1.msra.mxu0 0.0
  %743 = vmatprep.subr.mxu0 0.0
  %744 = vmatpush1.msra.mxu0 0.0
  %745 = vmatprep.subr.mxu0 0.0
  %746 = vmatpush1.msra.mxu0 0.0
  %747 = vmatprep.subr.mxu0 0.0
  %748 = vmatpush1.msra.mxu0 0.0
  %749 = vmatprep.subr.mxu0 0.0
  %750 = vmatpush1.msra.mxu0 0.0
  %751 = vmatprep.subr.mxu0 0.0
  %752 = vmatpush1.msra.mxu0 0.0
  %753 = vmatprep.subr.mxu0 0.0
  %754 = vmatpush1.msra.mxu0 0.0
  %755 = vmatprep.subr.mxu0 0.0
  %756 = vmatpush1.msra.mxu0 0.0
  %757 = vmatprep.subr.mxu0 0.0
  %758 = vmatpush1.msra.mxu0 0.0
  %759 = vmatprep.subr.mxu0 0.0
  %760 = vmatpush1.msra.mxu0 0.0
  %761 = vmatprep.subr.mxu0 0.0
  %762 = vmatpush1.msra.mxu0 0.0
  %763 = vmatprep.subr.mxu0 0.0
  %764 = vmatpush1.msra.mxu0 0.0
  %765 = vmatprep.subr.mxu0 0.0
  %766 = vmatpush1.msra.mxu0 0.0
  %767 = vmatprep.subr.mxu0 0.0
  %768 = vmatpush1.msra.mxu0 0.0
  %769 = vmatprep.subr.mxu0 0.0
  %770 = vmatpush1.msra.mxu0 0.0
  %771 = vmatprep.subr.mxu0 0.0
  %772 = vmatpush1.msra.mxu0 0.0
  %773 = vmatprep.subr.mxu0 0.0
  %774 = vmatpush1.msra.mxu0 0.0
  %775 = vmatprep.subr.mxu0 0.0
  %776 = vmatpush1.msra.mxu0 0.0
  %777 = vmatprep.subr.mxu0 0.0
  %778 = vmatpush1.msra.mxu0 0.0
  %779 = vmatprep.subr.mxu0 0.0
  %780 = vmatpush1.msra.mxu0 0.0
  %781 = vmatprep.subr.mxu0 0.0
  %782 = vmatpush1.msra.mxu0 0.0
  %783 = vmatprep.subr.mxu0 0.0
  %784 = vmatpush1.msra.mxu0 0.0
  %785 = vmatprep.subr.mxu0 0.0
  %786 = vmatpush1.msra.mxu0 0.0
  %787 = vmatprep.subr.mxu0 0.0
  %788 = vmatpush1.msra.mxu0 0.0
  %789 = vmatprep.subr.mxu0 0.0
  %790 = vmatpush1.msra.mxu0 0.0
  %791 = vmatprep.subr.mxu0 0.0
  %792 = vmatpush1.msra.mxu0 0.0
  %793 = vmatprep.subr.mxu0 0.0
  %794 = vmatpush1.msra.mxu0 0.0
  %795 = vmatprep.subr.mxu0 0.0
  %796 = vmatpush1.msra.mxu0 0.0
  %797 = vmatprep.mubr.f32.mxu0 0.0
  %798 = vmatmul.mubr.f32.gmra.mrb[0].mxu0 %v731
  %v799 = vpop.f32.mrb[0].mxu0
  %v800 = vadd.f32 0.0, %v799
  %v801 = vpop.f32.mrb[0].mxu0
  %802 = vdwg.mxu0
  %803 = vrot.lane.b32.xlu0 %v300, 104
  %v804 = vpop.permute.xlu0 %803
  %805 = vrot.lane.b32.xlu0 %v300, 72
  %v806 = vpop.permute.xlu0 %805
  %v807 = vsel %vm311, %v804, 0
  %v809 = vsel %vm311, %v806, 0
  %811 = vmatprep.subr.mxu0 0.0
  %812 = vmatpush1.xpose.msra.mxu0 %v809
  %813 = vmatprep.subr.mxu0 0.0
  %814 = vmatpush1.xpose.msra.mxu0 0.0
  %815 = vmatprep.subr.mxu0 0.0
  %816 = vmatpush1.xpose.msra.mxu0 0.0
  %817 = vmatprep.subr.mxu0 0.0
  %818 = vmatpush1.xpose.msra.mxu0 0.0
  %819 = vmatprep.subr.mxu0 0.0
  %820 = vmatpush1.xpose.msra.mxu0 0.0
  %821 = vmatprep.subr.mxu0 0.0
  %822 = vmatpush1.xpose.msra.mxu0 0.0
  %823 = vmatprep.subr.mxu0 0.0
  %824 = vmatpush1.xpose.msra.mxu0 0.0
  %825 = vmatprep.subr.mxu0 0.0
  %826 = vmatpush1.xpose.msra.mxu0 0.0
  %827 = vmatprep.subr.mxu0 0.0
  %828 = vmatpush1.xpose.msra.mxu0 0.0
  %829 = vmatprep.subr.mxu0 0.0
  %830 = vmatpush1.xpose.msra.mxu0 0.0
  %831 = vmatprep.subr.mxu0 0.0
  %832 = vmatpush1.xpose.msra.mxu0 0.0
  %833 = vmatprep.subr.mxu0 0.0
  %834 = vmatpush1.xpose.msra.mxu0 0.0
  %835 = vmatprep.subr.mxu0 0.0
  %836 = vmatpush1.xpose.msra.mxu0 0.0
  %837 = vmatprep.subr.mxu0 0.0
  %838 = vmatpush1.xpose.msra.mxu0 0.0
  %839 = vmatprep.subr.mxu0 0.0
  %840 = vmatpush1.xpose.msra.mxu0 0.0
  %841 = vmatprep.subr.mxu0 0.0
  %842 = vmatpush1.xpose.msra.mxu0 0.0
  %843 = vmatprep.subr.mxu0 0.0
  %844 = vmatpush1.xpose.msra.mxu0 0.0
  %845 = vmatprep.subr.mxu0 0.0
  %846 = vmatpush1.xpose.msra.mxu0 0.0
  %847 = vmatprep.subr.mxu0 0.0
  %848 = vmatpush1.xpose.msra.mxu0 0.0
  %849 = vmatprep.subr.mxu0 0.0
  %850 = vmatpush1.xpose.msra.mxu0 0.0
  %851 = vmatprep.subr.mxu0 0.0
  %852 = vmatpush1.xpose.msra.mxu0 0.0
  %853 = vmatprep.subr.mxu0 0.0
  %854 = vmatpush1.xpose.msra.mxu0 0.0
  %855 = vmatprep.subr.mxu0 0.0
  %856 = vmatpush1.xpose.msra.mxu0 0.0
  %857 = vmatprep.subr.mxu0 0.0
  %858 = vmatpush1.xpose.msra.mxu0 0.0
  %859 = vmatprep.subr.mxu0 0.0
  %860 = vmatpush1.xpose.msra.mxu0 0.0
  %861 = vmatprep.subr.mxu0 0.0
  %862 = vmatpush1.xpose.msra.mxu0 0.0
  %863 = vmatprep.subr.mxu0 0.0
  %864 = vmatpush1.xpose.msra.mxu0 0.0
  %865 = vmatprep.subr.mxu0 0.0
  %866 = vmatpush1.xpose.msra.mxu0 0.0
  %867 = vmatprep.subr.mxu0 0.0
  %868 = vmatpush1.xpose.msra.mxu0 0.0
  %869 = vmatprep.subr.mxu0 0.0
  %870 = vmatpush1.xpose.msra.mxu0 0.0
  %871 = vmatprep.subr.mxu0 0.0
  %872 = vmatpush1.xpose.msra.mxu0 0.0
  %873 = vmatprep.subr.mxu0 0.0
  %874 = vmatpush1.xpose.msra.mxu0 0.0
  %875 = vmatprep.mubr.f32.mxu0 0.0
  %876 = vmatmul.mubr.f32.gmra.mrb[0].mxu0 %v807
  %v877 = vpop.f32.mrb[0].mxu0
  %v878 = vadd.f32 0.0, %v877
  %v879 = vpop.f32.mrb[0].mxu0
  %880 = vdwg.mxu0
  %v881 = vsel %vm311, %v878, -inf
  %882 = vmax.xlane.f32.xlu0 %v881
  %v883 = vpop.xlane.xlu0 %882
  %v884 = vsub.f32 %v878, %v883
  %v885 = vmul.f32 %v884, 1.442695
  %v886 = vpow.pop %v885
  %v887 = vsel %vm311, %v886, 0.0
  %888 = vadd.xlane.f32.xlu0 %v887
  %v889 = vpop.xlane.xlu0 %888
  %v890 = vrcp.pop %v889
  %v891 = vmul.f32 %v886, %v890
  %892 = vrot.lane.b32.xlu0 %v300, 40
  %v893 = vpop.permute.xlu0 %892
  %v896 = vsel %vm311, %v891, 0
  %898 = vmatprep.subr.mxu0 0.0
  %899 = vmatpush1.msra.mxu0 %v893
  %900 = vmatprep.subr.mxu0 0.0
  %901 = vmatpush1.msra.mxu0 0.0
  %902 = vmatprep.subr.mxu0 0.0
  %903 = vmatpush1.msra.mxu0 0.0
  %904 = vmatprep.subr.mxu0 0.0
  %905 = vmatpush1.msra.mxu0 0.0
  %906 = vmatprep.subr.mxu0 0.0
  %907 = vmatpush1.msra.mxu0 0.0
  %908 = vmatprep.subr.mxu0 0.0
  %909 = vmatpush1.msra.mxu0 0.0
  %910 = vmatprep.subr.mxu0 0.0
  %911 = vmatpush1.msra.mxu0 0.0
  %912 = vmatprep.subr.mxu0 0.0
  %913 = vmatpush1.msra.mxu0 0.0
  %914 = vmatprep.subr.mxu0 0.0
  %915 = vmatpush1.msra.mxu0 0.0
  %916 = vmatprep.subr.mxu0 0.0
  %917 = vmatpush1.msra.mxu0 0.0
  %918 = vmatprep.subr.mxu0 0.0
  %919 = vmatpush1.msra.mxu0 0.0
  %920 = vmatprep.subr.mxu0 0.0
  %921 = vmatpush1.msra.mxu0 0.0
  %922 = vmatprep.subr.mxu0 0.0
  %923 = vmatpush1.msra.mxu0 0.0
  %924 = vmatprep.subr.mxu0 0.0
  %925 = vmatpush1.msra.mxu0 0.0
  %926 = vmatprep.subr.mxu0 0.0
  %927 = vmatpush1.msra.mxu0 0.0
  %928 = vmatprep.subr.mxu0 0.0
  %929 = vmatpush1.msra.mxu0 0.0
  %930 = vmatprep.subr.mxu0 0.0
  %931 = vmatpush1.msra.mxu0 0.0
  %932 = vmatprep.subr.mxu0 0.0
  %933 = vmatpush1.msra.mxu0 0.0
  %934 = vmatprep.subr.mxu0 0.0
  %935 = vmatpush1.msra.mxu0 0.0
  %936 = vmatprep.subr.mxu0 0.0
  %937 = vmatpush1.msra.mxu0 0.0
  %938 = vmatprep.subr.mxu0 0.0
  %939 = vmatpush1.msra.mxu0 0.0
  %940 = vmatprep.subr.mxu0 0.0
  %941 = vmatpush1.msra.mxu0 0.0
  %942 = vmatprep.subr.mxu0 0.0
  %943 = vmatpush1.msra.mxu0 0.0
  %944 = vmatprep.subr.mxu0 0.0
  %945 = vmatpush1.msra.mxu0 0.0
  %946 = vmatprep.subr.mxu0 0.0
  %947 = vmatpush1.msra.mxu0 0.0
  %948 = vmatprep.subr.mxu0 0.0
  %949 = vmatpush1.msra.mxu0 0.0
  %950 = vmatprep.subr.mxu0 0.0
  %951 = vmatpush1.msra.mxu0 0.0
  %952 = vmatprep.subr.mxu0 0.0
  %953 = vmatpush1.msra.mxu0 0.0
  %954 = vmatprep.subr.mxu0 0.0
  %955 = vmatpush1.msra.mxu0 0.0
  %956 = vmatprep.subr.mxu0 0.0
  %957 = vmatpush1.msra.mxu0 0.0
  %958 = vmatprep.subr.mxu0 0.0
  %959 = vmatpush1.msra.mxu0 0.0
  %960 = vmatprep.subr.mxu0 0.0
  %961 = vmatpush1.msra.mxu0 0.0
  %962 = vmatprep.mubr.f32.mxu0 0.0
  %963 = vmatmul.mubr.f32.gmra.mrb[0].mxu0 %v896
  %v964 = vpop.f32.mrb[0].mxu0
  %v965 = vadd.f32 0.0, %v964
  %v966 = vpop.f32.mrb[0].mxu0
  %967 = vdwg.mxu0
  %969 = vrot.lane.b32.xlu0 %v635, 8
  %v970 = vpop.permute.xlu0 %969
  %973 = vrot.lane.b32.xlu0 %v800, 16
  %v974 = vpop.permute.xlu0 %973
  %977 = vrot.lane.b32.xlu0 %v965, 24
  %v978 = vpop.permute.xlu0 %977
  %v980 = vsel %vm311, %v470, %v970
  %vm981 = vcmask 130048
  %v982 = vsel %vm981, %v980, %v974
  %vm983 = vcmask 195584
  %v984 = vsel %vm983, %v982, %v978
  %986 = vrot.lane.b32.xlu0 %v305, 96
  %v987 = vpop.permute.xlu0 %986
  %v988 = vsel %vm311, %v305, 0
  %v990 = vsel %vm311, %v987, 0
  %992 = vmatprep.subr.mxu0 0.0
  %993 = vmatpush1.xpose.msra.mxu0 %v990
  %994 = vmatprep.subr.mxu0 0.0
  %995 = vmatpush1.xpose.msra.mxu0 0.0
  %996 = vmatprep.subr.mxu0 0.0
  %997 = vmatpush1.xpose.msra.mxu0 0.0
  %998 = vmatprep.subr.mxu0 0.0
  %999 = vmatpush1.xpose.msra.mxu0 0.0
  %1000 = vmatprep.subr.mxu0 0.0
  %1001 = vmatpush1.xpose.msra.mxu0 0.0
  %1002 = vmatprep.subr.mxu0 0.0
  %1003 = vmatpush1.xpose.msra.mxu0 0.0
  %1004 = vmatprep.subr.mxu0 0.0
  %1005 = vmatpush1.xpose.msra.mxu0 0.0
  %1006 = vmatprep.subr.mxu0 0.0
  %1007 = vmatpush1.xpose.msra.mxu0 0.0
  %1008 = vmatprep.subr.mxu0 0.0
  %1009 = vmatpush1.xpose.msra.mxu0 0.0
  %1010 = vmatprep.subr.mxu0 0.0
  %1011 = vmatpush1.xpose.msra.mxu0 0.0
  %1012 = vmatprep.subr.mxu0 0.0
  %1013 = vmatpush1.xpose.msra.mxu0 0.0
  %1014 = vmatprep.subr.mxu0 0.0
  %1015 = vmatpush1.xpose.msra.mxu0 0.0
  %1016 = vmatprep.subr.mxu0 0.0
  %1017 = vmatpush1.xpose.msra.mxu0 0.0
  %1018 = vmatprep.subr.mxu0 0.0
  %1019 = vmatpush1.xpose.msra.mxu0 0.0
  %1020 = vmatprep.subr.mxu0 0.0
  %1021 = vmatpush1.xpose.msra.mxu0 0.0
  %1022 = vmatprep.subr.mxu0 0.0
  %1023 = vmatpush1.xpose.msra.mxu0 0.0
  %1024 = vmatprep.subr.mxu0 0.0
  %1025 = vmatpush1.xpose.msra.mxu0 0.0
  %1026 = vmatprep.subr.mxu0 0.0
  %1027 = vmatpush1.xpose.msra.mxu0 0.0
  %1028 = vmatprep.subr.mxu0 0.0
  %1029 = vmatpush1.xpose.msra.mxu0 0.0
  %1030 = vmatprep.subr.mxu0 0.0
  %1031 = vmatpush1.xpose.msra.mxu0 0.0
  %1032 = vmatprep.subr.mxu0 0.0
  %1033 = vmatpush1.xpose.msra.mxu0 0.0
  %1034 = vmatprep.subr.mxu0 0.0
  %1035 = vmatpush1.xpose.msra.mxu0 0.0
  %1036 = vmatprep.subr.mxu0 0.0
  %1037 = vmatpush1.xpose.msra.mxu0 0.0
  %1038 = vmatprep.subr.mxu0 0.0
  %1039 = vmatpush1.xpose.msra.mxu0 0.0
  %1040 = vmatprep.subr.mxu0 0.0
  %1041 = vmatpush1.xpose.msra.mxu0 0.0
  %1042 = vmatprep.subr.mxu0 0.0
  %1043 = vmatpush1.xpose.msra.mxu0 0.0
  %1044 = vmatprep.subr.mxu0 0.0
  %1045 = vmatpush1.xpose.msra.mxu0 0.0
  %1046 = vmatprep.subr.mxu0 0.0
  %1047 = vmatpush1.xpose.msra.mxu0 0.0
  %1048 = vmatprep.subr.mxu0 0.0
  %1049 = vmatpush1.xpose.msra.mxu0 0.0
  %1050 = vmatprep.subr.mxu0 0.0
  %1051 = vmatpush1.xpose.msra.mxu0 0.0
  %1052 = vmatprep.subr.mxu0 0.0
  %1053 = vmatpush1.xpose.msra.mxu0 0.0
  %1054 = vmatprep.subr.mxu0 0.0
  %1055 = vmatpush1.xpose.msra.mxu0 0.0
  %1056 = vmatprep.mubr.f32.mxu0 0.0
  %1057 = vmatmul.mubr.f32.gmra.mrb[0].mxu0 %v988
  %v1058 = vpop.f32.mrb[0].mxu0
  %v1059 = vadd.f32 0.0, %v1058
  %v1060 = vpop.f32.mrb[0].mxu0
  %1061 = vdwg.mxu0
  %v1062 = vsel %vm311, %v1059, -inf
  %1063 = vmax.xlane.f32.xlu0 %v1062
  %v1064 = vpop.xlane.xlu0 %1063
  %v1065 = vsub.f32 %v1059, %v1064
  %v1066 = vmul.f32 %v1065, 1.442695
  %v1067 = vpow.pop %v1066
  %v1068 = vsel %vm311, %v1067, 0.0
  %1069 = vadd.xlane.f32.xlu0 %v1068
  %v1070 = vpop.xlane.xlu0 %1069
  %v1071 = vrcp.pop %v1070
  %v1072 = vmul.f32 %v1067, %v1071
  %1073 = vrot.lane.b32.xlu0 %v305, 64
  %v1074 = vpop.permute.xlu0 %1073
  %v1077 = vsel %vm311, %v1072, 0
  %1079 = vmatprep.subr.mxu0 0.0
  %1080 = vmatpush1.msra.mxu0 %v1074
  %1081 = vmatprep.subr.mxu0 0.0
  %1082 = vmatpush1.msra.mxu0 0.0
  %1083 = vmatprep.subr.mxu0 0.0
  %1084 = vmatpush1.msra.mxu0 0.0
  %1085 = vmatprep.subr.mxu0 0.0
  %1086 = vmatpush1.msra.mxu0 0.0
  %1087 = vmatprep.subr.mxu0 0.0
  %1088 = vmatpush1.msra.mxu0 0.0
  %1089 = vmatprep.subr.mxu0 0.0
  %1090 = vmatpush1.msra.mxu0 0.0
  %1091 = vmatprep.subr.mxu0 0.0
  %1092 = vmatpush1.msra.mxu0 0.0
  %1093 = vmatprep.subr.mxu0 0.0
  %1094 = vmatpush1.msra.mxu0 0.0
  %1095 = vmatprep.subr.mxu0 0.0
  %1096 = vmatpush1.msra.mxu0 0.0
  %1097 = vmatprep.subr.mxu0 0.0
  %1098 = vmatpush1.msra.mxu0 0.0
  %1099 = vmatprep.subr.mxu0 0.0
  %1100 = vmatpush1.msra.mxu0 0.0
  %1101 = vmatprep.subr.mxu0 0.0
  %1102 = vmatpush1.msra.mxu0 0.0
  %1103 = vmatprep.subr.mxu0 0.0
  %1104 = vmatpush1.msra.mxu0 0.0
  %1105 = vmatprep.subr.mxu0 0.0
  %1106 = vmatpush1.msra.mxu0 0.0
  %1107 = vmatprep.subr.mxu0 0.0
  %1108 = vmatpush1.msra.mxu0 0.0
  %1109 = vmatprep.subr.mxu0 0.0
  %1110 = vmatpush1.msra.mxu0 0.0
  %1111 = vmatprep.subr.mxu0 0.0
  %1112 = vmatpush1.msra.mxu0 0.0
  %1113 = vmatprep.subr.mxu0 0.0
  %1114 = vmatpush1.msra.mxu0 0.0
  %1115 = vmatprep.subr.mxu0 0.0
  %1116 = vmatpush1.msra.mxu0 0.0
  %1117 = vmatprep.subr.mxu0 0.0
  %1118 = vmatpush1.msra.mxu0 0.0
  %1119 = vmatprep.subr.mxu0 0.0
  %1120 = vmatpush1.msra.mxu0 0.0
  %1121 = vmatprep.subr.mxu0 0.0
  %1122 = vmatpush1.msra.mxu0 0.0
  %1123 = vmatprep.subr.mxu0 0.0
  %1124 = vmatpush1.msra.mxu0 0.0
  %1125 = vmatprep.subr.mxu0 0.0
  %1126 = vmatpush1.msra.mxu0 0.0
  %1127 = vmatprep.subr.mxu0 0.0
  %1128 = vmatpush1.msra.mxu0 0.0
  %1129 = vmatprep.subr.mxu0 0.0
  %1130 = vmatpush1.msra.mxu0 0.0
  %1131 = vmatprep.subr.mxu0 0.0
  %1132 = vmatpush1.msra.mxu0 0.0
  %1133 = vmatprep.subr.mxu0 0.0
  %1134 = vmatpush1.msra.mxu0 0.0
  %1135 = vmatprep.subr.mxu0 0.0
  %1136 = vmatpush1.msra.mxu0 0.0
  %1137 = vmatprep.subr.mxu0 0.0
  %1138 = vmatpush1.msra.mxu0 0.0
  %1139 = vmatprep.subr.mxu0 0.0
  %1140 = vmatpush1.msra.mxu0 0.0
  %1141 = vmatprep.subr.mxu0 0.0
  %1142 = vmatpush1.msra.mxu0 0.0
  %1143 = vmatprep.mubr.f32.mxu0 0.0
  %1144 = vmatmul.mubr.f32.gmra.mrb[0].mxu0 %v1077
  %v1145 = vpop.f32.mrb[0].mxu0
  %v1146 = vadd.f32 0.0, %v1145
  %v1147 = vpop.f32.mrb[0].mxu0
  %1148 = vdwg.mxu0
  %1149 = vrot.lane.b32.xlu0 %v305, 120
  %v1150 = vpop.permute.xlu0 %1149
  %1151 = vrot.lane.b32.xlu0 %v305, 88
  %v1152 = vpop.permute.xlu0 %1151
  %v1153 = vsel %vm311, %v1150, 0
  %v1155 = vsel %vm311, %v1152, 0
  %1157 = vmatprep.subr.mxu0 0.0
  %1158 = vmatpush1.xpose.msra.mxu0 %v1155
  %1159 = vmatprep.subr.mxu0 0.0
  %1160 = vmatpush1.xpose.msra.mxu0 0.0
  %1161 = vmatprep.subr.mxu0 0.0
  %1162 = vmatpush1.xpose.msra.mxu0 0.0
  %1163 = vmatprep.subr.mxu0 0.0
  %1164 = vmatpush1.xpose.msra.mxu0 0.0
  %1165 = vmatprep.subr.mxu0 0.0
  %1166 = vmatpush1.xpose.msra.mxu0 0.0
  %1167 = vmatprep.subr.mxu0 0.0
  %1168 = vmatpush1.xpose.msra.mxu0 0.0
  %1169 = vmatprep.subr.mxu0 0.0
  %1170 = vmatpush1.xpose.msra.mxu0 0.0
  %1171 = vmatprep.subr.mxu0 0.0
  %1172 = vmatpush1.xpose.msra.mxu0 0.0
  %1173 = vmatprep.subr.mxu0 0.0
  %1174 = vmatpush1.xpose.msra.mxu0 0.0
  %1175 = vmatprep.subr.mxu0 0.0
  %1176 = vmatpush1.xpose.msra.mxu0 0.0
  %1177 = vmatprep.subr.mxu0 0.0
  %1178 = vmatpush1.xpose.msra.mxu0 0.0
  %1179 = vmatprep.subr.mxu0 0.0
  %1180 = vmatpush1.xpose.msra.mxu0 0.0
  %1181 = vmatprep.subr.mxu0 0.0
  %1182 = vmatpush1.xpose.msra.mxu0 0.0
  %1183 = vmatprep.subr.mxu0 0.0
  %1184 = vmatpush1.xpose.msra.mxu0 0.0
  %1185 = vmatprep.subr.mxu0 0.0
  %1186 = vmatpush1.xpose.msra.mxu0 0.0
  %1187 = vmatprep.subr.mxu0 0.0
  %1188 = vmatpush1.xpose.msra.mxu0 0.0
  %1189 = vmatprep.subr.mxu0 0.0
  %1190 = vmatpush1.xpose.msra.mxu0 0.0
  %1191 = vmatprep.subr.mxu0 0.0
  %1192 = vmatpush1.xpose.msra.mxu0 0.0
  %1193 = vmatprep.subr.mxu0 0.0
  %1194 = vmatpush1.xpose.msra.mxu0 0.0
  %1195 = vmatprep.subr.mxu0 0.0
  %1196 = vmatpush1.xpose.msra.mxu0 0.0
  %1197 = vmatprep.subr.mxu0 0.0
  %1198 = vmatpush1.xpose.msra.mxu0 0.0
  %1199 = vmatprep.subr.mxu0 0.0
  %1200 = vmatpush1.xpose.msra.mxu0 0.0
  %1201 = vmatprep.subr.mxu0 0.0
  %1202 = vmatpush1.xpose.msra.mxu0 0.0
  %1203 = vmatprep.subr.mxu0 0.0
  %1204 = vmatpush1.xpose.msra.mxu0 0.0
  %1205 = vmatprep.subr.mxu0 0.0
  %1206 = vmatpush1.xpose.msra.mxu0 0.0
  %1207 = vmatprep.subr.mxu0 0.0
  %1208 = vmatpush1.xpose.msra.mxu0 0.0
  %1209 = vmatprep.subr.mxu0 0.0
  %1210 = vmatpush1.xpose.msra.mxu0 0.0
  %1211 = vmatprep.subr.mxu0 0.0
  %1212 = vmatpush1.xpose.msra.mxu0 0.0
  %1213 = vmatprep.subr.mxu0 0.0
  %1214 = vmatpush1.xpose.msra.mxu0 0.0
  %1215 = vmatprep.subr.mxu0 0.0
  %1216 = vmatpush1.xpose.msra.mxu0 0.0
  %1217 = vmatprep.subr.mxu0 0.0
  %1218 = vmatpush1.xpose.msra.mxu0 0.0
  %1219 = vmatprep.subr.mxu0 0.0
  %1220 = vmatpush1.xpose.msra.mxu0 0.0
  %1221 = vmatprep.mubr.f32.mxu0 0.0
  %1222 = vmatmul.mubr.f32.gmra.mrb[0].mxu0 %v1153
  %v1223 = vpop.f32.mrb[0].mxu0
  %v1224 = vadd.f32 0.0, %v1223
  %v1225 = vpop.f32.mrb[0].mxu0
  %1226 = vdwg.mxu0
  %v1227 = vsel %vm311, %v1224, -inf
  %1228 = vmax.xlane.f32.xlu0 %v1227
  %v1229 = vpop.xlane.xlu0 %1228
  %v1230 = vsub.f32 %v1224, %v1229
  %v1231 = vmul.f32 %v1230, 1.442695
  %v1232 = vpow.pop %v1231
  %v1233 = vsel %vm311, %v1232, 0.0
  %1234 = vadd.xlane.f32.xlu0 %v1233
  %v1235 = vpop.xlane.xlu0 %1234
  %v1236 = vrcp.pop %v1235
  %v1237 = vmul.f32 %v1232, %v1236
  %1238 = vrot.lane.b32.xlu0 %v305, 56
  %v1239 = vpop.permute.xlu0 %1238
  %v1242 = vsel %vm311, %v1237, 0
  %1244 = vmatprep.subr.mxu0 0.0
  %1245 = vmatpush1.msra.mxu0 %v1239
  %1246 = vmatprep.subr.mxu0 0.0
  %1247 = vmatpush1.msra.mxu0 0.0
  %1248 = vmatprep.subr.mxu0 0.0
  %1249 = vmatpush1.msra.mxu0 0.0
  %1250 = vmatprep.subr.mxu0 0.0
  %1251 = vmatpush1.msra.mxu0 0.0
  %1252 = vmatprep.subr.mxu0 0.0
  %1253 = vmatpush1.msra.mxu0 0.0
  %1254 = vmatprep.subr.mxu0 0.0
  %1255 = vmatpush1.msra.mxu0 0.0
  %1256 = vmatprep.subr.mxu0 0.0
  %1257 = vmatpush1.msra.mxu0 0.0
  %1258 = vmatprep.subr.mxu0 0.0
  %1259 = vmatpush1.msra.mxu0 0.0
  %1260 = vmatprep.subr.mxu0 0.0
  %1261 = vmatpush1.msra.mxu0 0.0
  %1262 = vmatprep.subr.mxu0 0.0
  %1263 = vmatpush1.msra.mxu0 0.0
  %1264 = vmatprep.subr.mxu0 0.0
  %1265 = vmatpush1.msra.mxu0 0.0
  %1266 = vmatprep.subr.mxu0 0.0
  %1267 = vmatpush1.msra.mxu0 0.0
  %1268 = vmatprep.subr.mxu0 0.0
  %1269 = vmatpush1.msra.mxu0 0.0
  %1270 = vmatprep.subr.mxu0 0.0
  %1271 = vmatpush1.msra.mxu0 0.0
  %1272 = vmatprep.subr.mxu0 0.0
  %1273 = vmatpush1.msra.mxu0 0.0
  %1274 = vmatprep.subr.mxu0 0.0
  %1275 = vmatpush1.msra.mxu0 0.0
  %1276 = vmatprep.subr.mxu0 0.0
  %1277 = vmatpush1.msra.mxu0 0.0
  %1278 = vmatprep.subr.mxu0 0.0
  %1279 = vmatpush1.msra.mxu0 0.0
  %1280 = vmatprep.subr.mxu0 0.0
  %1281 = vmatpush1.msra.mxu0 0.0
  %1282 = vmatprep.subr.mxu0 0.0
  %1283 = vmatpush1.msra.mxu0 0.0
  %1284 = vmatprep.subr.mxu0 0.0
  %1285 = vmatpush1.msra.mxu0 0.0
  %1286 = vmatprep.subr.mxu0 0.0
  %1287 = vmatpush1.msra.mxu0 0.0
  %1288 = vmatprep.subr.mxu0 0.0
  %1289 = vmatpush1.msra.mxu0 0.0
  %1290 = vmatprep.subr.mxu0 0.0
  %1291 = vmatpush1.msra.mxu0 0.0
  %1292 = vmatprep.subr.mxu0 0.0
  %1293 = vmatpush1.msra.mxu0 0.0
  %1294 = vmatprep.subr.mxu0 0.0
  %1295 = vmatpush1.msra.mxu0 0.0
  %1296 = vmatprep.subr.mxu0 0.0
  %1297 = vmatpush1.msra.mxu0 0.0
  %1298 = vmatprep.subr.mxu0 0.0
  %1299 = vmatpush1.msra.mxu0 0.0
  %1300 = vmatprep.subr.mxu0 0.0
  %1301 = vmatpush1.msra.mxu0 0.0
  %1302 = vmatprep.subr.mxu0 0.0
  %1303 = vmatpush1.msra.mxu0 0.0
  %1304 = vmatprep.subr.mxu0 0.0
  %1305 = vmatpush1.msra.mxu0 0.0
  %1306 = vmatprep.subr.mxu0 0.0
  %1307 = vmatpush1.msra.mxu0 0.0
  %1308 = vmatprep.mubr.f32.mxu0 0.0
  %1309 = vmatmul.mubr.f32.gmra.mrb[0].mxu0 %v1242
  %v1310 = vpop.f32.mrb[0].mxu0
  %v1311 = vadd.f32 0.0, %v1310
  %v1312 = vpop.f32.mrb[0].mxu0
  %1313 = vdwg.mxu0
  %1314 = vrot.lane.b32.xlu0 %v305, 112
  %v1315 = vpop.permute.xlu0 %1314
  %1316 = vrot.lane.b32.xlu0 %v305, 80
  %v1317 = vpop.permute.xlu0 %1316
  %v1318 = vsel %vm311, %v1315, 0
  %v1320 = vsel %vm311, %v1317, 0
  %1322 = vmatprep.subr.mxu0 0.0
  %1323 = vmatpush1.xpose.msra.mxu0 %v1320
  %1324 = vmatprep.subr.mxu0 0.0
  %1325 = vmatpush1.xpose.msra.mxu0 0.0
  %1326 = vmatprep.subr.mxu0 0.0
  %1327 = vmatpush1.xpose.msra.mxu0 0.0
  %1328 = vmatprep.subr.mxu0 0.0
  %1329 = vmatpush1.xpose.msra.mxu0 0.0
  %1330 = vmatprep.subr.mxu0 0.0
  %1331 = vmatpush1.xpose.msra.mxu0 0.0
  %1332 = vmatprep.subr.mxu0 0.0
  %1333 = vmatpush1.xpose.msra.mxu0 0.0
  %1334 = vmatprep.subr.mxu0 0.0
  %1335 = vmatpush1.xpose.msra.mxu0 0.0
  %1336 = vmatprep.subr.mxu0 0.0
  %1337 = vmatpush1.xpose.msra.mxu0 0.0
  %1338 = vmatprep.subr.mxu0 0.0
  %1339 = vmatpush1.xpose.msra.mxu0 0.0
  %1340 = vmatprep.subr.mxu0 0.0
  %1341 = vmatpush1.xpose.msra.mxu0 0.0
  %1342 = vmatprep.subr.mxu0 0.0
  %1343 = vmatpush1.xpose.msra.mxu0 0.0
  %1344 = vmatprep.subr.mxu0 0.0
  %1345 = vmatpush1.xpose.msra.mxu0 0.0
  %1346 = vmatprep.subr.mxu0 0.0
  %1347 = vmatpush1.xpose.msra.mxu0 0.0
  %1348 = vmatprep.subr.mxu0 0.0
  %1349 = vmatpush1.xpose.msra.mxu0 0.0
  %1350 = vmatprep.subr.mxu0 0.0
  %1351 = vmatpush1.xpose.msra.mxu0 0.0
  %1352 = vmatprep.subr.mxu0 0.0
  %1353 = vmatpush1.xpose.msra.mxu0 0.0
  %1354 = vmatprep.subr.mxu0 0.0
  %1355 = vmatpush1.xpose.msra.mxu0 0.0
  %1356 = vmatprep.subr.mxu0 0.0
  %1357 = vmatpush1.xpose.msra.mxu0 0.0
  %1358 = vmatprep.subr.mxu0 0.0
  %1359 = vmatpush1.xpose.msra.mxu0 0.0
  %1360 = vmatprep.subr.mxu0 0.0
  %1361 = vmatpush1.xpose.msra.mxu0 0.0
  %1362 = vmatprep.subr.mxu0 0.0
  %1363 = vmatpush1.xpose.msra.mxu0 0.0
  %1364 = vmatprep.subr.mxu0 0.0
  %1365 = vmatpush1.xpose.msra.mxu0 0.0
  %1366 = vmatprep.subr.mxu0 0.0
  %1367 = vmatpush1.xpose.msra.mxu0 0.0
  %1368 = vmatprep.subr.mxu0 0.0
  %1369 = vmatpush1.xpose.msra.mxu0 0.0
  %1370 = vmatprep.subr.mxu0 0.0
  %1371 = vmatpush1.xpose.msra.mxu0 0.0
  %1372 = vmatprep.subr.mxu0 0.0
  %1373 = vmatpush1.xpose.msra.mxu0 0.0
  %1374 = vmatprep.subr.mxu0 0.0
  %1375 = vmatpush1.xpose.msra.mxu0 0.0
  %1376 = vmatprep.subr.mxu0 0.0
  %1377 = vmatpush1.xpose.msra.mxu0 0.0
  %1378 = vmatprep.subr.mxu0 0.0
  %1379 = vmatpush1.xpose.msra.mxu0 0.0
  %1380 = vmatprep.subr.mxu0 0.0
  %1381 = vmatpush1.xpose.msra.mxu0 0.0
  %1382 = vmatprep.subr.mxu0 0.0
  %1383 = vmatpush1.xpose.msra.mxu0 0.0
  %1384 = vmatprep.subr.mxu0 0.0
  %1385 = vmatpush1.xpose.msra.mxu0 0.0
  %1386 = vmatprep.mubr.f32.mxu0 0.0
  %1387 = vmatmul.mubr.f32.gmra.mrb[0].mxu0 %v1318
  %v1388 = vpop.f32.mrb[0].mxu0
  %v1389 = vadd.f32 0.0, %v1388
  %v1390 = vpop.f32.mrb[0].mxu0
  %1391 = vdwg.mxu0
  %v1392 = vsel %vm311, %v1389, -inf
  %1393 = vmax.xlane.f32.xlu0 %v1392
  %v1394 = vpop.xlane.xlu0 %1393
  %v1395 = vsub.f32 %v1389, %v1394
  %v1396 = vmul.f32 %v1395, 1.442695
  %v1397 = vpow.pop %v1396
  %v1398 = vsel %vm311, %v1397, 0.0
  %1399 = vadd.xlane.f32.xlu0 %v1398
  %v1400 = vpop.xlane.xlu0 %1399
  %v1401 = vrcp.pop %v1400
  %v1402 = vmul.f32 %v1397, %v1401
  %1403 = vrot.lane.b32.xlu0 %v305, 48
  %v1404 = vpop.permute.xlu0 %1403
  %v1407 = vsel %vm311, %v1402, 0
  %1409 = vmatprep.subr.mxu0 0.0
  %1410 = vmatpush1.msra.mxu0 %v1404
  %1411 = vmatprep.subr.mxu0 0.0
  %1412 = vmatpush1.msra.mxu0 0.0
  %1413 = vmatprep.subr.mxu0 0.0
  %1414 = vmatpush1.msra.mxu0 0.0
  %1415 = vmatprep.subr.mxu0 0.0
  %1416 = vmatpush1.msra.mxu0 0.0
  %1417 = vmatprep.subr.mxu0 0.0
  %1418 = vmatpush1.msra.mxu0 0.0
  %1419 = vmatprep.subr.mxu0 0.0
  %1420 = vmatpush1.msra.mxu0 0.0
  %1421 = vmatprep.subr.mxu0 0.0
  %1422 = vmatpush1.msra.mxu0 0.0
  %1423 = vmatprep.subr.mxu0 0.0
  %1424 = vmatpush1.msra.mxu0 0.0
  %1425 = vmatprep.subr.mxu0 0.0
  %1426 = vmatpush1.msra.mxu0 0.0
  %1427 = vmatprep.subr.mxu0 0.0
  %1428 = vmatpush1.msra.mxu0 0.0
  %1429 = vmatprep.subr.mxu0 0.0
  %1430 = vmatpush1.msra.mxu0 0.0
  %1431 = vmatprep.subr.mxu0 0.0
  %1432 = vmatpush1.msra.mxu0 0.0
  %1433 = vmatprep.subr.mxu0 0.0
  %1434 = vmatpush1.msra.mxu0 0.0
  %1435 = vmatprep.subr.mxu0 0.0
  %1436 = vmatpush1.msra.mxu0 0.0
  %1437 = vmatprep.subr.mxu0 0.0
  %1438 = vmatpush1.msra.mxu0 0.0
  %1439 = vmatprep.subr.mxu0 0.0
  %1440 = vmatpush1.msra.mxu0 0.0
  %1441 = vmatprep.subr.mxu0 0.0
  %1442 = vmatpush1.msra.mxu0 0.0
  %1443 = vmatprep.subr.mxu0 0.0
  %1444 = vmatpush1.msra.mxu0 0.0
  %1445 = vmatprep.subr.mxu0 0.0
  %1446 = vmatpush1.msra.mxu0 0.0
  %1447 = vmatprep.subr.mxu0 0.0
  %1448 = vmatpush1.msra.mxu0 0.0
  %1449 = vmatprep.subr.mxu0 0.0
  %1450 = vmatpush1.msra.mxu0 0.0
  %1451 = vmatprep.subr.mxu0 0.0
  %1452 = vmatpush1.msra.mxu0 0.0
  %1453 = vmatprep.subr.mxu0 0.0
  %1454 = vmatpush1.msra.mxu0 0.0
  %1455 = vmatprep.subr.mxu0 0.0
  %1456 = vmatpush1.msra.mxu0 0.0
  %1457 = vmatprep.subr.mxu0 0.0
  %1458 = vmatpush1.msra.mxu0 0.0
  %1459 = vmatprep.subr.mxu0 0.0
  %1460 = vmatpush1.msra.mxu0 0.0
  %1461 = vmatprep.subr.mxu0 0.0
  %1462 = vmatpush1.msra.mxu0 0.0
  %1463 = vmatprep.subr.mxu0 0.0
  %1464 = vmatpush1.msra.mxu0 0.0
  %1465 = vmatprep.subr.mxu0 0.0
  %1466 = vmatpush1.msra.mxu0 0.0
  %1467 = vmatprep.subr.mxu0 0.0
  %1468 = vmatpush1.msra.mxu0 0.0
  %1469 = vmatprep.subr.mxu0 0.0
  %1470 = vmatpush1.msra.mxu0 0.0
  %1471 = vmatprep.subr.mxu0 0.0
  %1472 = vmatpush1.msra.mxu0 0.0
  %1473 = vmatprep.mubr.f32.mxu0 0.0
  %1474 = vmatmul.mubr.f32.gmra.mrb[0].mxu0 %v1407
  %v1475 = vpop.f32.mrb[0].mxu0
  %v1476 = vadd.f32 0.0, %v1475
  %v1477 = vpop.f32.mrb[0].mxu0
  %1478 = vdwg.mxu0
  %1479 = vrot.lane.b32.xlu0 %v305, 104
  %v1480 = vpop.permute.xlu0 %1479
  %1481 = vrot.lane.b32.xlu0 %v305, 72
  %v1482 = vpop.permute.xlu0 %1481
  %v1483 = vsel %vm311, %v1480, 0
  %v1485 = vsel %vm311, %v1482, 0
  %1487 = vmatprep.subr.mxu0 0.0
  %1488 = vmatpush1.xpose.msra.mxu0 %v1485
  %1489 = vmatprep.subr.mxu0 0.0
  %1490 = vmatpush1.xpose.msra.mxu0 0.0
  %1491 = vmatprep.subr.mxu0 0.0
  %1492 = vmatpush1.xpose.msra.mxu0 0.0
  %1493 = vmatprep.subr.mxu0 0.0
  %1494 = vmatpush1.xpose.msra.mxu0 0.0
  %1495 = vmatprep.subr.mxu0 0.0
  %1496 = vmatpush1.xpose.msra.mxu0 0.0
  %1497 = vmatprep.subr.mxu0 0.0
  %1498 = vmatpush1.xpose.msra.mxu0 0.0
  %1499 = vmatprep.subr.mxu0 0.0
  %1500 = vmatpush1.xpose.msra.mxu0 0.0
  %1501 = vmatprep.subr.mxu0 0.0
  %1502 = vmatpush1.xpose.msra.mxu0 0.0
  %1503 = vmatprep.subr.mxu0 0.0
  %1504 = vmatpush1.xpose.msra.mxu0 0.0
  %1505 = vmatprep.subr.mxu0 0.0
  %1506 = vmatpush1.xpose.msra.mxu0 0.0
  %1507 = vmatprep.subr.mxu0 0.0
  %1508 = vmatpush1.xpose.msra.mxu0 0.0
  %1509 = vmatprep.subr.mxu0 0.0
  %1510 = vmatpush1.xpose.msra.mxu0 0.0
  %1511 = vmatprep.subr.mxu0 0.0
  %1512 = vmatpush1.xpose.msra.mxu0 0.0
  %1513 = vmatprep.subr.mxu0 0.0
  %1514 = vmatpush1.xpose.msra.mxu0 0.0
  %1515 = vmatprep.subr.mxu0 0.0
  %1516 = vmatpush1.xpose.msra.mxu0 0.0
  %1517 = vmatprep.subr.mxu0 0.0
  %1518 = vmatpush1.xpose.msra.mxu0 0.0
  %1519 = vmatprep.subr.mxu0 0.0
  %1520 = vmatpush1.xpose.msra.mxu0 0.0
  %1521 = vmatprep.subr.mxu0 0.0
  %1522 = vmatpush1.xpose.msra.mxu0 0.0
  %1523 = vmatprep.subr.mxu0 0.0
  %1524 = vmatpush1.xpose.msra.mxu0 0.0
  %1525 = vmatprep.subr.mxu0 0.0
  %1526 = vmatpush1.xpose.msra.mxu0 0.0
  %1527 = vmatprep.subr.mxu0 0.0
  %1528 = vmatpush1.xpose.msra.mxu0 0.0
  %1529 = vmatprep.subr.mxu0 0.0
  %1530 = vmatpush1.xpose.msra.mxu0 0.0
  %1531 = vmatprep.subr.mxu0 0.0
  %1532 = vmatpush1.xpose.msra.mxu0 0.0
  %1533 = vmatprep.subr.mxu0 0.0
  %1534 = vmatpush1.xpose.msra.mxu0 0.0
  %1535 = vmatprep.subr.mxu0 0.0
  %1536 = vmatpush1.xpose.msra.mxu0 0.0
  %1537 = vmatprep.subr.mxu0 0.0
  %1538 = vmatpush1.xpose.msra.mxu0 0.0
  %1539 = vmatprep.subr.mxu0 0.0
  %1540 = vmatpush1.xpose.msra.mxu0 0.0
  %1541 = vmatprep.subr.mxu0 0.0
  %1542 = vmatpush1.xpose.msra.mxu0 0.0
  %1543 = vmatprep.subr.mxu0 0.0
  %1544 = vmatpush1.xpose.msra.mxu0 0.0
  %1545 = vmatprep.subr.mxu0 0.0
  %1546 = vmatpush1.xpose.msra.mxu0 0.0
  %1547 = vmatprep.subr.mxu0 0.0
  %1548 = vmatpush1.xpose.msra.mxu0 0.0
  %1549 = vmatprep.subr.mxu0 0.0
  %1550 = vmatpush1.xpose.msra.mxu0 0.0
  %1551 = vmatprep.mubr.f32.mxu0 0.0
  %1552 = vmatmul.mubr.f32.gmra.mrb[0].mxu0 %v1483
  %v1553 = vpop.f32.mrb[0].mxu0
  %v1554 = vadd.f32 0.0, %v1553
  %v1555 = vpop.f32.mrb[0].mxu0
  %1556 = vdwg.mxu0
  %v1557 = vsel %vm311, %v1554, -inf
  %1558 = vmax.xlane.f32.xlu0 %v1557
  %v1559 = vpop.xlane.xlu0 %1558
  %v1560 = vsub.f32 %v1554, %v1559
  %v1561 = vmul.f32 %v1560, 1.442695
  %v1562 = vpow.pop %v1561
  %v1563 = vsel %vm311, %v1562, 0.0
  %1564 = vadd.xlane.f32.xlu0 %v1563
  %v1565 = vpop.xlane.xlu0 %1564
  %v1566 = vrcp.pop %v1565
  %v1567 = vmul.f32 %v1562, %v1566
  %1568 = vrot.lane.b32.xlu0 %v305, 40
  %v1569 = vpop.permute.xlu0 %1568
  %v1572 = vsel %vm311, %v1567, 0
  %1574 = vmatprep.subr.mxu0 0.0
  %1575 = vmatpush1.msra.mxu0 %v1569
  %1576 = vmatprep.subr.mxu0 0.0
  %1577 = vmatpush1.msra.mxu0 0.0
  %1578 = vmatprep.subr.mxu0 0.0
  %1579 = vmatpush1.msra.mxu0 0.0
  %1580 = vmatprep.subr.mxu0 0.0
  %1581 = vmatpush1.msra.mxu0 0.0
  %1582 = vmatprep.subr.mxu0 0.0
  %1583 = vmatpush1.msra.mxu0 0.0
  %1584 = vmatprep.subr.mxu0 0.0
  %1585 = vmatpush1.msra.mxu0 0.0
  %1586 = vmatprep.subr.mxu0 0.0
  %1587 = vmatpush1.msra.mxu0 0.0
  %1588 = vmatprep.subr.mxu0 0.0
  %1589 = vmatpush1.msra.mxu0 0.0
  %1590 = vmatprep.subr.mxu0 0.0
  %1591 = vmatpush1.msra.mxu0 0.0
  %1592 = vmatprep.subr.mxu0 0.0
  %1593 = vmatpush1.msra.mxu0 0.0
  %1594 = vmatprep.subr.mxu0 0.0
  %1595 = vmatpush1.msra.mxu0 0.0
  %1596 = vmatprep.subr.mxu0 0.0
  %1597 = vmatpush1.msra.mxu0 0.0
  %1598 = vmatprep.subr.mxu0 0.0
  %1599 = vmatpush1.msra.mxu0 0.0
  %1600 = vmatprep.subr.mxu0 0.0
  %1601 = vmatpush1.msra.mxu0 0.0
  %1602 = vmatprep.subr.mxu0 0.0
  %1603 = vmatpush1.msra.mxu0 0.0
  %1604 = vmatprep.subr.mxu0 0.0
  %1605 = vmatpush1.msra.mxu0 0.0
  %1606 = vmatprep.subr.mxu0 0.0
  %1607 = vmatpush1.msra.mxu0 0.0
  %1608 = vmatprep.subr.mxu0 0.0
  %1609 = vmatpush1.msra.mxu0 0.0
  %1610 = vmatprep.subr.mxu0 0.0
  %1611 = vmatpush1.msra.mxu0 0.0
  %1612 = vmatprep.subr.mxu0 0.0
  %1613 = vmatpush1.msra.mxu0 0.0
  %1614 = vmatprep.subr.mxu0 0.0
  %1615 = vmatpush1.msra.mxu0 0.0
  %1616 = vmatprep.subr.mxu0 0.0
  %1617 = vmatpush1.msra.mxu0 0.0
  %1618 = vmatprep.subr.mxu0 0.0
  %1619 = vmatpush1.msra.mxu0 0.0
  %1620 = vmatprep.subr.mxu0 0.0
  %1621 = vmatpush1.msra.mxu0 0.0
  %1622 = vmatprep.subr.mxu0 0.0
  %1623 = vmatpush1.msra.mxu0 0.0
  %1624 = vmatprep.subr.mxu0 0.0
  %1625 = vmatpush1.msra.mxu0 0.0
  %1626 = vmatprep.subr.mxu0 0.0
  %1627 = vmatpush1.msra.mxu0 0.0
  %1628 = vmatprep.subr.mxu0 0.0
  %1629 = vmatpush1.msra.mxu0 0.0
  %1630 = vmatprep.subr.mxu0 0.0
  %1631 = vmatpush1.msra.mxu0 0.0
  %1632 = vmatprep.subr.mxu0 0.0
  %1633 = vmatpush1.msra.mxu0 0.0
  %1634 = vmatprep.subr.mxu0 0.0
  %1635 = vmatpush1.msra.mxu0 0.0
  %1636 = vmatprep.subr.mxu0 0.0
  %1637 = vmatpush1.msra.mxu0 0.0
  %1638 = vmatprep.mubr.f32.mxu0 0.0
  %1639 = vmatmul.mubr.f32.gmra.mrb[0].mxu0 %v1572
  %v1640 = vpop.f32.mrb[0].mxu0
  %v1641 = vadd.f32 0.0, %v1640
  %v1642 = vpop.f32.mrb[0].mxu0
  %1643 = vdwg.mxu0
  %1645 = vrot.lane.b32.xlu0 %v1311, 8
  %v1646 = vpop.permute.xlu0 %1645
  %1649 = vrot.lane.b32.xlu0 %v1476, 16
  %v1650 = vpop.permute.xlu0 %1649
  %1653 = vrot.lane.b32.xlu0 %v1641, 24
  %v1654 = vpop.permute.xlu0 %1653
  %v1656 = vsel %vm311, %v1146, %v1646
  %v1657 = vsel %vm981, %v1656, %v1650
  %v1658 = vsel %vm983, %v1657, %v1654
  %v1659 = vld [vmem:[%s7] sm:$0xff]
  %v1660 = vld [vmem:[%s7 + $0x8] sm:$0xff]
  %v1661 = vld [vmem:[%s7 + $0x10] sm:$0xff]
  %v1662 = vld [vmem:[%s7 + $0x18] sm:$0xff]
  %v1663 = vld [vmem:[%s8] sm:$0x1]
  %v1665 = vlaneseq
  %v1666 = vshrl.u32 %v1665, 7
  %v1667 = vsub.s32 0, %v1666
  %v1668 = vrot.slane %v1663, %v1667
  %vm1670 = vcmask 261120
  %v1672 = vsel %vm1670, %v984, 0
  %v1675 = vsel %vm1670, %v1658, 0
  %1677 = vmatprep.subr.mxu0 0.0
  %1678 = vmatpush1.msra.mxu0 %v1659
  %1679 = vmatprep.subr.mxu0 0.0
  %1680 = vmatpush1.msra.mxu0 %v1660
  %1681 = vmatprep.subr.mxu0 0.0
  %1682 = vmatpush1.msra.mxu0 %v1661
  %1683 = vmatprep.subr.mxu0 0.0
  %1684 = vmatpush1.msra.mxu0 %v1662
  %1685 = vmatprep.subr.mxu0 0.0
  %1686 = vmatpush1.msra.mxu0 0.0
  %1687 = vmatprep.subr.mxu0 0.0
  %1688 = vmatpush1.msra.mxu0 0.0
  %1689 = vmatprep.subr.mxu0 0.0
  %1690 = vmatpush1.msra.mxu0 0.0
  %1691 = vmatprep.subr.mxu0 0.0
  %1692 = vmatpush1.msra.mxu0 0.0
  %1693 = vmatprep.subr.mxu0 0.0
  %1694 = vmatpush1.msra.mxu0 0.0
  %1695 = vmatprep.subr.mxu0 0.0
  %1696 = vmatpush1.msra.mxu0 0.0
  %1697 = vmatprep.subr.mxu0 0.0
  %1698 = vmatpush1.msra.mxu0 0.0
  %1699 = vmatprep.subr.mxu0 0.0
  %1700 = vmatpush1.msra.mxu0 0.0
  %1701 = vmatprep.subr.mxu0 0.0
  %1702 = vmatpush1.msra.mxu0 0.0
  %1703 = vmatprep.subr.mxu0 0.0
  %1704 = vmatpush1.msra.mxu0 0.0
  %1705 = vmatprep.subr.mxu0 0.0
  %1706 = vmatpush1.msra.mxu0 0.0
  %1707 = vmatprep.subr.mxu0 0.0
  %1708 = vmatpush1.msra.mxu0 0.0
  %1709 = vmatprep.subr.mxu0 0.0
  %1710 = vmatpush1.msra.mxu0 0.0
  %1711 = vmatprep.subr.mxu0 0.0
  %1712 = vmatpush1.msra.mxu0 0.0
  %1713 = vmatprep.subr.mxu0 0.0
  %1714 = vmatpush1.msra.mxu0 0.0
  %1715 = vmatprep.subr.mxu0 0.0
  %1716 = vmatpush1.msra.mxu0 0.0
  %1717 = vmatprep.subr.mxu0 0.0
  %1718 = vmatpush1.msra.mxu0 0.0
  %1719 = vmatprep.subr.mxu0 0.0
  %1720 = vmatpush1.msra.mxu0 0.0
  %1721 = vmatprep.subr.mxu0 0.0
  %1722 = vmatpush1.msra.mxu0 0.0
  %1723 = vmatprep.subr.mxu0 0.0
  %1724 = vmatpush1.msra.mxu0 0.0
  %1725 = vmatprep.subr.mxu0 0.0
  %1726 = vmatpush1.msra.mxu0 0.0
  %1727 = vmatprep.subr.mxu0 0.0
  %1728 = vmatpush1.msra.mxu0 0.0
  %1729 = vmatprep.subr.mxu0 0.0
  %1730 = vmatpush1.msra.mxu0 0.0
  %1731 = vmatprep.subr.mxu0 0.0
  %1732 = vmatpush1.msra.mxu0 0.0
  %1733 = vmatprep.subr.mxu0 0.0
  %1734 = vmatpush1.msra.mxu0 0.0
  %1735 = vmatprep.subr.mxu0 0.0
  %1736 = vmatpush1.msra.mxu0 0.0
  %1737 = vmatprep.subr.mxu0 0.0
  %1738 = vmatpush1.msra.mxu0 0.0
  %1739 = vmatprep.subr.mxu0 0.0
  %1740 = vmatpush1.msra.mxu0 0.0
  %1741 = vmatprep.mubr.f32.mxu0 0.0
  %1742 = vmatmul.mubr.f32.gmra.mrb[0].mxu0 %v1672
  %v1743 = vpop.f32.mrb[0].mxu0
  %v1744 = vadd.f32 %v1668, %v1743
  %v1745 = vpop.f32.mrb[0].mxu0
  %1746 = vmatprep.mubr.f32.mxu0 0.0
  %1747 = vmatmul.mubr.f32.gmra.mrb[0].mxu0 %v1675
  %v1748 = vpop.f32.mrb[0].mxu0
  %v1749 = vadd.f32 %v1668, %v1748
  %v1750 = vpop.f32.mrb[0].mxu0
  %1751 = vdwg.mxu0
  %v1752 = vld [vmem:[%s9] sm:$0x1]
  %v1753 = vld [vmem:[%s10] sm:$0x1]
  %v1754 = vadd.f32 %v1744, %v208
  %v1755 = vadd.f32 %v1749, %v209
  %1756 = vadd.xlane.f32.xlu0 %v1754
  %v1757 = vpop.xlane.xlu0 %1756
  %1758 = vadd.xlane.f32.xlu0 %v1755
  %v1759 = vpop.xlane.xlu0 %1758
  %v1760 = vmul.f32 %v1757, 0.03125
  %v1761 = vmul.f32 %v1759, 0.03125
  %v1762 = vsub.f32 %v1754, %v1760
  %v1763 = vsub.f32 %v1755, %v1761
  %v1764 = vmul.f32 %v1762, %v60
  %v1765 = vmul.f32 %v1763, %v60
  %v1766 = vmul.f32 %v1764, %v1764
  %v1767 = vmul.f32 %v1765, %v1765
  %1768 = vadd.xlane.f32.xlu0 %v1766
  %v1769 = vpop.xlane.xlu0 %1768
  %1770 = vadd.xlane.f32.xlu0 %v1767
  %v1771 = vpop.xlane.xlu0 %1770
  %v1772 = vmul.f32 %v1769, 0.03125
  %v1773 = vmul.f32 %v1771, 0.03125
  %v1774 = vadd.f32 %v1772, 1e-05
  %v1775 = vadd.f32 %v1773, 1e-05
  %v1776 = vrsqrt.pop %v1774
  %v1777 = vrsqrt.pop %v1775
  %v1778 = vmul.f32 %v1764, %v1776
  %v1779 = vmul.f32 %v1765, %v1777
  %v1781 = vlaneseq
  %v1782 = vshrl.u32 %v1781, 7
  %v1783 = vsub.s32 0, %v1782
  %v1784 = vrot.slane %v1752, %v1783
  %v1786 = vmul.f32 %v1778, %v1784
  %v1787 = vmul.f32 %v1779, %v1784
  %v1789 = vlaneseq
  %v1790 = vshrl.u32 %v1789, 7
  %v1791 = vsub.s32 0, %v1790
  %v1792 = vrot.slane %v1753, %v1791
  %v1794 = vadd.f32 %v1786, %v1792
  %v1795 = vadd.f32 %v1787, %v1792
  %v1796 = vld [vmem:[%s11] sm:$0xff]
  %v1797 = vld [vmem:[%s11 + $0x8] sm:$0xff]
  %v1798 = vld [vmem:[%s11 + $0x10] sm:$0xff]
  %v1799 = vld [vmem:[%s11 + $0x18] sm:$0xff]
  %v1800 = vld [vmem:[%s11 + $0x20] sm:$0xff]
  %v1801 = vld [vmem:[%s11 + $0x28] sm:$0xff]
  %v1802 = vld [vmem:[%s11 + $0x30] sm:$0xff]
  %v1803 = vld [vmem:[%s11 + $0x38] sm:$0xff]
  %v1804 = vld [vmem:[%s11 + $0x40] sm:$0xff]
  %v1805 = vld [vmem:[%s11 + $0x48] sm:$0xff]
  %v1806 = vld [vmem:[%s11 + $0x50] sm:$0xff]
  %v1807 = vld [vmem:[%s11 + $0x58] sm:$0xff]
  %v1808 = vld [vmem:[%s11 + $0x60] sm:$0xff]
  %v1809 = vld [vmem:[%s11 + $0x68] sm:$0xff]
  %v1810 = vld [vmem:[%s11 + $0x70] sm:$0xff]
  %v1811 = vld [vmem:[%s11 + $0x78] sm:$0xff]
  %v1812 = vld [vmem:[%s12] sm:$0x1]
  %v1814 = vlaneseq
  %v1815 = vshrl.u32 %v1814, 7
  %v1816 = vsub.s32 0, %v1815
  %v1817 = vrot.slane %v1812, %v1816
  %1819 = vmatprep.subr.mxu0 0.0
  %1820 = vmatpush1.msra.mxu0 %v1796
  %1821 = vmatprep.subr.mxu0 0.0
  %1822 = vmatpush1.msra.mxu0 %v1797
  %1823 = vmatprep.subr.mxu0 0.0
  %1824 = vmatpush1.msra.mxu0 %v1798
  %1825 = vmatprep.subr.mxu0 0.0
  %1826 = vmatpush1.msra.mxu0 %v1799
  %1827 = vmatprep.subr.mxu0 0.0
  %1828 = vmatpush1.msra.mxu0 %v1800
  %1829 = vmatprep.subr.mxu0 0.0
  %1830 = vmatpush1.msra.mxu0 %v1801
  %1831 = vmatprep.subr.mxu0 0.0
  %1832 = vmatpush1.msra.mxu0 %v1802
  %1833 = vmatprep.subr.mxu0 0.0
  %1834 = vmatpush1.msra.mxu0 %v1803
  %1835 = vmatprep.subr.mxu0 0.0
  %1836 = vmatpush1.msra.mxu0 %v1804
  %1837 = vmatprep.subr.mxu0 0.0
  %1838 = vmatpush1.msra.mxu0 %v1805
  %1839 = vmatprep.subr.mxu0 0.0
  %1840 = vmatpush1.msra.mxu0 %v1806
  %1841 = vmatprep.subr.mxu0 0.0
  %1842 = vmatpush1.msra.mxu0 %v1807
  %1843 = vmatprep.subr.mxu0 0.0
  %1844 = vmatpush1.msra.mxu0 %v1808
  %1845 = vmatprep.subr.mxu0 0.0
  %1846 = vmatpush1.msra.mxu0 %v1809
  %1847 = vmatprep.subr.mxu0 0.0
  %1848 = vmatpush1.msra.mxu0 %v1810
  %1849 = vmatprep.subr.mxu0 0.0
  %1850 = vmatpush1.msra.mxu0 %v1811
  %1851 = vmatprep.subr.mxu0 0.0
  %1852 = vmatpush1.msra.mxu0 0.0
  %1853 = vmatprep.subr.mxu0 0.0
  %1854 = vmatpush1.msra.mxu0 0.0
  %1855 = vmatprep.subr.mxu0 0.0
  %1856 = vmatpush1.msra.mxu0 0.0
  %1857 = vmatprep.subr.mxu0 0.0
  %1858 = vmatpush1.msra.mxu0 0.0
  %1859 = vmatprep.subr.mxu0 0.0
  %1860 = vmatpush1.msra.mxu0 0.0
  %1861 = vmatprep.subr.mxu0 0.0
  %1862 = vmatpush1.msra.mxu0 0.0
  %1863 = vmatprep.subr.mxu0 0.0
  %1864 = vmatpush1.msra.mxu0 0.0
  %1865 = vmatprep.subr.mxu0 0.0
  %1866 = vmatpush1.msra.mxu0 0.0
  %1867 = vmatprep.subr.mxu0 0.0
  %1868 = vmatpush1.msra.mxu0 0.0
  %1869 = vmatprep.subr.mxu0 0.0
  %1870 = vmatpush1.msra.mxu0 0.0
  %1871 = vmatprep.subr.mxu0 0.0
  %1872 = vmatpush1.msra.mxu0 0.0
  %1873 = vmatprep.subr.mxu0 0.0
  %1874 = vmatpush1.msra.mxu0 0.0
  %1875 = vmatprep.subr.mxu0 0.0
  %1876 = vmatpush1.msra.mxu0 0.0
  %1877 = vmatprep.subr.mxu0 0.0
  %1878 = vmatpush1.msra.mxu0 0.0
  %1879 = vmatprep.subr.mxu0 0.0
  %1880 = vmatpush1.msra.mxu0 0.0
  %1881 = vmatprep.subr.mxu0 0.0
  %1882 = vmatpush1.msra.mxu0 0.0
  %1883 = vmatprep.mubr.f32.mxu0 0.0
  %1884 = vmatmul.mubr.f32.gmra.mrb[0].mxu0 %v1794
  %v1885 = vpop.f32.mrb[0].mxu0
  %v1886 = vadd.f32 %v1817, %v1885
  %v1887 = vpop.f32.mrb[0].mxu0
  %1888 = vmatprep.mubr.f32.mxu0 0.0
  %1889 = vmatmul.mubr.f32.gmra.mrb[0].mxu0 %v1795
  %v1890 = vpop.f32.mrb[0].mxu0
  %v1891 = vadd.f32 %v1817, %v1890
  %v1892 = vpop.f32.mrb[0].mxu0
  %1893 = vdwg.mxu0
  %v1894 = vmul.f32 %v1886, 0.5
  %v1895 = vmul.f32 %v1891, 0.5
  %v1896 = vmul.f32 %v1886, 0.70710677
  %v1897 = vmul.f32 %v1891, 0.70710677
  %v1898 = verf.f32.pop %v1896
  %v1899 = verf.f32.pop %v1897
  %v1900 = vadd.f32 %v1898, 1.0
  %v1901 = vadd.f32 %v1899, 1.0
  %v1902 = vmul.f32 %v1894, %v1900
  %v1903 = vmul.f32 %v1895, %v1901
  %v1904 = vld [vmem:[%s13] sm:$0xff]
  %v1905 = vld [vmem:[%s13 + $0x8] sm:$0xff]
  %v1906 = vld [vmem:[%s13 + $0x10] sm:$0xff]
  %v1907 = vld [vmem:[%s13 + $0x18] sm:$0xff]
  %v1908 = vld [vmem:[%s13 + $0x20] sm:$0xff]
  %v1909 = vld [vmem:[%s13 + $0x28] sm:$0xff]
  %v1910 = vld [vmem:[%s13 + $0x30] sm:$0xff]
  %v1911 = vld [vmem:[%s13 + $0x38] sm:$0xff]
  %v1912 = vld [vmem:[%s13 + $0x40] sm:$0xff]
  %v1913 = vld [vmem:[%s13 + $0x48] sm:$0xff]
  %v1914 = vld [vmem:[%s13 + $0x50] sm:$0xff]
  %v1915 = vld [vmem:[%s13 + $0x58] sm:$0xff]
  %v1916 = vld [vmem:[%s13 + $0x60] sm:$0xff]
  %v1917 = vld [vmem:[%s13 + $0x68] sm:$0xff]
  %v1918 = vld [vmem:[%s13 + $0x70] sm:$0xff]
  %v1919 = vld [vmem:[%s13 + $0x78] sm:$0xff]
  %v1920 = vld [vmem:[%s14] sm:$0x1]
  %v1922 = vlaneseq
  %v1923 = vshrl.u32 %v1922, 7
  %v1924 = vsub.s32 0, %v1923
  %v1925 = vrot.slane %v1920, %v1924
  %1927 = vmatprep.subr.mxu0 0.0
  %1928 = vmatpush1.msra.mxu0 %v1904
  %1929 = vmatprep.subr.mxu0 0.0
  %1930 = vmatpush1.msra.mxu0 %v1905
  %1931 = vmatprep.subr.mxu0 0.0
  %1932 = vmatpush1.msra.mxu0 %v1906
  %1933 = vmatprep.subr.mxu0 0.0
  %1934 = vmatpush1.msra.mxu0 %v1907
  %1935 = vmatprep.subr.mxu0 0.0
  %1936 = vmatpush1.msra.mxu0 %v1908
  %1937 = vmatprep.subr.mxu0 0.0
  %1938 = vmatpush1.msra.mxu0 %v1909
  %1939 = vmatprep.subr.mxu0 0.0
  %1940 = vmatpush1.msra.mxu0 %v1910
  %1941 = vmatprep.subr.mxu0 0.0
  %1942 = vmatpush1.msra.mxu0 %v1911
  %1943 = vmatprep.subr.mxu0 0.0
  %1944 = vmatpush1.msra.mxu0 %v1912
  %1945 = vmatprep.subr.mxu0 0.0
  %1946 = vmatpush1.msra.mxu0 %v1913
  %1947 = vmatprep.subr.mxu0 0.0
  %1948 = vmatpush1.msra.mxu0 %v1914
  %1949 = vmatprep.subr.mxu0 0.0
  %1950 = vmatpush1.msra.mxu0 %v1915
  %1951 = vmatprep.subr.mxu0 0.0
  %1952 = vmatpush1.msra.mxu0 %v1916
  %1953 = vmatprep.subr.mxu0 0.0
  %1954 = vmatpush1.msra.mxu0 %v1917
  %1955 = vmatprep.subr.mxu0 0.0
  %1956 = vmatpush1.msra.mxu0 %v1918
  %1957 = vmatprep.subr.mxu0 0.0
  %1958 = vmatpush1.msra.mxu0 %v1919
  %1959 = vmatprep.subr.mxu0 0.0
  %1960 = vmatpush1.msra.mxu0 0.0
  %1961 = vmatprep.subr.mxu0 0.0
  %1962 = vmatpush1.msra.mxu0 0.0
  %1963 = vmatprep.subr.mxu0 0.0
  %1964 = vmatpush1.msra.mxu0 0.0
  %1965 = vmatprep.subr.mxu0 0.0
  %1966 = vmatpush1.msra.mxu0 0.0
  %1967 = vmatprep.subr.mxu0 0.0
  %1968 = vmatpush1.msra.mxu0 0.0
  %1969 = vmatprep.subr.mxu0 0.0
  %1970 = vmatpush1.msra.mxu0 0.0
  %1971 = vmatprep.subr.mxu0 0.0
  %1972 = vmatpush1.msra.mxu0 0.0
  %1973 = vmatprep.subr.mxu0 0.0
  %1974 = vmatpush1.msra.mxu0 0.0
  %1975 = vmatprep.subr.mxu0 0.0
  %1976 = vmatpush1.msra.mxu0 0.0
  %1977 = vmatprep.subr.mxu0 0.0
  %1978 = vmatpush1.msra.mxu0 0.0
  %1979 = vmatprep.subr.mxu0 0.0
  %1980 = vmatpush1.msra.mxu0 0.0
  %1981 = vmatprep.subr.mxu0 0.0
  %1982 = vmatpush1.msra.mxu0 0.0
  %1983 = vmatprep.subr.mxu0 0.0
  %1984 = vmatpush1.msra.mxu0 0.0
  %1985 = vmatprep.subr.mxu0 0.0
  %1986 = vmatpush1.msra.mxu0 0.0
  %1987 = vmatprep.subr.mxu0 0.0
  %1988 = vmatpush1.msra.mxu0 0.0
  %1989 = vmatprep.subr.mxu0 0.0
  %1990 = vmatpush1.msra.mxu0 0.0
  %1991 = vmatprep.mubr.f32.mxu0 0.0
  %1992 = vmatmul.mubr.f32.gmra.mrb[0].mxu0 %v1902
  %v1993 = vpop.f32.mrb[0].mxu0
  %v1994 = vadd.f32 %v1925, %v1993
  %v1995 = vpop.f32.mrb[0].mxu0
  %1996 = vmatprep.mubr.f32.mxu0 0.0
  %1997 = vmatmul.mubr.f32.gmra.mrb[0].mxu0 %v1903
  %v1998 = vpop.f32.mrb[0].mxu0
  %v1999 = vadd.f32 %v1925, %v1998
  %v2000 = vpop.f32.mrb[0].mxu0
  %2001 = vdwg.mxu0
  %v2002 = vld [vmem:[%s15] sm:$0x1]
  %v2003 = vld [vmem:[%s16] sm:$0x1]
  %v2004 = vadd.f32 %v1994, %v1794
  %v2005 = vadd.f32 %v1999, %v1795
  %2006 = vadd.xlane.f32.xlu0 %v2004
  %v2007 = vpop.xlane.xlu0 %2006
  %2008 = vadd.xlane.f32.xlu0 %v2005
  %v2009 = vpop.xlane.xlu0 %2008
  %v2010 = vmul.f32 %v2007, 0.03125
  %v2011 = vmul.f32 %v2009, 0.03125
  %v2012 = vsub.f32 %v2004, %v2010
  %v2013 = vsub.f32 %v2005, %v2011
  %v2014 = vmul.f32 %v2012, %v60
  %v2015 = vmul.f32 %v2013, %v60
  %v2016 = vmul.f32 %v2014, %v2014
  %v2017 = vmul.f32 %v2015, %v2015
  %2018 = vadd.xlane.f32.xlu0 %v2016
  %v2019 = vpop.xlane.xlu0 %2018
  %2020 = vadd.xlane.f32.xlu0 %v2017
  %v2021 = vpop.xlane.xlu0 %2020
  %v2022 = vmul.f32 %v2019, 0.03125
  %v2023 = vmul.f32 %v2021, 0.03125
  %v2024 = vadd.f32 %v2022, 1e-05
  %v2025 = vadd.f32 %v2023, 1e-05
  %v2026 = vrsqrt.pop %v2024
  %v2027 = vrsqrt.pop %v2025
  %v2028 = vmul.f32 %v2014, %v2026
  %v2029 = vmul.f32 %v2015, %v2027
  %v2031 = vlaneseq
  %v2032 = vshrl.u32 %v2031, 7
  %v2033 = vsub.s32 0, %v2032
  %v2034 = vrot.slane %v2002, %v2033
  %v2036 = vmul.f32 %v2028, %v2034
  %v2037 = vmul.f32 %v2029, %v2034
  %v2039 = vlaneseq
  %v2040 = vshrl.u32 %v2039, 7
  %v2041 = vsub.s32 0, %v2040
  %v2042 = vrot.slane %v2003, %v2041
  %v2044 = vadd.f32 %v2036, %v2042
  %v2045 = vadd.f32 %v2037, %v2042
  %s2046 = scalar_lea.vmem %s5, 128
  %v2047 = vld [vmem:[%s2046] sm:$0xff]
  %v2048 = vld [vmem:[%s2046 + $0x8] sm:$0xff]
  %v2049 = vld [vmem:[%s2046 + $0x10] sm:$0xff]
  %v2050 = vld [vmem:[%s2046 + $0x18] sm:$0xff]
  %v2051 = vld [vmem:[%s2046 + $0x20] sm:$0xff]
  %v2052 = vld [vmem:[%s2046 + $0x28] sm:$0xff]
  %v2053 = vld [vmem:[%s2046 + $0x30] sm:$0xff]
  %v2054 = vld [vmem:[%s2046 + $0x38] sm:$0xff]
  %v2055 = vld [vmem:[%s2046 + $0x40] sm:$0xff]
  %v2056 = vld [vmem:[%s2046 + $0x48] sm:$0xff]
  %v2057 = vld [vmem:[%s2046 + $0x50] sm:$0xff]
  %v2058 = vld [vmem:[%s2046 + $0x58] sm:$0xff]
  %v2059 = vld [vmem:[%s2046 + $0x60] sm:$0xff]
  %v2060 = vld [vmem:[%s2046 + $0x68] sm:$0xff]
  %v2061 = vld [vmem:[%s2046 + $0x70] sm:$0xff]
  %v2062 = vld [vmem:[%s2046 + $0x78] sm:$0xff]
  %s2063 = scalar_lea.vmem %s6, 1
  %v2064 = vld [vmem:[%s2063] sm:$0x1]
  %v2066 = vlaneseq
  %v2067 = vshrl.u32 %v2066, 7
  %v2068 = vsub.s32 0, %v2067
  %v2069 = vrot.slane %v2064, %v2068
  %2071 = vmatprep.subr.mxu0 0.0
  %2072 = vmatpush1.msra.mxu0 %v2047
  %2073 = vmatprep.subr.mxu0 0.0
  %2074 = vmatpush1.msra.mxu0 %v2048
  %2075 = vmatprep.subr.mxu0 0.0
  %2076 = vmatpush1.msra.mxu0 %v2049
  %2077 = vmatprep.subr.mxu0 0.0
  %2078 = vmatpush1.msra.mxu0 %v2050
  %2079 = vmatprep.subr.mxu0 0.0
  %2080 = vmatpush1.msra.mxu0 %v2051
  %2081 = vmatprep.subr.mxu0 0.0
  %2082 = vmatpush1.msra.mxu0 %v2052
  %2083 = vmatprep.subr.mxu0 0.0
  %2084 = vmatpush1.msra.mxu0 %v2053
  %2085 = vmatprep.subr.mxu0 0.0
  %2086 = vmatpush1.msra.mxu0 %v2054
  %2087 = vmatprep.subr.mxu0 0.0
  %2088 = vmatpush1.msra.mxu0 %v2055
  %2089 = vmatprep.subr.mxu0 0.0
  %2090 = vmatpush1.msra.mxu0 %v2056
  %2091 = vmatprep.subr.mxu0 0.0
  %2092 = vmatpush1.msra.mxu0 %v2057
  %2093 = vmatprep.subr.mxu0 0.0
  %2094 = vmatpush1.msra.mxu0 %v2058
  %2095 = vmatprep.subr.mxu0 0.0
  %2096 = vmatpush1.msra.mxu0 %v2059
  %2097 = vmatprep.subr.mxu0 0.0
  %2098 = vmatpush1.msra.mxu0 %v2060
  %2099 = vmatprep.subr.mxu0 0.0
  %2100 = vmatpush1.msra.mxu0 %v2061
  %2101 = vmatprep.subr.mxu0 0.0
  %2102 = vmatpush1.msra.mxu0 %v2062
  %2103 = vmatprep.subr.mxu0 0.0
  %2104 = vmatpush1.msra.mxu0 0.0
  %2105 = vmatprep.subr.mxu0 0.0
  %2106 = vmatpush1.msra.mxu0 0.0
  %2107 = vmatprep.subr.mxu0 0.0
  %2108 = vmatpush1.msra.mxu0 0.0
  %2109 = vmatprep.subr.mxu0 0.0
  %2110 = vmatpush1.msra.mxu0 0.0
  %2111 = vmatprep.subr.mxu0 0.0
  %2112 = vmatpush1.msra.mxu0 0.0
  %2113 = vmatprep.subr.mxu0 0.0
  %2114 = vmatpush1.msra.mxu0 0.0
  %2115 = vmatprep.subr.mxu0 0.0
  %2116 = vmatpush1.msra.mxu0 0.0
  %2117 = vmatprep.subr.mxu0 0.0
  %2118 = vmatpush1.msra.mxu0 0.0
  %2119 = vmatprep.subr.mxu0 0.0
  %2120 = vmatpush1.msra.mxu0 0.0
  %2121 = vmatprep.subr.mxu0 0.0
  %2122 = vmatpush1.msra.mxu0 0.0
  %2123 = vmatprep.subr.mxu0 0.0
  %2124 = vmatpush1.msra.mxu0 0.0
  %2125 = vmatprep.subr.mxu0 0.0
  %2126 = vmatpush1.msra.mxu0 0.0
  %2127 = vmatprep.subr.mxu0 0.0
  %2128 = vmatpush1.msra.mxu0 0.0
  %2129 = vmatprep.subr.mxu0 0.0
  %2130 = vmatpush1.msra.mxu0 0.0
  %2131 = vmatprep.subr.mxu0 0.0
  %2132 = vmatpush1.msra.mxu0 0.0
  %2133 = vmatprep.subr.mxu0 0.0
  %2134 = vmatpush1.msra.mxu0 0.0
  %2135 = vmatprep.mubr.f32.mxu0 0.0
  %2136 = vmatmul.mubr.f32.gmra.mrb[0].mxu0 %v2044
  %v2137 = vpop.f32.mrb[0].mxu0
  %v2138 = vadd.f32 %v2069, %v2137
  %v2139 = vpop.f32.mrb[0].mxu0
  %2140 = vmatprep.mubr.f32.mxu0 0.0
  %2141 = vmatmul.mubr.f32.gmra.mrb[0].mxu0 %v2045
  %v2142 = vpop.f32.mrb[0].mxu0
  %v2143 = vadd.f32 %v2069, %v2142
  %v2144 = vpop.f32.mrb[0].mxu0
  %2145 = vdwg.mxu0
  %2147 = vrot.lane.b32.xlu0 %v2138, 96
  %v2148 = vpop.permute.xlu0 %2147
  %v2149 = vsel %vm311, %v2138, 0
  %v2151 = vsel %vm311, %v2148, 0
  %2153 = vmatprep.subr.mxu0 0.0
  %2154 = vmatpush1.xpose.msra.mxu0 %v2151
  %2155 = vmatprep.subr.mxu0 0.0
  %2156 = vmatpush1.xpose.msra.mxu0 0.0
  %2157 = vmatprep.subr.mxu0 0.0
  %2158 = vmatpush1.xpose.msra.mxu0 0.0
  %2159 = vmatprep.subr.mxu0 0.0
  %2160 = vmatpush1.xpose.msra.mxu0 0.0
  %2161 = vmatprep.subr.mxu0 0.0
  %2162 = vmatpush1.xpose.msra.mxu0 0.0
  %2163 = vmatprep.subr.mxu0 0.0
  %2164 = vmatpush1.xpose.msra.mxu0 0.0
  %2165 = vmatprep.subr.mxu0 0.0
  %2166 = vmatpush1.xpose.msra.mxu0 0.0
  %2167 = vmatprep.subr.mxu0 0.0
  %2168 = vmatpush1.xpose.msra.mxu0 0.0
  %2169 = vmatprep.subr.mxu0 0.0
  %2170 = vmatpush1.xpose.msra.mxu0 0.0
  %2171 = vmatprep.subr.mxu0 0.0
  %2172 = vmatpush1.xpose.msra.mxu0 0.0
  %2173 = vmatprep.subr.mxu0 0.0
  %2174 = vmatpush1.xpose.msra.mxu0 0.0
  %2175 = vmatprep.subr.mxu0 0.0
  %2176 = vmatpush1.xpose.msra.mxu0 0.0
  %2177 = vmatprep.subr.mxu0 0.0
  %2178 = vmatpush1.xpose.msra.mxu0 0.0
  %2179 = vmatprep.subr.mxu0 0.0
  %2180 = vmatpush1.xpose.msra.mxu0 0.0
  %2181 = vmatprep.subr.mxu0 0.0
  %2182 = vmatpush1.xpose.msra.mxu0 0.0
  %2183 = vmatprep.subr.mxu0 0.0
  %2184 = vmatpush1.xpose.msra.mxu0 0.0
  %2185 = vmatprep.subr.mxu0 0.0
  %2186 = vmatpush1.xpose.msra.mxu0 0.0
  %2187 = vmatprep.subr.mxu0 0.0
  %2188 = vmatpush1.xpose.msra.mxu0 0.0
  %2189 = vmatprep.subr.mxu0 0.0
  %2190 = vmatpush1.xpose.msra.mxu0 0.0
  %2191 = vmatprep.subr.mxu0 0.0
  %2192 = vmatpush1.xpose.msra.mxu0 0.0
  %2193 = vmatprep.subr.mxu0 0.0
  %2194 = vmatpush1.xpose.msra.mxu0 0.0
  %2195 = vmatprep.subr.mxu0 0.0
  %2196 = vmatpush1.xpose.msra.mxu0 0.0
  %2197 = vmatprep.subr.mxu0 0.0
  %2198 = vmatpush1.xpose.msra.mxu0 0.0
  %2199 = vmatprep.subr.mxu0 0.0
  %2200 = vmatpush1.xpose.msra.mxu0 0.0
  %2201 = vmatprep.subr.mxu0 0.0
  %2202 = vmatpush1.xpose.msra.mxu0 0.0
  %2203 = vmatprep.subr.mxu0 0.0
  %2204 = vmatpush1.xpose.msra.mxu0 0.0
  %2205 = vmatprep.subr.mxu0 0.0
  %2206 = vmatpush1.xpose.msra.mxu0 0.0
  %2207 = vmatprep.subr.mxu0 0.0
  %2208 = vmatpush1.xpose.msra.mxu0 0.0
  %2209 = vmatprep.subr.mxu0 0.0
  %2210 = vmatpush1.xpose.msra.mxu0 0.0
  %2211 = vmatprep.subr.mxu0 0.0
  %2212 = vmatpush1.xpose.msra.mxu0 0.0
  %2213 = vmatprep.subr.mxu0 0.0
  %2214 = vmatpush1.xpose.msra.mxu0 0.0
  %2215 = vmatprep.subr.mxu0 0.0
  %2216 = vmatpush1.xpose.msra.mxu0 0.0
  %2217 = vmatprep.mubr.f32.mxu0 0.0
  %2218 = vmatmul.mubr.f32.gmra.mrb[0].mxu0 %v2149
  %v2219 = vpop.f32.mrb[0].mxu0
  %v2220 = vadd.f32 0.0, %v2219
  %v2221 = vpop.f32.mrb[0].mxu0
  %2222 = vdwg.mxu0
  %v2223 = vsel %vm311, %v2220, -inf
  %2224 = vmax.xlane.f32.xlu0 %v2223
  %v2225 = vpop.xlane.xlu0 %2224
  %v2226 = vsub.f32 %v2220, %v2225
  %v2227 = vmul.f32 %v2226, 1.442695
  %v2228 = vpow.pop %v2227
  %v2229 = vsel %vm311, %v2228, 0.0
  %2230 = vadd.xlane.f32.xlu0 %v2229
  %v2231 = vpop.xlane.xlu0 %2230
  %v2232 = vrcp.pop %v2231
  %v2233 = vmul.f32 %v2228, %v2232
  %2234 = vrot.lane.b32.xlu0 %v2138, 64
  %v2235 = vpop.permute.xlu0 %2234
  %v2238 = vsel %vm311, %v2233, 0
  %2240 = vmatprep.subr.mxu0 0.0
  %2241 = vmatpush1.msra.mxu0 %v2235
  %2242 = vmatprep.subr.mxu0 0.0
  %2243 = vmatpush1.msra.mxu0 0.0
  %2244 = vmatprep.subr.mxu0 0.0
  %2245 = vmatpush1.msra.mxu0 0.0
  %2246 = vmatprep.subr.mxu0 0.0
  %2247 = vmatpush1.msra.mxu0 0.0
  %2248 = vmatprep.subr.mxu0 0.0
  %2249 = vmatpush1.msra.mxu0 0.0
  %2250 = vmatprep.subr.mxu0 0.0
  %2251 = vmatpush1.msra.mxu0 0.0
  %2252 = vmatprep.subr.mxu0 0.0
  %2253 = vmatpush1.msra.mxu0 0.0
  %2254 = vmatprep.subr.mxu0 0.0
  %2255 = vmatpush1.msra.mxu0 0.0
  %2256 = vmatprep.subr.mxu0 0.0
  %2257 = vmatpush1.msra.mxu0 0.0
  %2258 = vmatprep.subr.mxu0 0.0
  %2259 = vmatpush1.msra.mxu0 0.0
  %2260 = vmatprep.subr.mxu0 0.0
  %2261 = vmatpush1.msra.mxu0 0.0
  %2262 = vmatprep.subr.mxu0 0.0
  %2263 = vmatpush1.msra.mxu0 0.0
  %2264 = vmatprep.subr.mxu0 0.0
  %2265 = vmatpush1.msra.mxu0 0.0
  %2266 = vmatprep.subr.mxu0 0.0
  %2267 = vmatpush1.msra.mxu0 0.0
  %2268 = vmatprep.subr.mxu0 0.0
  %2269 = vmatpush1.msra.mxu0 0.0
  %2270 = vmatprep.subr.mxu0 0.0
  %2271 = vmatpush1.msra.mxu0 0.0
  %2272 = vmatprep.subr.mxu0 0.0
  %2273 = vmatpush1.msra.mxu0 0.0
  %2274 = vmatprep.subr.mxu0 0.0
  %2275 = vmatpush1.msra.mxu0 0.0
  %2276 = vmatprep.subr.mxu0 0.0
  %2277 = vmatpush1.msra.mxu0 0.0
  %2278 = vmatprep.subr.mxu0 0.0
  %2279 = vmatpush1.msra.mxu0 0.0
  %2280 = vmatprep.subr.mxu0 0.0
  %2281 = vmatpush1.msra.mxu0 0.0
  %2282 = vmatprep.subr.mxu0 0.0
  %2283 = vmatpush1.msra.mxu0 0.0
  %2284 = vmatprep.subr.mxu0 0.0
  %2285 = vmatpush1.msra.mxu0 0.0
  %2286 = vmatprep.subr.mxu0 0.0
  %2287 = vmatpush1.msra.mxu0 0.0
  %2288 = vmatprep.subr.mxu0 0.0
  %2289 = vmatpush1.msra.mxu0 0.0
  %2290 = vmatprep.subr.mxu0 0.0
  %2291 = vmatpush1.msra.mxu0 0.0
  %2292 = vmatprep.subr.mxu0 0.0
  %2293 = vmatpush1.msra.mxu0 0.0
  %2294 = vmatprep.subr.mxu0 0.0
  %2295 = vmatpush1.msra.mxu0 0.0
  %2296 = vmatprep.subr.mxu0 0.0
  %2297 = vmatpush1.msra.mxu0 0.0
  %2298 = vmatprep.subr.mxu0 0.0
  %2299 = vmatpush1.msra.mxu0 0.0
  %2300 = vmatprep.subr.mxu0 0.0
  %2301 = vmatpush1.msra.mxu0 0.0
  %2302 = vmatprep.subr.mxu0 0.0
  %2303 = vmatpush1.msra.mxu0 0.0
  %2304 = vmatprep.mubr.f32.mxu0 0.0
  %2305 = vmatmul.mubr.f32.gmra.mrb[0].mxu0 %v2238
  %v2306 = vpop.f32.mrb[0].mxu0
  %v2307 = vadd.f32 0.0, %v2306
  %v2308 = vpop.f32.mrb[0].mxu0
  %2309 = vdwg.mxu0
  %2310 = vrot.lane.b32.xlu0 %v2138, 120
  %v2311 = vpop.permute.xlu0 %2310
  %2312 = vrot.lane.b32.xlu0 %v2138, 88
  %v2313 = vpop.permute.xlu0 %2312
  %v2314 = vsel %vm311, %v2311, 0
  %v2316 = vsel %vm311, %v2313, 0
  %2318 = vmatprep.subr.mxu0 0.0
  %2319 = vmatpush1.xpose.msra.mxu0 %v2316
  %2320 = vmatprep.subr.mxu0 0.0
  %2321 = vmatpush1.xpose.msra.mxu0 0.0
  %2322 = vmatprep.subr.mxu0 0.0
  %2323 = vmatpush1.xpose.msra.mxu0 0.0
  %2324 = vmatprep.subr.mxu0 0.0
  %2325 = vmatpush1.xpose.msra.mxu0 0.0
  %2326 = vmatprep.subr.mxu0 0.0
  %2327 = vmatpush1.xpose.msra.mxu0 0.0
  %2328 = vmatprep.subr.mxu0 0.0
  %2329 = vmatpush1.xpose.msra.mxu0 0.0
  %2330 = vmatprep.subr.mxu0 0.0
  %2331 = vmatpush1.xpose.msra.mxu0 0.0
  %2332 = vmatprep.subr.mxu0 0.0
  %2333 = vmatpush1.xpose.msra.mxu0 0.0
  %2334 = vmatprep.subr.mxu0 0.0
  %2335 = vmatpush1.xpose.msra.mxu0 0.0
  %2336 = vmatprep.subr.mxu0 0.0
  %2337 = vmatpush1.xpose.msra.mxu0 0.0
  %2338 = vmatprep.subr.mxu0 0.0
  %2339 = vmatpush1.xpose.msra.mxu0 0.0
  %2340 = vmatprep.subr.mxu0 0.0
  %2341 = vmatpush1.xpose.msra.mxu0 0.0
  %2342 = vmatprep.subr.mxu0 0.0
  %2343 = vmatpush1.xpose.msra.mxu0 0.0
  %2344 = vmatprep.subr.mxu0 0.0
  %2345 = vmatpush1.xpose.msra.mxu0 0.0
  %2346 = vmatprep.subr.mxu0 0.0
  %2347 = vmatpush1.xpose.msra.mxu0 0.0
  %2348 = vmatprep.subr.mxu0 0.0
  %2349 = vmatpush1.xpose.msra.mxu0 0.0
  %2350 = vmatprep.subr.mxu0 0.0
  %2351 = vmatpush1.xpose.msra.mxu0 0.0
  %2352 = vmatprep.subr.mxu0 0.0
  %2353 = vmatpush1.xpose.msra.mxu0 0.0
  %2354 = vmatprep.subr.mxu0 0.0
  %2355 = vmatpush1.xpose.msra.mxu0 0.0
  %2356 = vmatprep.subr.mxu0 0.0
  %2357 = vmatpush1.xpose.msra.mxu0 0.0
  %2358 = vmatprep.subr.mxu0 0.0
  %2359 = vmatpush1.xpose.msra.mxu0 0.0
  %2360 = vmatprep.subr.mxu0 0.0
  %2361 = vmatpush1.xpose.msra.mxu0 0.0
  %2362 = vmatprep.subr.mxu0 0.0
  %2363 = vmatpush1.xpose.msra.mxu0 0.0
  %2364 = vmatprep.subr.mxu0 0.0
  %2365 = vmatpush1.xpose.msra.mxu0 0.0
  %2366 = vmatprep.subr.mxu0 0.0
  %2367 = vmatpush1.xpose.msra.mxu0 0.0
  %2368 = vmatprep.subr.mxu0 0.0
  %2369 = vmatpush1.xpose.msra.mxu0 0.0
  %2370 = vmatprep.subr.mxu0 0.0
  %2371 = vmatpush1.xpose.msra.mxu0 0.0
  %2372 = vmatprep.subr.mxu0 0.0
  %2373 = vmatpush1.xpose.msra.mxu0 0.0
  %2374 = vmatprep.subr.mxu0 0.0
  %2375 = vmatpush1.xpose.msra.mxu0 0.0
  %2376 = vmatprep.subr.mxu0 0.0
  %2377 = vmatpush1.xpose.msra.mxu0 0.0
  %2378 = vmatprep.subr.mxu0 0.0
  %2379 = vmatpush1.xpose.msra.mxu0 0.0
  %2380 = vmatprep.subr.mxu0 0.0
  %2381 = vmatpush1.xpose.msra.mxu0 0.0
  %2382 = vmatprep.mubr.f32.mxu0 0.0
  %2383 = vmatmul.mubr.f32.gmra.mrb[0].mxu0 %v2314
  %v2384 = vpop.f32.mrb[0].mxu0
  %v2385 = vadd.f32 0.0, %v2384
  %v2386 = vpop.f32.mrb[0].mxu0
  %2387 = vdwg.mxu0
  %v2388 = vsel %vm311, %v2385, -inf
  %2389 = vmax.xlane.f32.xlu0 %v2388
  %v2390 = vpop.xlane.xlu0 %2389
  %v2391 = vsub.f32 %v2385, %v2390
  %v2392 = vmul.f32 %v2391, 1.442695
  %v2393 = vpow.pop %v2392
  %v2394 = vsel %vm311, %v2393, 0.0
  %2395 = vadd.xlane.f32.xlu0 %v2394
  %v2396 = vpop.xlane.xlu0 %2395
  %v2397 = vrcp.pop %v2396
  %v2398 = vmul.f32 %v2393, %v2397
  %2399 = vrot.lane.b32.xlu0 %v2138, 56
  %v2400 = vpop.permute.xlu0 %2399
  %v2403 = vsel %vm311, %v2398, 0
  %2405 = vmatprep.subr.mxu0 0.0
  %2406 = vmatpush1.msra.mxu0 %v2400
  %2407 = vmatprep.subr.mxu0 0.0
  %2408 = vmatpush1.msra.mxu0 0.0
  %2409 = vmatprep.subr.mxu0 0.0
  %2410 = vmatpush1.msra.mxu0 0.0
  %2411 = vmatprep.subr.mxu0 0.0
  %2412 = vmatpush1.msra.mxu0 0.0
  %2413 = vmatprep.subr.mxu0 0.0
  %2414 = vmatpush1.msra.mxu0 0.0
  %2415 = vmatprep.subr.mxu0 0.0
  %2416 = vmatpush1.msra.mxu0 0.0
  %2417 = vmatprep.subr.mxu0 0.0
  %2418 = vmatpush1.msra.mxu0 0.0
  %2419 = vmatprep.subr.mxu0 0.0
  %2420 = vmatpush1.msra.mxu0 0.0
  %2421 = vmatprep.subr.mxu0 0.0
  %2422 = vmatpush1.msra.mxu0 0.0
  %2423 = vmatprep.subr.mxu0 0.0
  %2424 = vmatpush1.msra.mxu0 0.0
  %2425 = vmatprep.subr.mxu0 0.0
  %2426 = vmatpush1.msra.mxu0 0.0
  %2427 = vmatprep.subr.mxu0 0.0
  %2428 = vmatpush1.msra.mxu0 0.0
  %2429 = vmatprep.subr.mxu0 0.0
  %2430 = vmatpush1.msra.mxu0 0.0
  %2431 = vmatprep.subr.mxu0 0.0
  %2432 = vmatpush1.msra.mxu0 0.0
  %2433 = vmatprep.subr.mxu0 0.0
  %2434 = vmatpush1.msra.mxu0 0.0
  %2435 = vmatprep.subr.mxu0 0.0
  %2436 = vmatpush1.msra.mxu0 0.0
  %2437 = vmatprep.subr.mxu0 0.0
  %2438 = vmatpush1.msra.mxu0 0.0
  %2439 = vmatprep.subr.mxu0 0.0
  %2440 = vmatpush1.msra.mxu0 0.0
  %2441 = vmatprep.subr.mxu0 0.0
  %2442 = vmatpush1.msra.mxu0 0.0
  %2443 = vmatprep.subr.mxu0 0.0
  %2444 = vmatpush1.msra.mxu0 0.0
  %2445 = vmatprep.subr.mxu0 0.0
  %2446 = vmatpush1.msra.mxu0 0.0
  %2447 = vmatprep.subr.mxu0 0.0
  %2448 = vmatpush1.msra.mxu0 0.0
  %2449 = vmatprep.subr.mxu0 0.0
  %2450 = vmatpush1.msra.mxu0 0.0
  %2451 = vmatprep.subr.mxu0 0.0
  %2452 = vmatpush1.msra.mxu0 0.0
  %2453 = vmatprep.subr.mxu0 0.0
  %2454 = vmatpush1.msra.mxu0 0.0
  %2455 = vmatprep.subr.mxu0 0.0
  %2456 = vmatpush1.msra.mxu0 0.0
  %2457 = vmatprep.subr.mxu0 0.0
  %2458 = vmatpush1.msra.mxu0 0.0
  %2459 = vmatprep.subr.mxu0 0.0
  %2460 = vmatpush1.msra.mxu0 0.0
  %2461 = vmatprep.subr.mxu0 0.0
  %2462 = vmatpush1.msra.mxu0 0.0
  %2463 = vmatprep.subr.mxu0 0.0
  %2464 = vmatpush1.msra.mxu0 0.0
  %2465 = vmatprep.subr.mxu0 0.0
  %2466 = vmatpush1.msra.mxu0 0.0
  %2467 = vmatprep.subr.mxu0 0.0
  %2468 = vmatpush1.msra.mxu0 0.0
  %2469 = vmatprep.mubr.f32.mxu0 0.0
  %2470 = vmatmul.mubr.f32.gmra.mrb[0].mxu0 %v2403
  %v2471 = vpop.f32.mrb[0].mxu0
  %v2472 = vadd.f32 0.0, %v2471
  %v2473 = vpop.f32.mrb[0].mxu0
  %2474 = vdwg.mxu0
  %2475 = vrot.lane.b32.xlu0 %v2138, 112
  %v2476 = vpop.permute.xlu0 %2475
  %2477 = vrot.lane.b32.xlu0 %v2138, 80
  %v2478 = vpop.permute.xlu0 %2477
  %v2479 = vsel %vm311, %v2476, 0
  %v2481 = vsel %vm311, %v2478, 0
  %2483 = vmatprep.subr.mxu0 0.0
  %2484 = vmatpush1.xpose.msra.mxu0 %v2481
  %2485 = vmatprep.subr.mxu0 0.0
  %2486 = vmatpush1.xpose.msra.mxu0 0.0
  %2487 = vmatprep.subr.mxu0 0.0
  %2488 = vmatpush1.xpose.msra.mxu0 0.0
  %2489 = vmatprep.subr.mxu0 0.0
  %2490 = vmatpush1.xpose.msra.mxu0 0.0
  %2491 = vmatprep.subr.mxu0 0.0
  %2492 = vmatpush1.xpose.msra.mxu0 0.0
  %2493 = vmatprep.subr.mxu0 0.0
  %2494 = vmatpush1.xpose.msra.mxu0 0.0
  %2495 = vmatprep.subr.mxu0 0.0
  %2496 = vmatpush1.xpose.msra.mxu0 0.0
  %2497 = vmatprep.subr.mxu0 0.0
  %2498 = vmatpush1.xpose.msra.mxu0 0.0
  %2499 = vmatprep.subr.mxu0 0.0
  %2500 = vmatpush1.xpose.msra.mxu0 0.0
  %2501 = vmatprep.subr.mxu0 0.0
  %2502 = vmatpush1.xpose.msra.mxu0 0.0
  %2503 = vmatprep.subr.mxu0 0.0
  %2504 = vmatpush1.xpose.msra.mxu0 0.0
  %2505 = vmatprep.subr.mxu0 0.0
  %2506 = vmatpush1.xpose.msra.mxu0 0.0
  %2507 = vmatprep.subr.mxu0 0.0
  %2508 = vmatpush1.xpose.msra.mxu0 0.0
  %2509 = vmatprep.subr.mxu0 0.0
  %2510 = vmatpush1.xpose.msra.mxu0 0.0
  %2511 = vmatprep.subr.mxu0 0.0
  %2512 = vmatpush1.xpose.msra.mxu0 0.0
  %2513 = vmatprep.subr.mxu0 0.0
  %2514 = vmatpush1.xpose.msra.mxu0 0.0
  %2515 = vmatprep.subr.mxu0 0.0
  %2516 = vmatpush1.xpose.msra.mxu0 0.0
  %2517 = vmatprep.subr.mxu0 0.0
  %2518 = vmatpush1.xpose.msra.mxu0 0.0
  %2519 = vmatprep.subr.mxu0 0.0
  %2520 = vmatpush1.xpose.msra.mxu0 0.0
  %2521 = vmatprep.subr.mxu0 0.0
  %2522 = vmatpush1.xpose.msra.mxu0 0.0
  %2523 = vmatprep.subr.mxu0 0.0
  %2524 = vmatpush1.xpose.msra.mxu0 0.0
  %2525 = vmatprep.subr.mxu0 0.0
  %2526 = vmatpush1.xpose.msra.mxu0 0.0
  %2527 = vmatprep.subr.mxu0 0.0
  %2528 = vmatpush1.xpose.msra.mxu0 0.0
  %2529 = vmatprep.subr.mxu0 0.0
  %2530 = vmatpush1.xpose.msra.mxu0 0.0
  %2531 = vmatprep.subr.mxu0 0.0
  %2532 = vmatpush1.xpose.msra.mxu0 0.0
  %2533 = vmatprep.subr.mxu0 0.0
  %2534 = vmatpush1.xpose.msra.mxu0 0.0
  %2535 = vmatprep.subr.mxu0 0.0
  %2536 = vmatpush1.xpose.msra.mxu0 0.0
  %2537 = vmatprep.subr.mxu0 0.0
  %2538 = vmatpush1.xpose.msra.mxu0 0.0
  %2539 = vmatprep.subr.mxu0 0.0
  %2540 = vmatpush1.xpose.msra.mxu0 0.0
  %2541 = vmatprep.subr.mxu0 0.0
  %2542 = vmatpush1.xpose.msra.mxu0 0.0
  %2543 = vmatprep.subr.mxu0 0.0
  %2544 = vmatpush1.xpose.msra.mxu0 0.0
  %2545 = vmatprep.subr.mxu0 0.0
  %2546 = vmatpush1.xpose.msra.mxu0 0.0
  %2547 = vmatprep.mubr.f32.mxu0 0.0
  %2548 = vmatmul.mubr.f32.gmra.mrb[0].mxu0 %v2479
  %v2549 = vpop.f32.mrb[0].mxu0
  %v2550 = vadd.f32 0.0, %v2549
  %v2551 = vpop.f32.mrb[0].mxu0
  %2552 = vdwg.mxu0
  %v2553 = vsel %vm311, %v2550, -inf
  %2554 = vmax.xlane.f32.xlu0 %v2553
  %v2555 = vpop.xlane.xlu0 %2554
  %v2556 = vsub.f32 %v2550, %v2555
  %v2557 = vmul.f32 %v2556, 1.442695
  %v2558 = vpow.pop %v2557
  %v2559 = vsel %vm311, %v2558, 0.0
  %2560 = vadd.xlane.f32.xlu0 %v2559
  %v2561 = vpop.xlane.xlu0 %2560
  %v2562 = vrcp.pop %v2561
  %v2563 = vmul.f32 %v2558, %v2562
  %2564 = vrot.lane.b32.xlu0 %v2138, 48
  %v2565 = vpop.permute.xlu0 %2564
  %v2568 = vsel %vm311, %v2563, 0
  %2570 = vmatprep.subr.mxu0 0.0
  %2571 = vmatpush1.msra.mxu0 %v2565
  %2572 = vmatprep.subr.mxu0 0.0
  %2573 = vmatpush1.msra.mxu0 0.0
  %2574 = vmatprep.subr.mxu0 0.0
  %2575 = vmatpush1.msra.mxu0 0.0
  %2576 = vmatprep.subr.mxu0 0.0
  %2577 = vmatpush1.msra.mxu0 0.0
  %2578 = vmatprep.subr.mxu0 0.0
  %2579 = vmatpush1.msra.mxu0 0.0
  %2580 = vmatprep.subr.mxu0 0.0
  %2581 = vmatpush1.msra.mxu0 0.0
  %2582 = vmatprep.subr.mxu0 0.0
  %2583 = vmatpush1.msra.mxu0 0.0
  %2584 = vmatprep.subr.mxu0 0.0
  %2585 = vmatpush1.msra.mxu0 0.0
  %2586 = vmatprep.subr.mxu0 0.0
  %2587 = vmatpush1.msra.mxu0 0.0
  %2588 = vmatprep.subr.mxu0 0.0
  %2589 = vmatpush1.msra.mxu0 0.0
  %2590 = vmatprep.subr.mxu0 0.0
  %2591 = vmatpush1.msra.mxu0 0.0
  %2592 = vmatprep.subr.mxu0 0.0
  %2593 = vmatpush1.msra.mxu0 0.0
  %2594 = vmatprep.subr.mxu0 0.0
  %2595 = vmatpush1.msra.mxu0 0.0
  %2596 = vmatprep.subr.mxu0 0.0
  %2597 = vmatpush1.msra.mxu0 0.0
  %2598 = vmatprep.subr.mxu0 0.0
  %2599 = vmatpush1.msra.mxu0 0.0
  %2600 = vmatprep.subr.mxu0 0.0
  %2601 = vmatpush1.msra.mxu0 0.0
  %2602 = vmatprep.subr.mxu0 0.0
  %2603 = vmatpush1.msra.mxu0 0.0
  %2604 = vmatprep.subr.mxu0 0.0
  %2605 = vmatpush1.msra.mxu0 0.0
  %2606 = vmatprep.subr.mxu0 0.0
  %2607 = vmatpush1.msra.mxu0 0.0
  %2608 = vmatprep.subr.mxu0 0.0
  %2609 = vmatpush1.msra.mxu0 0.0
  %2610 = vmatprep.subr.mxu0 0.0
  %2611 = vmatpush1.msra.mxu0 0.0
  %2612 = vmatprep.subr.mxu0 0.0
  %2613 = vmatpush1.msra.mxu0 0.0
  %2614 = vmatprep.subr.mxu0 0.0
  %2615 = vmatpush1.msra.mxu0 0.0
  %2616 = vmatprep.subr.mxu0 0.0
  %2617 = vmatpush1.msra.mxu0 0.0
  %2618 = vmatprep.subr.mxu0 0.0
  %2619 = vmatpush1.msra.mxu0 0.0
  %2620 = vmatprep.subr.mxu0 0.0
  %2621 = vmatpush1.msra.mxu0 0.0
  %2622 = vmatprep.subr.mxu0 0.0
  %2623 = vmatpush1.msra.mxu0 0.0
  %2624 = vmatprep.subr.mxu0 0.0
  %2625 = vmatpush1.msra.mxu0 0.0
  %2626 = vmatprep.subr.mxu0 0.0
  %2627 = vmatpush1.msra.mxu0 0.0
  %2628 = vmatprep.subr.mxu0 0.0
  %2629 = vmatpush1.msra.mxu0 0.0
  %2630 = vmatprep.subr.mxu0 0.0
  %2631 = vmatpush1.msra.mxu0 0.0
  %2632 = vmatprep.subr.mxu0 0.0
  %2633 = vmatpush1.msra.mxu0 0.0
  %2634 = vmatprep.mubr.f32.mxu0 0.0
  %2635 = vmatmul.mubr.f32.gmra.mrb[0].mxu0 %v2568
  %v2636 = vpop.f32.mrb[0].mxu0
  %v2637 = vadd.f32 0.0, %v2636
  %v2638 = vpop.f32.mrb[0].mxu0
  %2639 = vdwg.mxu0
  %2640 = vrot.lane.b32.xlu0 %v2138, 104
  %v2641 = vpop.permute.xlu0 %2640
  %2642 = vrot.lane.b32.xlu0 %v2138, 72
  %v2643 = vpop.permute.xlu0 %2642
  %v2644 = vsel %vm311, %v2641, 0
  %v2646 = vsel %vm311, %v2643, 0
  %2648 = vmatprep.subr.mxu0 0.0
  %2649 = vmatpush1.xpose.msra.mxu0 %v2646
  %2650 = vmatprep.subr.mxu0 0.0
  %2651 = vmatpush1.xpose.msra.mxu0 0.0
  %2652 = vmatprep.subr.mxu0 0.0
  %2653 = vmatpush1.xpose.msra.mxu0 0.0
  %2654 = vmatprep.subr.mxu0 0.0
  %2655 = vmatpush1.xpose.msra.mxu0 0.0
  %2656 = vmatprep.subr.mxu0 0.0
  %2657 = vmatpush1.xpose.msra.mxu0 0.0
  %2658 = vmatprep.subr.mxu0 0.0
  %2659 = vmatpush1.xpose.msra.mxu0 0.0
  %2660 = vmatprep.subr.mxu0 0.0
  %2661 = vmatpush1.xpose.msra.mxu0 0.0
  %2662 = vmatprep.subr.mxu0 0.0
  %2663 = vmatpush1.xpose.msra.mxu0 0.0
  %2664 = vmatprep.subr.mxu0 0.0
  %2665 = vmatpush1.xpose.msra.mxu0 0.0
  %2666 = vmatprep.subr.mxu0 0.0
  %2667 = vmatpush1.xpose.msra.mxu0 0.0
  %2668 = vmatprep.subr.mxu0 0.0
  %2669 = vmatpush1.xpose.msra.mxu0 0.0
  %2670 = vmatprep.subr.mxu0 0.0
  %2671 = vmatpush1.xpose.msra.mxu0 0.0
  %2672 = vmatprep.subr.mxu0 0.0
  %2673 = vmatpush1.xpose.msra.mxu0 0.0
  %2674 = vmatprep.subr.mxu0 0.0
  %2675 = vmatpush1.xpose.msra.mxu0 0.0
  %2676 = vmatprep.subr.mxu0 0.0
  %2677 = vmatpush1.xpose.msra.mxu0 0.0
  %2678 = vmatprep.subr.mxu0 0.0
  %2679 = vmatpush1.xpose.msra.mxu0 0.0
  %2680 = vmatprep.subr.mxu0 0.0
  %2681 = vmatpush1.xpose.msra.mxu0 0.0
  %2682 = vmatprep.subr.mxu0 0.0
  %2683 = vmatpush1.xpose.msra.mxu0 0.0
  %2684 = vmatprep.subr.mxu0 0.0
  %2685 = vmatpush1.xpose.msra.mxu0 0.0
  %2686 = vmatprep.subr.mxu0 0.0
  %2687 = vmatpush1.xpose.msra.mxu0 0.0
  %2688 = vmatprep.subr.mxu0 0.0
  %2689 = vmatpush1.xpose.msra.mxu0 0.0
  %2690 = vmatprep.subr.mxu0 0.0
  %2691 = vmatpush1.xpose.msra.mxu0 0.0
  %2692 = vmatprep.subr.mxu0 0.0
  %2693 = vmatpush1.xpose.msra.mxu0 0.0
  %2694 = vmatprep.subr.mxu0 0.0
  %2695 = vmatpush1.xpose.msra.mxu0 0.0
  %2696 = vmatprep.subr.mxu0 0.0
  %2697 = vmatpush1.xpose.msra.mxu0 0.0
  %2698 = vmatprep.subr.mxu0 0.0
  %2699 = vmatpush1.xpose.msra.mxu0 0.0
  %2700 = vmatprep.subr.mxu0 0.0
  %2701 = vmatpush1.xpose.msra.mxu0 0.0
  %2702 = vmatprep.subr.mxu0 0.0
  %2703 = vmatpush1.xpose.msra.mxu0 0.0
  %2704 = vmatprep.subr.mxu0 0.0
  %2705 = vmatpush1.xpose.msra.mxu0 0.0
  %2706 = vmatprep.subr.mxu0 0.0
  %2707 = vmatpush1.xpose.msra.mxu0 0.0
  %2708 = vmatprep.subr.mxu0 0.0
  %2709 = vmatpush1.xpose.msra.mxu0 0.0
  %2710 = vmatprep.subr.mxu0 0.0
  %2711 = vmatpush1.xpose.msra.mxu0 0.0
  %2712 = vmatprep.mubr.f32.mxu0 0.0
  %2713 = vmatmul.mubr.f32.gmra.mrb[0].mxu0 %v2644
  %v2714 = vpop.f32.mrb[0].mxu0
  %v2715 = vadd.f32 0.0, %v2714
  %v2716 = vpop.f32.mrb[0].mxu0
  %2717 = vdwg.mxu0
  %v2718 = vsel %vm311, %v2715, -inf
  %2719 = vmax.xlane.f32.xlu0 %v2718
  %v2720 = vpop.xlane.xlu0 %2719
  %v2721 = vsub.f32 %v2715, %v2720
  %v2722 = vmul.f32 %v2721, 1.442695
  %v2723 = vpow.pop %v2722
  %v2724 = vsel %vm311, %v2723, 0.0
  %2725 = vadd.xlane.f32.xlu0 %v2724
  %v2726 = vpop.xlane.xlu0 %2725
  %v2727 = vrcp.pop %v2726
  %v2728 = vmul.f32 %v2723, %v2727
  %2729 = vrot.lane.b32.xlu0 %v2138, 40
  %v2730 = vpop.permute.xlu0 %2729
  %v2733 = vsel %vm311, %v2728, 0
  %2735 = vmatprep.subr.mxu0 0.0
  %2736 = vmatpush1.msra.mxu0 %v2730
  %2737 = vmatprep.subr.mxu0 0.0
  %2738 = vmatpush1.msra.mxu0 0.0
  %2739 = vmatprep.subr.mxu0 0.0
  %2740 = vmatpush1.msra.mxu0 0.0
  %2741 = vmatprep.subr.mxu0 0.0
  %2742 = vmatpush1.msra.mxu0 0.0
  %2743 = vmatprep.subr.mxu0 0.0
  %2744 = vmatpush1.msra.mxu0 0.0
  %2745 = vmatprep.subr.mxu0 0.0
  %2746 = vmatpush1.msra.mxu0 0.0
  %2747 = vmatprep.subr.mxu0 0.0
  %2748 = vmatpush1.msra.mxu0 0.0
  %2749 = vmatprep.subr.mxu0 0.0
  %2750 = vmatpush1.msra.mxu0 0.0
  %2751 = vmatprep.subr.mxu0 0.0
  %2752 = vmatpush1.msra.mxu0 0.0
  %2753 = vmatprep.subr.mxu0 0.0
  %2754 = vmatpush1.msra.mxu0 0.0
  %2755 = vmatprep.subr.mxu0 0.0
  %2756 = vmatpush1.msra.mxu0 0.0
  %2757 = vmatprep.subr.mxu0 0.0
  %2758 = vmatpush1.msra.mxu0 0.0
  %2759 = vmatprep.subr.mxu0 0.0
  %2760 = vmatpush1.msra.mxu0 0.0
  %2761 = vmatprep.subr.mxu0 0.0
  %2762 = vmatpush1.msra.mxu0 0.0
  %2763 = vmatprep.subr.mxu0 0.0
  %2764 = vmatpush1.msra.mxu0 0.0
  %2765 = vmatprep.subr.mxu0 0.0
  %2766 = vmatpush1.msra.mxu0 0.0
  %2767 = vmatprep.subr.mxu0 0.0
  %2768 = vmatpush1.msra.mxu0 0.0
  %2769 = vmatprep.subr.mxu0 0.0
  %2770 = vmatpush1.msra.mxu0 0.0
  %2771 = vmatprep.subr.mxu0 0.0
  %2772 = vmatpush1.msra.mxu0 0.0
  %2773 = vmatprep.subr.mxu0 0.0
  %2774 = vmatpush1.msra.mxu0 0.0
  %2775 = vmatprep.subr.mxu0 0.0
  %2776 = vmatpush1.msra.mxu0 0.0
  %2777 = vmatprep.subr.mxu0 0.0
  %2778 = vmatpush1.msra.mxu0 0.0
  %2779 = vmatprep.subr.mxu0 0.0
  %2780 = vmatpush1.msra.mxu0 0.0
  %2781 = vmatprep.subr.mxu0 0.0
  %2782 = vmatpush1.msra.mxu0 0.0
  %2783 = vmatprep.subr.mxu0 0.0
  %2784 = vmatpush1.msra.mxu0 0.0
  %2785 = vmatprep.subr.mxu0 0.0
  %2786 = vmatpush1.msra.mxu0 0.0
  %2787 = vmatprep.subr.mxu0 0.0
  %2788 = vmatpush1.msra.mxu0 0.0
  %2789 = vmatprep.subr.mxu0 0.0
  %2790 = vmatpush1.msra.mxu0 0.0
  %2791 = vmatprep.subr.mxu0 0.0
  %2792 = vmatpush1.msra.mxu0 0.0
  %2793 = vmatprep.subr.mxu0 0.0
  %2794 = vmatpush1.msra.mxu0 0.0
  %2795 = vmatprep.subr.mxu0 0.0
  %2796 = vmatpush1.msra.mxu0 0.0
  %2797 = vmatprep.subr.mxu0 0.0
  %2798 = vmatpush1.msra.mxu0 0.0
  %2799 = vmatprep.mubr.f32.mxu0 0.0
  %2800 = vmatmul.mubr.f32.gmra.mrb[0].mxu0 %v2733
  %v2801 = vpop.f32.mrb[0].mxu0
  %v2802 = vadd.f32 0.0, %v2801
  %v2803 = vpop.f32.mrb[0].mxu0
  %2804 = vdwg.mxu0
  %2806 = vrot.lane.b32.xlu0 %v2472, 8
  %v2807 = vpop.permute.xlu0 %2806
  %2810 = vrot.lane.b32.xlu0 %v2637, 16
  %v2811 = vpop.permute.xlu0 %2810
  %2814 = vrot.lane.b32.xlu0 %v2802, 24
  %v2815 = vpop.permute.xlu0 %2814
  %v2817 = vsel %vm311, %v2307, %v2807
  %v2818 = vsel %vm981, %v2817, %v2811
  %v2819 = vsel %vm983, %v2818, %v2815
  %2821 = vrot.lane.b32.xlu0 %v2143, 96
  %v2822 = vpop.permute.xlu0 %2821
  %v2823 = vsel %vm311, %v2143, 0
  %v2825 = vsel %vm311, %v2822, 0
  %2827 = vmatprep.subr.mxu0 0.0
  %2828 = vmatpush1.xpose.msra.mxu0 %v2825
  %2829 = vmatprep.subr.mxu0 0.0
  %2830 = vmatpush1.xpose.msra.mxu0 0.0
  %2831 = vmatprep.subr.mxu0 0.0
  %2832 = vmatpush1.xpose.msra.mxu0 0.0
  %2833 = vmatprep.subr.mxu0 0.0
  %2834 = vmatpush1.xpose.msra.mxu0 0.0
  %2835 = vmatprep.subr.mxu0 0.0
  %2836 = vmatpush1.xpose.msra.mxu0 0.0
  %2837 = vmatprep.subr.mxu0 0.0
  %2838 = vmatpush1.xpose.msra.mxu0 0.0
  %2839 = vmatprep.subr.mxu0 0.0
  %2840 = vmatpush1.xpose.msra.mxu0 0.0
  %2841 = vmatprep.subr.mxu0 0.0
  %2842 = vmatpush1.xpose.msra.mxu0 0.0
  %2843 = vmatprep.subr.mxu0 0.0
  %2844 = vmatpush1.xpose.msra.mxu0 0.0
  %2845 = vmatprep.subr.mxu0 0.0
  %2846 = vmatpush1.xpose.msra.mxu0 0.0
  %2847 = vmatprep.subr.mxu0 0.0
  %2848 = vmatpush1.xpose.msra.mxu0 0.0
  %2849 = vmatprep.subr.mxu0 0.0
  %2850 = vmatpush1.xpose.msra.mxu0 0.0
  %2851 = vmatprep.subr.mxu0 0.0
  %2852 = vmatpush1.xpose.msra.mxu0 0.0
  %2853 = vmatprep.subr.mxu0 0.0
  %2854 = vmatpush1.xpose.msra.mxu0 0.0
  %2855 = vmatprep.subr.mxu0 0.0
  %2856 = vmatpush1.xpose.msra.mxu0 0.0
  %2857 = vmatprep.subr.mxu0 0.0
  %2858 = vmatpush1.xpose.msra.mxu0 0.0
  %2859 = vmatprep.subr.mxu0 0.0
  %2860 = vmatpush1.xpose.msra.mxu0 0.0
  %2861 = vmatprep.subr.mxu0 0.0
  %2862 = vmatpush1.xpose.msra.mxu0 0.0
  %2863 = vmatprep.subr.mxu0 0.0
  %2864 = vmatpush1.xpose.msra.mxu0 0.0
  %2865 = vmatprep.subr.mxu0 0.0
  %2866 = vmatpush1.xpose.msra.mxu0 0.0
  %2867 = vmatprep.subr.mxu0 0.0
  %2868 = vmatpush1.xpose.msra.mxu0 0.0
  %2869 = vmatprep.subr.mxu0 0.0
  %2870 = vmatpush1.xpose.msra.mxu0 0.0
  %2871 = vmatprep.subr.mxu0 0.0
  %2872 = vmatpush1.xpose.msra.mxu0 0.0
  %2873 = vmatprep.subr.mxu0 0.0
  %2874 = vmatpush1.xpose.msra.mxu0 0.0
  %2875 = vmatprep.subr.mxu0 0.0
  %2876 = vmatpush1.xpose.msra.mxu0 0.0
  %2877 = vmatprep.subr.mxu0 0.0
  %2878 = vmatpush1.xpose.msra.mxu0 0.0
  %2879 = vmatprep.subr.mxu0 0.0
  %2880 = vmatpush1.xpose.msra.mxu0 0.0
  %2881 = vmatprep.subr.mxu0 0.0
  %2882 = vmatpush1.xpose.msra.mxu0 0.0
  %2883 = vmatprep.subr.mxu0 0.0
  %2884 = vmatpush1.xpose.msra.mxu0 0.0
  %2885 = vmatprep.subr.mxu0 0.0
  %2886 = vmatpush1.xpose.msra.mxu0 0.0
  %2887 = vmatprep.subr.mxu0 0.0
  %2888 = vmatpush1.xpose.msra.mxu0 0.0
  %2889 = vmatprep.subr.mxu0 0.0
  %2890 = vmatpush1.xpose.msra.mxu0 0.0
  %2891 = vmatprep.mubr.f32.mxu0 0.0
  %2892 = vmatmul.mubr.f32.gmra.mrb[0].mxu0 %v2823
  %v2893 = vpop.f32.mrb[0].mxu0
  %v2894 = vadd.f32 0.0, %v2893
  %v2895 = vpop.f32.mrb[0].mxu0
  %2896 = vdwg.mxu0
  %v2897 = vsel %vm311, %v2894, -inf
  %2898 = vmax.xlane.f32.xlu0 %v2897
  %v2899 = vpop.xlane.xlu0 %2898
  %v2900 = vsub.f32 %v2894, %v2899
  %v2901 = vmul.f32 %v2900, 1.442695
  %v2902 = vpow.pop %v2901
  %v2903 = vsel %vm311, %v2902, 0.0
  %2904 = vadd.xlane.f32.xlu0 %v2903
  %v2905 = vpop.xlane.xlu0 %2904
  %v2906 = vrcp.pop %v2905
  %v2907 = vmul.f32 %v2902, %v2906
  %2908 = vrot.lane.b32.xlu0 %v2143, 64
  %v2909 = vpop.permute.xlu0 %2908
  %v2912 = vsel %vm311, %v2907, 0
  %2914 = vmatprep.subr.mxu0 0.0
  %2915 = vmatpush1.msra.mxu0 %v2909
  %2916 = vmatprep.subr.mxu0 0.0
  %2917 = vmatpush1.msra.mxu0 0.0
  %2918 = vmatprep.subr.mxu0 0.0
  %2919 = vmatpush1.msra.mxu0 0.0
  %2920 = vmatprep.subr.mxu0 0.0
  %2921 = vmatpush1.msra.mxu0 0.0
  %2922 = vmatprep.subr.mxu0 0.0
  %2923 = vmatpush1.msra.mxu0 0.0
  %2924 = vmatprep.subr.mxu0 0.0
  %2925 = vmatpush1.msra.mxu0 0.0
  %2926 = vmatprep.subr.mxu0 0.0
  %2927 = vmatpush1.msra.mxu0 0.0
  %2928 = vmatprep.subr.mxu0 0.0
  %2929 = vmatpush1.msra.mxu0 0.0
  %2930 = vmatprep.subr.mxu0 0.0
  %2931 = vmatpush1.msra.mxu0 0.0
  %2932 = vmatprep.subr.mxu0 0.0
  %2933 = vmatpush1.msra.mxu0 0.0
  %2934 = vmatprep.subr.mxu0 0.0
  %2935 = vmatpush1.msra.mxu0 0.0
  %2936 = vmatprep.subr.mxu0 0.0
  %2937 = vmatpush1.msra.mxu0 0.0
  %2938 = vmatprep.subr.mxu0 0.0
  %2939 = vmatpush1.msra.mxu0 0.0
  %2940 = vmatprep.subr.mxu0 0.0
  %2941 = vmatpush1.msra.mxu0 0.0
  %2942 = vmatprep.subr.mxu0 0.0
  %2943 = vmatpush1.msra.mxu0 0.0
  %2944 = vmatprep.subr.mxu0 0.0
  %2945 = vmatpush1.msra.mxu0 0.0
  %2946 = vmatprep.subr.mxu0 0.0
  %2947 = vmatpush1.msra.mxu0 0.0
  %2948 = vmatprep.subr.mxu0 0.0
  %2949 = vmatpush1.msra.mxu0 0.0
  %2950 = vmatprep.subr.mxu0 0.0
  %2951 = vmatpush1.msra.mxu0 0.0
  %2952 = vmatprep.subr.mxu0 0.0
  %2953 = vmatpush1.msra.mxu0 0.0
  %2954 = vmatprep.subr.mxu0 0.0
  %2955 = vmatpush1.msra.mxu0 0.0
  %2956 = vmatprep.subr.mxu0 0.0
  %2957 = vmatpush1.msra.mxu0 0.0
  %2958 = vmatprep.subr.mxu0 0.0
  %2959 = vmatpush1.msra.mxu0 0.0
  %2960 = vmatprep.subr.mxu0 0.0
  %2961 = vmatpush1.msra.mxu0 0.0
  %2962 = vmatprep.subr.mxu0 0.0
  %2963 = vmatpush1.msra.mxu0 0.0
  %2964 = vmatprep.subr.mxu0 0.0
  %2965 = vmatpush1.msra.mxu0 0.0
  %2966 = vmatprep.subr.mxu0 0.0
  %2967 = vmatpush1.msra.mxu0 0.0
  %2968 = vmatprep.subr.mxu0 0.0
  %2969 = vmatpush1.msra.mxu0 0.0
  %2970 = vmatprep.subr.mxu0 0.0
  %2971 = vmatpush1.msra.mxu0 0.0
  %2972 = vmatprep.subr.mxu0 0.0
  %2973 = vmatpush1.msra.mxu0 0.0
  %2974 = vmatprep.subr.mxu0 0.0
  %2975 = vmatpush1.msra.mxu0 0.0
  %2976 = vmatprep.subr.mxu0 0.0
  %2977 = vmatpush1.msra.mxu0 0.0
  %2978 = vmatprep.mubr.f32.mxu0 0.0
  %2979 = vmatmul.mubr.f32.gmra.mrb[0].mxu0 %v2912
  %v2980 = vpop.f32.mrb[0].mxu0
  %v2981 = vadd.f32 0.0, %v2980
  %v2982 = vpop.f32.mrb[0].mxu0
  %2983 = vdwg.mxu0
  %2984 = vrot.lane.b32.xlu0 %v2143, 120
  %v2985 = vpop.permute.xlu0 %2984
  %2986 = vrot.lane.b32.xlu0 %v2143, 88
  %v2987 = vpop.permute.xlu0 %2986
  %v2988 = vsel %vm311, %v2985, 0
  %v2990 = vsel %vm311, %v2987, 0
  %2992 = vmatprep.subr.mxu0 0.0
  %2993 = vmatpush1.xpose.msra.mxu0 %v2990
  %2994 = vmatprep.subr.mxu0 0.0
  %2995 = vmatpush1.xpose.msra.mxu0 0.0
  %2996 = vmatprep.subr.mxu0 0.0
  %2997 = vmatpush1.xpose.msra.mxu0 0.0
  %2998 = vmatprep.subr.mxu0 0.0
  %2999 = vmatpush1.xpose.msra.mxu0 0.0
  %3000 = vmatprep.subr.mxu0 0.0
  %3001 = vmatpush1.xpose.msra.mxu0 0.0
  %3002 = vmatprep.subr.mxu0 0.0
  %3003 = vmatpush1.xpose.msra.mxu0 0.0
  %3004 = vmatprep.subr.mxu0 0.0
  %3005 = vmatpush1.xpose.msra.mxu0 0.0
  %3006 = vmatprep.subr.mxu0 0.0
  %3007 = vmatpush1.xpose.msra.mxu0 0.0
  %3008 = vmatprep.subr.mxu0 0.0
  %3009 = vmatpush1.xpose.msra.mxu0 0.0
  %3010 = vmatprep.subr.mxu0 0.0
  %3011 = vmatpush1.xpose.msra.mxu0 0.0
  %3012 = vmatprep.subr.mxu0 0.0
  %3013 = vmatpush1.xpose.msra.mxu0 0.0
  %3014 = vmatprep.subr.mxu0 0.0
  %3015 = vmatpush1.xpose.msra.mxu0 0.0
  %3016 = vmatprep.subr.mxu0 0.0
  %3017 = vmatpush1.xpose.msra.mxu0 0.0
  %3018 = vmatprep.subr.mxu0 0.0
  %3019 = vmatpush1.xpose.msra.mxu0 0.0
  %3020 = vmatprep.subr.mxu0 0.0
  %3021 = vmatpush1.xpose.msra.mxu0 0.0
  %3022 = vmatprep.subr.mxu0 0.0
  %3023 = vmatpush1.xpose.msra.mxu0 0.0
  %3024 = vmatprep.subr.mxu0 0.0
  %3025 = vmatpush1.xpose.msra.mxu0 0.0
  %3026 = vmatprep.subr.mxu0 0.0
  %3027 = vmatpush1.xpose.msra.mxu0 0.0
  %3028 = vmatprep.subr.mxu0 0.0
  %3029 = vmatpush1.xpose.msra.mxu0 0.0
  %3030 = vmatprep.subr.mxu0 0.0
  %3031 = vmatpush1.xpose.msra.mxu0 0.0
  %3032 = vmatprep.subr.mxu0 0.0
  %3033 = vmatpush1.xpose.msra.mxu0 0.0
  %3034 = vmatprep.subr.mxu0 0.0
  %3035 = vmatpush1.xpose.msra.mxu0 0.0
  %3036 = vmatprep.subr.mxu0 0.0
  %3037 = vmatpush1.xpose.msra.mxu0 0.0
  %3038 = vmatprep.subr.mxu0 0.0
  %3039 = vmatpush1.xpose.msra.mxu0 0.0
  %3040 = vmatprep.subr.mxu0 0.0
  %3041 = vmatpush1.xpose.msra.mxu0 0.0
  %3042 = vmatprep.subr.mxu0 0.0
  %3043 = vmatpush1.xpose.msra.mxu0 0.0
  %3044 = vmatprep.subr.mxu0 0.0
  %3045 = vmatpush1.xpose.msra.mxu0 0.0
  %3046 = vmatprep.subr.mxu0 0.0
  %3047 = vmatpush1.xpose.msra.mxu0 0.0
  %3048 = vmatprep.subr.mxu0 0.0
  %3049 = vmatpush1.xpose.msra.mxu0 0.0
  %3050 = vmatprep.subr.mxu0 0.0
  %3051 = vmatpush1.xpose.msra.mxu0 0.0
  %3052 = vmatprep.subr.mxu0 0.0
  %3053 = vmatpush1.xpose.msra.mxu0 0.0
  %3054 = vmatprep.subr.mxu0 0.0
  %3055 = vmatpush1.xpose.msra.mxu0 0.0
  %3056 = vmatprep.mubr.f32.mxu0 0.0
  %3057 = vmatmul.mubr.f32.gmra.mrb[0].mxu0 %v2988
  %v3058 = vpop.f32.mrb[0].mxu0
  %v3059 = vadd.f32 0.0, %v3058
  %v3060 = vpop.f32.mrb[0].mxu0
  %3061 = vdwg.mxu0
  %v3062 = vsel %vm311, %v3059, -inf
  %3063 = vmax.xlane.f32.xlu0 %v3062
  %v3064 = vpop.xlane.xlu0 %3063
  %v3065 = vsub.f32 %v3059, %v3064
  %v3066 = vmul.f32 %v3065, 1.442695
  %v3067 = vpow.pop %v3066
  %v3068 = vsel %vm311, %v3067, 0.0
  %3069 = vadd.xlane.f32.xlu0 %v3068
  %v3070 = vpop.xlane.xlu0 %3069
  %v3071 = vrcp.pop %v3070
  %v3072 = vmul.f32 %v3067, %v3071
  %3073 = vrot.lane.b32.xlu0 %v2143, 56
  %v3074 = vpop.permute.xlu0 %3073
  %v3077 = vsel %vm311, %v3072, 0
  %3079 = vmatprep.subr.mxu0 0.0
  %3080 = vmatpush1.msra.mxu0 %v3074
  %3081 = vmatprep.subr.mxu0 0.0
  %3082 = vmatpush1.msra.mxu0 0.0
  %3083 = vmatprep.subr.mxu0 0.0
  %3084 = vmatpush1.msra.mxu0 0.0
  %3085 = vmatprep.subr.mxu0 0.0
  %3086 = vmatpush1.msra.mxu0 0.0
  %3087 = vmatprep.subr.mxu0 0.0
  %3088 = vmatpush1.msra.mxu0 0.0
  %3089 = vmatprep.subr.mxu0 0.0
  %3090 = vmatpush1.msra.mxu0 0.0
  %3091 = vmatprep.subr.mxu0 0.0
  %3092 = vmatpush1.msra.mxu0 0.0
  %3093 = vmatprep.subr.mxu0 0.0
  %3094 = vmatpush1.msra.mxu0 0.0
  %3095 = vmatprep.subr.mxu0 0.0
  %3096 = vmatpush1.msra.mxu0 0.0
  %3097 = vmatprep.subr.mxu0 0.0
  %3098 = vmatpush1.msra.mxu0 0.0
  %3099 = vmatprep.subr.mxu0 0.0
  %3100 = vmatpush1.msra.mxu0 0.0
  %3101 = vmatprep.subr.mxu0 0.0
  %3102 = vmatpush1.msra.mxu0 0.0
  %3103 = vmatprep.subr.mxu0 0.0
  %3104 = vmatpush1.msra.mxu0 0.0
  %3105 = vmatprep.subr.mxu0 0.0
  %3106 = vmatpush1.msra.mxu0 0.0
  %3107 = vmatprep.subr.mxu0 0.0
  %3108 = vmatpush1.msra.mxu0 0.0
  %3109 = vmatprep.subr.mxu0 0.0
  %3110 = vmatpush1.msra.mxu0 0.0
  %3111 = vmatprep.subr.mxu0 0.0
  %3112 = vmatpush1.msra.mxu0 0.0
  %3113 = vmatprep.subr.mxu0 0.0
  %3114 = vmatpush1.msra.mxu0 0.0
  %3115 = vmatprep.subr.mxu0 0.0
  %3116 = vmatpush1.msra.mxu0 0.0
  %3117 = vmatprep.subr.mxu0 0.0
  %3118 = vmatpush1.msra.mxu0 0.0
  %3119 = vmatprep.subr.mxu0 0.0
  %3120 = vmatpush1.msra.mxu0 0.0
  %3121 = vmatprep.subr.mxu0 0.0
  %3122 = vmatpush1.msra.mxu0 0.0
  %3123 = vmatprep.subr.mxu0 0.0
  %3124 = vmatpush1.msra.mxu0 0.0
  %3125 = vmatprep.subr.mxu0 0.0
  %3126 = vmatpush1.msra.mxu0 0.0
  %3127 = vmatprep.subr.mxu0 0.0
  %3128 = vmatpush1.msra.mxu0 0.0
  %3129 = vmatprep.subr.mxu0 0.0
  %3130 = vmatpush1.msra.mxu0 0.0
  %3131 = vmatprep.subr.mxu0 0.0
  %3132 = vmatpush1.msra.mxu0 0.0
  %3133 = vmatprep.subr.mxu0 0.0
  %3134 = vmatpush1.msra.mxu0 0.0
  %3135 = vmatprep.subr.mxu0 0.0
  %3136 = vmatpush1.msra.mxu0 0.0
  %3137 = vmatprep.subr.mxu0 0.0
  %3138 = vmatpush1.msra.mxu0 0.0
  %3139 = vmatprep.subr.mxu0 0.0
  %3140 = vmatpush1.msra.mxu0 0.0
  %3141 = vmatprep.subr.mxu0 0.0
  %3142 = vmatpush1.msra.mxu0 0.0
  %3143 = vmatprep.mubr.f32.mxu0 0.0
  %3144 = vmatmul.mubr.f32.gmra.mrb[0].mxu0 %v3077
  %v3145 = vpop.f32.mrb[0].mxu0
  %v3146 = vadd.f32 0.0, %v3145
  %v3147 = vpop.f32.mrb[0].mxu0
  %3148 = vdwg.mxu0
  %3149 = vrot.lane.b32.xlu0 %v2143, 112
  %v3150 = vpop.permute.xlu0 %3149
  %3151 = vrot.lane.b32.xlu0 %v2143, 80
  %v3152 = vpop.permute.xlu0 %3151
  %v3153 = vsel %vm311, %v3150, 0
  %v3155 = vsel %vm311, %v3152, 0
  %3157 = vmatprep.subr.mxu0 0.0
  %3158 = vmatpush1.xpose.msra.mxu0 %v3155
  %3159 = vmatprep.subr.mxu0 0.0
  %3160 = vmatpush1.xpose.msra.mxu0 0.0
  %3161 = vmatprep.subr.mxu0 0.0
  %3162 = vmatpush1.xpose.msra.mxu0 0.0
  %3163 = vmatprep.subr.mxu0 0.0
  %3164 = vmatpush1.xpose.msra.mxu0 0.0
  %3165 = vmatprep.subr.mxu0 0.0
  %3166 = vmatpush1.xpose.msra.mxu0 0.0
  %3167 = vmatprep.subr.mxu0 0.0
  %3168 = vmatpush1.xpose.msra.mxu0 0.0
  %3169 = vmatprep.subr.mxu0 0.0
  %3170 = vmatpush1.xpose.msra.mxu0 0.0
  %3171 = vmatprep.subr.mxu0 0.0
  %3172 = vmatpush1.xpose.msra.mxu0 0.0
  %3173 = vmatprep.subr.mxu0 0.0
  %3174 = vmatpush1.xpose.msra.mxu0 0.0
  %3175 = vmatprep.subr.mxu0 0.0
  %3176 = vmatpush1.xpose.msra.mxu0 0.0
  %3177 = vmatprep.subr.mxu0 0.0
  %3178 = vmatpush1.xpose.msra.mxu0 0.0
  %3179 = vmatprep.subr.mxu0 0.0
  %3180 = vmatpush1.xpose.msra.mxu0 0.0
  %3181 = vmatprep.subr.mxu0 0.0
  %3182 = vmatpush1.xpose.msra.mxu0 0.0
  %3183 = vmatprep.subr.mxu0 0.0
  %3184 = vmatpush1.xpose.msra.mxu0 0.0
  %3185 = vmatprep.subr.mxu0 0.0
  %3186 = vmatpush1.xpose.msra.mxu0 0.0
  %3187 = vmatprep.subr.mxu0 0.0
  %3188 = vmatpush1.xpose.msra.mxu0 0.0
  %3189 = vmatprep.subr.mxu0 0.0
  %3190 = vmatpush1.xpose.msra.mxu0 0.0
  %3191 = vmatprep.subr.mxu0 0.0
  %3192 = vmatpush1.xpose.msra.mxu0 0.0
  %3193 = vmatprep.subr.mxu0 0.0
  %3194 = vmatpush1.xpose.msra.mxu0 0.0
  %3195 = vmatprep.subr.mxu0 0.0
  %3196 = vmatpush1.xpose.msra.mxu0 0.0
  %3197 = vmatprep.subr.mxu0 0.0
  %3198 = vmatpush1.xpose.msra.mxu0 0.0
  %3199 = vmatprep.subr.mxu0 0.0
  %3200 = vmatpush1.xpose.msra.mxu0 0.0
  %3201 = vmatprep.subr.mxu0 0.0
  %3202 = vmatpush1.xpose.msra.mxu0 0.0
  %3203 = vmatprep.subr.mxu0 0.0
  %3204 = vmatpush1.xpose.msra.mxu0 0.0
  %3205 = vmatprep.subr.mxu0 0.0
  %3206 = vmatpush1.xpose.msra.mxu0 0.0
  %3207 = vmatprep.subr.mxu0 0.0
  %3208 = vmatpush1.xpose.msra.mxu0 0.0
  %3209 = vmatprep.subr.mxu0 0.0
  %3210 = vmatpush1.xpose.msra.mxu0 0.0
  %3211 = vmatprep.subr.mxu0 0.0
  %3212 = vmatpush1.xpose.msra.mxu0 0.0
  %3213 = vmatprep.subr.mxu0 0.0
  %3214 = vmatpush1.xpose.msra.mxu0 0.0
  %3215 = vmatprep.subr.mxu0 0.0
  %3216 = vmatpush1.xpose.msra.mxu0 0.0
  %3217 = vmatprep.subr.mxu0 0.0
  %3218 = vmatpush1.xpose.msra.mxu0 0.0
  %3219 = vmatprep.subr.mxu0 0.0
  %3220 = vmatpush1.xpose.msra.mxu0 0.0
  %3221 = vmatprep.mubr.f32.mxu0 0.0
  %3222 = vmatmul.mubr.f32.gmra.mrb[0].mxu0 %v3153
  %v3223 = vpop.f32.mrb[0].mxu0
  %v3224 = vadd.f32 0.0, %v3223
  %v3225 = vpop.f32.mrb[0].mxu0
  %3226 = vdwg.mxu0
  %v3227 = vsel %vm311, %v3224, -inf
  %3228 = vmax.xlane.f32.xlu0 %v3227
  %v3229 = vpop.xlane.xlu0 %3228
  %v3230 = vsub.f32 %v3224, %v3229
  %v3231 = vmul.f32 %v3230, 1.442695
  %v3232 = vpow.pop %v3231
  %v3233 = vsel %vm311, %v3232, 0.0
  %3234 = vadd.xlane.f32.xlu0 %v3233
  %v3235 = vpop.xlane.xlu0 %3234
  %v3236 = vrcp.pop %v3235
  %v3237 = vmul.f32 %v3232, %v3236
  %3238 = vrot.lane.b32.xlu0 %v2143, 48
  %v3239 = vpop.permute.xlu0 %3238
  %v3242 = vsel %vm311, %v3237, 0
  %3244 = vmatprep.subr.mxu0 0.0
  %3245 = vmatpush1.msra.mxu0 %v3239
  %3246 = vmatprep.subr.mxu0 0.0
  %3247 = vmatpush1.msra.mxu0 0.0
  %3248 = vmatprep.subr.mxu0 0.0
  %3249 = vmatpush1.msra.mxu0 0.0
  %3250 = vmatprep.subr.mxu0 0.0
  %3251 = vmatpush1.msra.mxu0 0.0
  %3252 = vmatprep.subr.mxu0 0.0
  %3253 = vmatpush1.msra.mxu0 0.0
  %3254 = vmatprep.subr.mxu0 0.0
  %3255 = vmatpush1.msra.mxu0 0.0
  %3256 = vmatprep.subr.mxu0 0.0
  %3257 = vmatpush1.msra.mxu0 0.0
  %3258 = vmatprep.subr.mxu0 0.0
  %3259 = vmatpush1.msra.mxu0 0.0
  %3260 = vmatprep.subr.mxu0 0.0
  %3261 = vmatpush1.msra.mxu0 0.0
  %3262 = vmatprep.subr.mxu0 0.0
  %3263 = vmatpush1.msra.mxu0 0.0
  %3264 = vmatprep.subr.mxu0 0.0
  %3265 = vmatpush1.msra.mxu0 0.0
  %3266 = vmatprep.subr.mxu0 0.0
  %3267 = vmatpush1.msra.mxu0 0.0
  %3268 = vmatprep.subr.mxu0 0.0
  %3269 = vmatpush1.msra.mxu0 0.0
  %3270 = vmatprep.subr.mxu0 0.0
  %3271 = vmatpush1.msra.mxu0 0.0
  %3272 = vmatprep.subr.mxu0 0.0
  %3273 = vmatpush1.msra.mxu0 0.0
  %3274 = vmatprep.subr.mxu0 0.0
  %3275 = vmatpush1.msra.mxu0 0.0
  %3276 = vmatprep.subr.mxu0 0.0
  %3277 = vmatpush1.msra.mxu0 0.0
  %3278 = vmatprep.subr.mxu0 0.0
  %3279 = vmatpush1.msra.mxu0 0.0
  %3280 = vmatprep.subr.mxu0 0.0
  %3281 = vmatpush1.msra.mxu0 0.0
  %3282 = vmatprep.subr.mxu0 0.0
  %3283 = vmatpush1.msra.mxu0 0.0
  %3284 = vmatprep.subr.mxu0 0.0
  %3285 = vmatpush1.msra.mxu0 0.0
  %3286 = vmatprep.subr.mxu0 0.0
  %3287 = vmatpush1.msra.mxu0 0.0
  %3288 = vmatprep.subr.mxu0 0.0
  %3289 = vmatpush1.msra.mxu0 0.0
  %3290 = vmatprep.subr.mxu0 0.0
  %3291 = vmatpush1.msra.mxu0 0.0
  %3292 = vmatprep.subr.mxu0 0.0
  %3293 = vmatpush1.msra.mxu0 0.0
  %3294 = vmatprep.subr.mxu0 0.0
  %3295 = vmatpush1.msra.mxu0 0.0
  %3296 = vmatprep.subr.mxu0 0.0
  %3297 = vmatpush1.msra.mxu0 0.0
  %3298 = vmatprep.subr.mxu0 0.0
  %3299 = vmatpush1.msra.mxu0 0.0
  %3300 = vmatprep.subr.mxu0 0.0
  %3301 = vmatpush1.msra.mxu0 0.0
  %3302 = vmatprep.subr.mxu0 0.0
  %3303 = vmatpush1.msra.mxu0 0.0
  %3304 = vmatprep.subr.mxu0 0.0
  %3305 = vmatpush1.msra.mxu0 0.0
  %3306 = vmatprep.subr.mxu0 0.0
  %3307 = vmatpush1.msra.mxu0 0.0
  %3308 = vmatprep.mubr.f32.mxu0 0.0
  %3309 = vmatmul.mubr.f32.gmra.mrb[0].mxu0 %v3242
  %v3310 = vpop.f32.mrb[0].mxu0
  %v3311 = vadd.f32 0.0, %v3310
  %v3312 = vpop.f32.mrb[0].mxu0
  %3313 = vdwg.mxu0
  %3314 = vrot.lane.b32.xlu0 %v2143, 104
  %v3315 = vpop.permute.xlu0 %3314
  %3316 = vrot.lane.b32.xlu0 %v2143, 72
  %v3317 = vpop.permute.xlu0 %3316
  %v3318 = vsel %vm311, %v3315, 0
  %v3320 = vsel %vm311, %v3317, 0
  %3322 = vmatprep.subr.mxu0 0.0
  %3323 = vmatpush1.xpose.msra.mxu0 %v3320
  %3324 = vmatprep.subr.mxu0 0.0
  %3325 = vmatpush1.xpose.msra.mxu0 0.0
  %3326 = vmatprep.subr.mxu0 0.0
  %3327 = vmatpush1.xpose.msra.mxu0 0.0
  %3328 = vmatprep.subr.mxu0 0.0
  %3329 = vmatpush1.xpose.msra.mxu0 0.0
  %3330 = vmatprep.subr.mxu0 0.0
  %3331 = vmatpush1.xpose.msra.mxu0 0.0
  %3332 = vmatprep.subr.mxu0 0.0
  %3333 = vmatpush1.xpose.msra.mxu0 0.0
  %3334 = vmatprep.subr.mxu0 0.0
  %3335 = vmatpush1.xpose.msra.mxu0 0.0
  %3336 = vmatprep.subr.mxu0 0.0
  %3337 = vmatpush1.xpose.msra.mxu0 0.0
  %3338 = vmatprep.subr.mxu0 0.0
  %3339 = vmatpush1.xpose.msra.mxu0 0.0
  %3340 = vmatprep.subr.mxu0 0.0
  %3341 = vmatpush1.xpose.msra.mxu0 0.0
  %3342 = vmatprep.subr.mxu0 0.0
  %3343 = vmatpush1.xpose.msra.mxu0 0.0
  %3344 = vmatprep.subr.mxu0 0.0
  %3345 = vmatpush1.xpose.msra.mxu0 0.0
  %3346 = vmatprep.subr.mxu0 0.0
  %3347 = vmatpush1.xpose.msra.mxu0 0.0
  %3348 = vmatprep.subr.mxu0 0.0
  %3349 = vmatpush1.xpose.msra.mxu0 0.0
  %3350 = vmatprep.subr.mxu0 0.0
  %3351 = vmatpush1.xpose.msra.mxu0 0.0
  %3352 = vmatprep.subr.mxu0 0.0
  %3353 = vmatpush1.xpose.msra.mxu0 0.0
  %3354 = vmatprep.subr.mxu0 0.0
  %3355 = vmatpush1.xpose.msra.mxu0 0.0
  %3356 = vmatprep.subr.mxu0 0.0
  %3357 = vmatpush1.xpose.msra.mxu0 0.0
  %3358 = vmatprep.subr.mxu0 0.0
  %3359 = vmatpush1.xpose.msra.mxu0 0.0
  %3360 = vmatprep.subr.mxu0 0.0
  %3361 = vmatpush1.xpose.msra.mxu0 0.0
  %3362 = vmatprep.subr.mxu0 0.0
  %3363 = vmatpush1.xpose.msra.mxu0 0.0
  %3364 = vmatprep.subr.mxu0 0.0
  %3365 = vmatpush1.xpose.msra.mxu0 0.0
  %3366 = vmatprep.subr.mxu0 0.0
  %3367 = vmatpush1.xpose.msra.mxu0 0.0
  %3368 = vmatprep.subr.mxu0 0.0
  %3369 = vmatpush1.xpose.msra.mxu0 0.0
  %3370 = vmatprep.subr.mxu0 0.0
  %3371 = vmatpush1.xpose.msra.mxu0 0.0
  %3372 = vmatprep.subr.mxu0 0.0
  %3373 = vmatpush1.xpose.msra.mxu0 0.0
  %3374 = vmatprep.subr.mxu0 0.0
  %3375 = vmatpush1.xpose.msra.mxu0 0.0
  %3376 = vmatprep.subr.mxu0 0.0
  %3377 = vmatpush1.xpose.msra.mxu0 0.0
  %3378 = vmatprep.subr.mxu0 0.0
  %3379 = vmatpush1.xpose.msra.mxu0 0.0
  %3380 = vmatprep.subr.mxu0 0.0
  %3381 = vmatpush1.xpose.msra.mxu0 0.0
  %3382 = vmatprep.subr.mxu0 0.0
  %3383 = vmatpush1.xpose.msra.mxu0 0.0
  %3384 = vmatprep.subr.mxu0 0.0
  %3385 = vmatpush1.xpose.msra.mxu0 0.0
  %3386 = vmatprep.mubr.f32.mxu0 0.0
  %3387 = vmatmul.mubr.f32.gmra.mrb[0].mxu0 %v3318
  %v3388 = vpop.f32.mrb[0].mxu0
  %v3389 = vadd.f32 0.0, %v3388
  %v3390 = vpop.f32.mrb[0].mxu0
  %3391 = vdwg.mxu0
  %v3392 = vsel %vm311, %v3389, -inf
  %3393 = vmax.xlane.f32.xlu0 %v3392
  %v3394 = vpop.xlane.xlu0 %3393
  %v3395 = vsub.f32 %v3389, %v3394
  %v3396 = vmul.f32 %v3395, 1.442695
  %v3397 = vpow.pop %v3396
  %v3398 = vsel %vm311, %v3397, 0.0
  %3399 = vadd.xlane.f32.xlu0 %v3398
  %v3400 = vpop.xlane.xlu0 %3399
  %v3401 = vrcp.pop %v3400
  %v3402 = vmul.f32 %v3397, %v3401
  %3403 = vrot.lane.b32.xlu0 %v2143, 40
  %v3404 = vpop.permute.xlu0 %3403
  %v3407 = vsel %vm311, %v3402, 0
  %3409 = vmatprep.subr.mxu0 0.0
  %3410 = vmatpush1.msra.mxu0 %v3404
  %3411 = vmatprep.subr.mxu0 0.0
  %3412 = vmatpush1.msra.mxu0 0.0
  %3413 = vmatprep.subr.mxu0 0.0
  %3414 = vmatpush1.msra.mxu0 0.0
  %3415 = vmatprep.subr.mxu0 0.0
  %3416 = vmatpush1.msra.mxu0 0.0
  %3417 = vmatprep.subr.mxu0 0.0
  %3418 = vmatpush1.msra.mxu0 0.0
  %3419 = vmatprep.subr.mxu0 0.0
  %3420 = vmatpush1.msra.mxu0 0.0
  %3421 = vmatprep.subr.mxu0 0.0
  %3422 = vmatpush1.msra.mxu0 0.0
  %3423 = vmatprep.subr.mxu0 0.0
  %3424 = vmatpush1.msra.mxu0 0.0
  %3425 = vmatprep.subr.mxu0 0.0
  %3426 = vmatpush1.msra.mxu0 0.0
  %3427 = vmatprep.subr.mxu0 0.0
  %3428 = vmatpush1.msra.mxu0 0.0
  %3429 = vmatprep.subr.mxu0 0.0
  %3430 = vmatpush1.msra.mxu0 0.0
  %3431 = vmatprep.subr.mxu0 0.0
  %3432 = vmatpush1.msra.mxu0 0.0
  %3433 = vmatprep.subr.mxu0 0.0
  %3434 = vmatpush1.msra.mxu0 0.0
  %3435 = vmatprep.subr.mxu0 0.0
  %3436 = vmatpush1.msra.mxu0 0.0
  %3437 = vmatprep.subr.mxu0 0.0
  %3438 = vmatpush1.msra.mxu0 0.0
  %3439 = vmatprep.subr.mxu0 0.0
  %3440 = vmatpush1.msra.mxu0 0.0
  %3441 = vmatprep.subr.mxu0 0.0
  %3442 = vmatpush1.msra.mxu0 0.0
  %3443 = vmatprep.subr.mxu0 0.0
  %3444 = vmatpush1.msra.mxu0 0.0
  %3445 = vmatprep.subr.mxu0 0.0
  %3446 = vmatpush1.msra.mxu0 0.0
  %3447 = vmatprep.subr.mxu0 0.0
  %3448 = vmatpush1.msra.mxu0 0.0
  %3449 = vmatprep.subr.mxu0 0.0
  %3450 = vmatpush1.msra.mxu0 0.0
  %3451 = vmatprep.subr.mxu0 0.0
  %3452 = vmatpush1.msra.mxu0 0.0
  %3453 = vmatprep.subr.mxu0 0.0
  %3454 = vmatpush1.msra.mxu0 0.0
  %3455 = vmatprep.subr.mxu0 0.0
  %3456 = vmatpush1.msra.mxu0 0.0
  %3457 = vmatprep.subr.mxu0 0.0
  %3458 = vmatpush1.msra.mxu0 0.0
  %3459 = vmatprep.subr.mxu0 0.0
  %3460 = vmatpush1.msra.mxu0 0.0
  %3461 = vmatprep.subr.mxu0 0.0
  %3462 = vmatpush1.msra.mxu0 0.0
  %3463 = vmatprep.subr.mxu0 0.0
  %3464 = vmatpush1.msra.mxu0 0.0
  %3465 = vmatprep.subr.mxu0 0.0
  %3466 = vmatpush1.msra.mxu0 0.0
  %3467 = vmatprep.subr.mxu0 0.0
  %3468 = vmatpush1.msra.mxu0 0.0
  %3469 = vmatprep.subr.mxu0 0.0
  %3470 = vmatpush1.msra.mxu0 0.0
  %3471 = vmatprep.subr.mxu0 0.0
  %3472 = vmatpush1.msra.mxu0 0.0
  %3473 = vmatprep.mubr.f32.mxu0 0.0
  %3474 = vmatmul.mubr.f32.gmra.mrb[0].mxu0 %v3407
  %v3475 = vpop.f32.mrb[0].mxu0
  %v3476 = vadd.f32 0.0, %v3475
  %v3477 = vpop.f32.mrb[0].mxu0
  %3478 = vdwg.mxu0
  %3480 = vrot.lane.b32.xlu0 %v3146, 8
  %v3481 = vpop.permute.xlu0 %3480
  %3484 = vrot.lane.b32.xlu0 %v3311, 16
  %v3485 = vpop.permute.xlu0 %3484
  %3488 = vrot.lane.b32.xlu0 %v3476, 24
  %v3489 = vpop.permute.xlu0 %3488
  %v3491 = vsel %vm311, %v2981, %v3481
  %v3492 = vsel %vm981, %v3491, %v3485
  %v3493 = vsel %vm983, %v3492, %v3489
  %s3494 = scalar_lea.vmem %s7, 32
  %v3495 = vld [vmem:[%s3494] sm:$0xff]
  %v3496 = vld [vmem:[%s3494 + $0x8] sm:$0xff]
  %v3497 = vld [vmem:[%s3494 + $0x10] sm:$0xff]
  %v3498 = vld [vmem:[%s3494 + $0x18] sm:$0xff]
  %s3499 = scalar_lea.vmem %s8, 1
  %v3500 = vld [vmem:[%s3499] sm:$0x1]
  %v3502 = vlaneseq
  %v3503 = vshrl.u32 %v3502, 7
  %v3504 = vsub.s32 0, %v3503
  %v3505 = vrot.slane %v3500, %v3504
  %v3508 = vsel %vm1670, %v2819, 0
  %v3511 = vsel %vm1670, %v3493, 0
  %3513 = vmatprep.subr.mxu0 0.0
  %3514 = vmatpush1.msra.mxu0 %v3495
  %3515 = vmatprep.subr.mxu0 0.0
  %3516 = vmatpush1.msra.mxu0 %v3496
  %3517 = vmatprep.subr.mxu0 0.0
  %3518 = vmatpush1.msra.mxu0 %v3497
  %3519 = vmatprep.subr.mxu0 0.0
  %3520 = vmatpush1.msra.mxu0 %v3498
  %3521 = vmatprep.subr.mxu0 0.0
  %3522 = vmatpush1.msra.mxu0 0.0
  %3523 = vmatprep.subr.mxu0 0.0
  %3524 = vmatpush1.msra.mxu0 0.0
  %3525 = vmatprep.subr.mxu0 0.0
  %3526 = vmatpush1.msra.mxu0 0.0
  %3527 = vmatprep.subr.mxu0 0.0
  %3528 = vmatpush1.msra.mxu0 0.0
  %3529 = vmatprep.subr.mxu0 0.0
  %3530 = vmatpush1.msra.mxu0 0.0
  %3531 = vmatprep.subr.mxu0 0.0
  %3532 = vmatpush1.msra.mxu0 0.0
  %3533 = vmatprep.subr.mxu0 0.0
  %3534 = vmatpush1.msra.mxu0 0.0
  %3535 = vmatprep.subr.mxu0 0.0
  %3536 = vmatpush1.msra.mxu0 0.0
  %3537 = vmatprep.subr.mxu0 0.0
  %3538 = vmatpush1.msra.mxu0 0.0
  %3539 = vmatprep.subr.mxu0 0.0
  %3540 = vmatpush1.msra.mxu0 0.0
  %3541 = vmatprep.subr.mxu0 0.0
  %3542 = vmatpush1.msra.mxu0 0.0
  %3543 = vmatprep.subr.mxu0 0.0
  %3544 = vmatpush1.msra.mxu0 0.0
  %3545 = vmatprep.subr.mxu0 0.0
  %3546 = vmatpush1.msra.mxu0 0.0
  %3547 = vmatprep.subr.mxu0 0.0
  %3548 = vmatpush1.msra.mxu0 0.0
  %3549 = vmatprep.subr.mxu0 0.0
  %3550 = vmatpush1.msra.mxu0 0.0
  %3551 = vmatprep.subr.mxu0 0.0
  %3552 = vmatpush1.msra.mxu0 0.0
  %3553 = vmatprep.subr.mxu0 0.0
  %3554 = vmatpush1.msra.mxu0 0.0
  %3555 = vmatprep.subr.mxu0 0.0
  %3556 = vmatpush1.msra.mxu0 0.0
  %3557 = vmatprep.subr.mxu0 0.0
  %3558 = vmatpush1.msra.mxu0 0.0
  %3559 = vmatprep.subr.mxu0 0.0
  %3560 = vmatpush1.msra.mxu0 0.0
  %3561 = vmatprep.subr.mxu0 0.0
  %3562 = vmatpush1.msra.mxu0 0.0
  %3563 = vmatprep.subr.mxu0 0.0
  %3564 = vmatpush1.msra.mxu0 0.0
  %3565 = vmatprep.subr.mxu0 0.0
  %3566 = vmatpush1.msra.mxu0 0.0
  %3567 = vmatprep.subr.mxu0 0.0
  %3568 = vmatpush1.msra.mxu0 0.0
  %3569 = vmatprep.subr.mxu0 0.0
  %3570 = vmatpush1.msra.mxu0 0.0
  %3571 = vmatprep.subr.mxu0 0.0
  %3572 = vmatpush1.msra.mxu0 0.0
  %3573 = vmatprep.subr.mxu0 0.0
  %3574 = vmatpush1.msra.mxu0 0.0
  %3575 = vmatprep.subr.mxu0 0.0
  %3576 = vmatpush1.msra.mxu0 0.0
  %3577 = vmatprep.mubr.f32.mxu0 0.0
  %3578 = vmatmul.mubr.f32.gmra.mrb[0].mxu0 %v3508
  %v3579 = vpop.f32.mrb[0].mxu0
  %v3580 = vadd.f32 %v3505, %v3579
  %v3581 = vpop.f32.mrb[0].mxu0
  %3582 = vmatprep.mubr.f32.mxu0 0.0
  %3583 = vmatmul.mubr.f32.gmra.mrb[0].mxu0 %v3511
  %v3584 = vpop.f32.mrb[0].mxu0
  %v3585 = vadd.f32 %v3505, %v3584
  %v3586 = vpop.f32.mrb[0].mxu0
  %3587 = vdwg.mxu0
  %s3588 = scalar_lea.vmem %s9, 1
  %v3589 = vld [vmem:[%s3588] sm:$0x1]
  %s3590 = scalar_lea.vmem %s10, 1
  %v3591 = vld [vmem:[%s3590] sm:$0x1]
  %v3592 = vadd.f32 %v3580, %v2044
  %v3593 = vadd.f32 %v3585, %v2045
  %3594 = vadd.xlane.f32.xlu0 %v3592
  %v3595 = vpop.xlane.xlu0 %3594
  %3596 = vadd.xlane.f32.xlu0 %v3593
  %v3597 = vpop.xlane.xlu0 %3596
  %v3598 = vmul.f32 %v3595, 0.03125
  %v3599 = vmul.f32 %v3597, 0.03125
  %v3600 = vsub.f32 %v3592, %v3598
  %v3601 = vsub.f32 %v3593, %v3599
  %v3602 = vmul.f32 %v3600, %v60
  %v3603 = vmul.f32 %v3601, %v60
  %v3604 = vmul.f32 %v3602, %v3602
  %v3605 = vmul.f32 %v3603, %v3603
  %3606 = vadd.xlane.f32.xlu0 %v3604
  %v3607 = vpop.xlane.xlu0 %3606
  %3608 = vadd.xlane.f32.xlu0 %v3605
  %v3609 = vpop.xlane.xlu0 %3608
  %v3610 = vmul.f32 %v3607, 0.03125
  %v3611 = vmul.f32 %v3609, 0.03125
  %v3612 = vadd.f32 %v3610, 1e-05
  %v3613 = vadd.f32 %v3611, 1e-05
  %v3614 = vrsqrt.pop %v3612
  %v3615 = vrsqrt.pop %v3613
  %v3616 = vmul.f32 %v3602, %v3614
  %v3617 = vmul.f32 %v3603, %v3615
  %v3619 = vlaneseq
  %v3620 = vshrl.u32 %v3619, 7
  %v3621 = vsub.s32 0, %v3620
  %v3622 = vrot.slane %v3589, %v3621
  %v3624 = vmul.f32 %v3616, %v3622
  %v3625 = vmul.f32 %v3617, %v3622
  %v3627 = vlaneseq
  %v3628 = vshrl.u32 %v3627, 7
  %v3629 = vsub.s32 0, %v3628
  %v3630 = vrot.slane %v3591, %v3629
  %v3632 = vadd.f32 %v3624, %v3630
  %v3633 = vadd.f32 %v3625, %v3630
  %s3634 = scalar_lea.vmem %s11, 128
  %v3635 = vld [vmem:[%s3634] sm:$0xff]
  %v3636 = vld [vmem:[%s3634 + $0x8] sm:$0xff]
  %v3637 = vld [vmem:[%s3634 + $0x10] sm:$0xff]
  %v3638 = vld [vmem:[%s3634 + $0x18] sm:$0xff]
  %v3639 = vld [vmem:[%s3634 + $0x20] sm:$0xff]
  %v3640 = vld [vmem:[%s3634 + $0x28] sm:$0xff]
  %v3641 = vld [vmem:[%s3634 + $0x30] sm:$0xff]
  %v3642 = vld [vmem:[%s3634 + $0x38] sm:$0xff]
  %v3643 = vld [vmem:[%s3634 + $0x40] sm:$0xff]
  %v3644 = vld [vmem:[%s3634 + $0x48] sm:$0xff]
  %v3645 = vld [vmem:[%s3634 + $0x50] sm:$0xff]
  %v3646 = vld [vmem:[%s3634 + $0x58] sm:$0xff]
  %v3647 = vld [vmem:[%s3634 + $0x60] sm:$0xff]
  %v3648 = vld [vmem:[%s3634 + $0x68] sm:$0xff]
  %v3649 = vld [vmem:[%s3634 + $0x70] sm:$0xff]
  %v3650 = vld [vmem:[%s3634 + $0x78] sm:$0xff]
  %s3651 = scalar_lea.vmem %s12, 1
  %v3652 = vld [vmem:[%s3651] sm:$0x1]
  %v3654 = vlaneseq
  %v3655 = vshrl.u32 %v3654, 7
  %v3656 = vsub.s32 0, %v3655
  %v3657 = vrot.slane %v3652, %v3656
  %3659 = vmatprep.subr.mxu0 0.0
  %3660 = vmatpush1.msra.mxu0 %v3635
  %3661 = vmatprep.subr.mxu0 0.0
  %3662 = vmatpush1.msra.mxu0 %v3636
  %3663 = vmatprep.subr.mxu0 0.0
  %3664 = vmatpush1.msra.mxu0 %v3637
  %3665 = vmatprep.subr.mxu0 0.0
  %3666 = vmatpush1.msra.mxu0 %v3638
  %3667 = vmatprep.subr.mxu0 0.0
  %3668 = vmatpush1.msra.mxu0 %v3639
  %3669 = vmatprep.subr.mxu0 0.0
  %3670 = vmatpush1.msra.mxu0 %v3640
  %3671 = vmatprep.subr.mxu0 0.0
  %3672 = vmatpush1.msra.mxu0 %v3641
  %3673 = vmatprep.subr.mxu0 0.0
  %3674 = vmatpush1.msra.mxu0 %v3642
  %3675 = vmatprep.subr.mxu0 0.0
  %3676 = vmatpush1.msra.mxu0 %v3643
  %3677 = vmatprep.subr.mxu0 0.0
  %3678 = vmatpush1.msra.mxu0 %v3644
  %3679 = vmatprep.subr.mxu0 0.0
  %3680 = vmatpush1.msra.mxu0 %v3645
  %3681 = vmatprep.subr.mxu0 0.0
  %3682 = vmatpush1.msra.mxu0 %v3646
  %3683 = vmatprep.subr.mxu0 0.0
  %3684 = vmatpush1.msra.mxu0 %v3647
  %3685 = vmatprep.subr.mxu0 0.0
  %3686 = vmatpush1.msra.mxu0 %v3648
  %3687 = vmatprep.subr.mxu0 0.0
  %3688 = vmatpush1.msra.mxu0 %v3649
  %3689 = vmatprep.subr.mxu0 0.0
  %3690 = vmatpush1.msra.mxu0 %v3650
  %3691 = vmatprep.subr.mxu0 0.0
  %3692 = vmatpush1.msra.mxu0 0.0
  %3693 = vmatprep.subr.mxu0 0.0
  %3694 = vmatpush1.msra.mxu0 0.0
  %3695 = vmatprep.subr.mxu0 0.0
  %3696 = vmatpush1.msra.mxu0 0.0
  %3697 = vmatprep.subr.mxu0 0.0
  %3698 = vmatpush1.msra.mxu0 0.0
  %3699 = vmatprep.subr.mxu0 0.0
  %3700 = vmatpush1.msra.mxu0 0.0
  %3701 = vmatprep.subr.mxu0 0.0
  %3702 = vmatpush1.msra.mxu0 0.0
  %3703 = vmatprep.subr.mxu0 0.0
  %3704 = vmatpush1.msra.mxu0 0.0
  %3705 = vmatprep.subr.mxu0 0.0
  %3706 = vmatpush1.msra.mxu0 0.0
  %3707 = vmatprep.subr.mxu0 0.0
  %3708 = vmatpush1.msra.mxu0 0.0
  %3709 = vmatprep.subr.mxu0 0.0
  %3710 = vmatpush1.msra.mxu0 0.0
  %3711 = vmatprep.subr.mxu0 0.0
  %3712 = vmatpush1.msra.mxu0 0.0
  %3713 = vmatprep.subr.mxu0 0.0
  %3714 = vmatpush1.msra.mxu0 0.0
  %3715 = vmatprep.subr.mxu0 0.0
  %3716 = vmatpush1.msra.mxu0 0.0
  %3717 = vmatprep.subr.mxu0 0.0
  %3718 = vmatpush1.msra.mxu0 0.0
  %3719 = vmatprep.subr.mxu0 0.0
  %3720 = vmatpush1.msra.mxu0 0.0
  %3721 = vmatprep.subr.mxu0 0.0
  %3722 = vmatpush1.msra.mxu0 0.0
  %3723 = vmatprep.mubr.f32.mxu0 0.0
  %3724 = vmatmul.mubr.f32.gmra.mrb[0].mxu0 %v3632
  %v3725 = vpop.f32.mrb[0].mxu0
  %v3726 = vadd.f32 %v3657, %v3725
  %v3727 = vpop.f32.mrb[0].mxu0
  %3728 = vmatprep.mubr.f32.mxu0 0.0
  %3729 = vmatmul.mubr.f32.gmra.mrb[0].mxu0 %v3633
  %v3730 = vpop.f32.mrb[0].mxu0
  %v3731 = vadd.f32 %v3657, %v3730
  %v3732 = vpop.f32.mrb[0].mxu0
  %3733 = vdwg.mxu0
  %v3734 = vmul.f32 %v3726, 0.5
  %v3735 = vmul.f32 %v3731, 0.5
  %v3736 = vmul.f32 %v3726, 0.70710677
  %v3737 = vmul.f32 %v3731, 0.70710677
  %v3738 = verf.f32.pop %v3736
  %v3739 = verf.f32.pop %v3737
  %v3740 = vadd.f32 %v3738, 1.0
  %v3741 = vadd.f32 %v3739, 1.0
  %v3742 = vmul.f32 %v3734, %v3740
  %v3743 = vmul.f32 %v3735, %v3741
  %s3744 = scalar_lea.vmem %s13, 128
  %v3745 = vld [vmem:[%s3744] sm:$0xff]
  %v3746 = vld [vmem:[%s3744 + $0x8] sm:$0xff]
  %v3747 = vld [vmem:[%s3744 + $0x10] sm:$0xff]
  %v3748 = vld [vmem:[%s3744 + $0x18] sm:$0xff]
  %v3749 = vld [vmem:[%s3744 + $0x20] sm:$0xff]
  %v3750 = vld [vmem:[%s3744 + $0x28] sm:$0xff]
  %v3751 = vld [vmem:[%s3744 + $0x30] sm:$0xff]
  %v3752 = vld [vmem:[%s3744 + $0x38] sm:$0xff]
  %v3753 = vld [vmem:[%s3744 + $0x40] sm:$0xff]
  %v3754 = vld [vmem:[%s3744 + $0x48] sm:$0xff]
  %v3755 = vld [vmem:[%s3744 + $0x50] sm:$0xff]
  %v3756 = vld [vmem:[%s3744 + $0x58] sm:$0xff]
  %v3757 = vld [vmem:[%s3744 + $0x60] sm:$0xff]
  %v3758 = vld [vmem:[%s3744 + $0x68] sm:$0xff]
  %v3759 = vld [vmem:[%s3744 + $0x70] sm:$0xff]
  %v3760 = vld [vmem:[%s3744 + $0x78] sm:$0xff]
  %s3761 = scalar_lea.vmem %s14, 1
  %v3762 = vld [vmem:[%s3761] sm:$0x1]
  %v3764 = vlaneseq
  %v3765 = vshrl.u32 %v3764, 7
  %v3766 = vsub.s32 0, %v3765
  %v3767 = vrot.slane %v3762, %v3766
  %3769 = vmatprep.subr.mxu0 0.0
  %3770 = vmatpush1.msra.mxu0 %v3745
  %3771 = vmatprep.subr.mxu0 0.0
  %3772 = vmatpush1.msra.mxu0 %v3746
  %3773 = vmatprep.subr.mxu0 0.0
  %3774 = vmatpush1.msra.mxu0 %v3747
  %3775 = vmatprep.subr.mxu0 0.0
  %3776 = vmatpush1.msra.mxu0 %v3748
  %3777 = vmatprep.subr.mxu0 0.0
  %3778 = vmatpush1.msra.mxu0 %v3749
  %3779 = vmatprep.subr.mxu0 0.0
  %3780 = vmatpush1.msra.mxu0 %v3750
  %3781 = vmatprep.subr.mxu0 0.0
  %3782 = vmatpush1.msra.mxu0 %v3751
  %3783 = vmatprep.subr.mxu0 0.0
  %3784 = vmatpush1.msra.mxu0 %v3752
  %3785 = vmatprep.subr.mxu0 0.0
  %3786 = vmatpush1.msra.mxu0 %v3753
  %3787 = vmatprep.subr.mxu0 0.0
  %3788 = vmatpush1.msra.mxu0 %v3754
  %3789 = vmatprep.subr.mxu0 0.0
  %3790 = vmatpush1.msra.mxu0 %v3755
  %3791 = vmatprep.subr.mxu0 0.0
  %3792 = vmatpush1.msra.mxu0 %v3756
  %3793 = vmatprep.subr.mxu0 0.0
  %3794 = vmatpush1.msra.mxu0 %v3757
  %3795 = vmatprep.subr.mxu0 0.0
  %3796 = vmatpush1.msra.mxu0 %v3758
  %3797 = vmatprep.subr.mxu0 0.0
  %3798 = vmatpush1.msra.mxu0 %v3759
  %3799 = vmatprep.subr.mxu0 0.0
  %3800 = vmatpush1.msra.mxu0 %v3760
  %3801 = vmatprep.subr.mxu0 0.0
  %3802 = vmatpush1.msra.mxu0 0.0
  %3803 = vmatprep.subr.mxu0 0.0
  %3804 = vmatpush1.msra.mxu0 0.0
  %3805 = vmatprep.subr.mxu0 0.0
  %3806 = vmatpush1.msra.mxu0 0.0
  %3807 = vmatprep.subr.mxu0 0.0
  %3808 = vmatpush1.msra.mxu0 0.0
  %3809 = vmatprep.subr.mxu0 0.0
  %3810 = vmatpush1.msra.mxu0 0.0
  %3811 = vmatprep.subr.mxu0 0.0
  %3812 = vmatpush1.msra.mxu0 0.0
  %3813 = vmatprep.subr.mxu0 0.0
  %3814 = vmatpush1.msra.mxu0 0.0
  %3815 = vmatprep.subr.mxu0 0.0
  %3816 = vmatpush1.msra.mxu0 0.0
  %3817 = vmatprep.subr.mxu0 0.0
  %3818 = vmatpush1.msra.mxu0 0.0
  %3819 = vmatprep.subr.mxu0 0.0
  %3820 = vmatpush1.msra.mxu0 0.0
  %3821 = vmatprep.subr.mxu0 0.0
  %3822 = vmatpush1.msra.mxu0 0.0
  %3823 = vmatprep.subr.mxu0 0.0
  %3824 = vmatpush1.msra.mxu0 0.0
  %3825 = vmatprep.subr.mxu0 0.0
  %3826 = vmatpush1.msra.mxu0 0.0
  %3827 = vmatprep.subr.mxu0 0.0
  %3828 = vmatpush1.msra.mxu0 0.0
  %3829 = vmatprep.subr.mxu0 0.0
  %3830 = vmatpush1.msra.mxu0 0.0
  %3831 = vmatprep.subr.mxu0 0.0
  %3832 = vmatpush1.msra.mxu0 0.0
  %3833 = vmatprep.mubr.f32.mxu0 0.0
  %3834 = vmatmul.mubr.f32.gmra.mrb[0].mxu0 %v3742
  %v3835 = vpop.f32.mrb[0].mxu0
  %v3836 = vadd.f32 %v3767, %v3835
  %v3837 = vpop.f32.mrb[0].mxu0
  %3838 = vmatprep.mubr.f32.mxu0 0.0
  %3839 = vmatmul.mubr.f32.gmra.mrb[0].mxu0 %v3743
  %v3840 = vpop.f32.mrb[0].mxu0
  %v3841 = vadd.f32 %v3767, %v3840
  %v3842 = vpop.f32.mrb[0].mxu0
  %3843 = vdwg.mxu0
  %s3844 = scalar_lea.vmem %s15, 1
  %v3845 = vld [vmem:[%s3844] sm:$0x1]
  %s3846 = scalar_lea.vmem %s16, 1
  %v3847 = vld [vmem:[%s3846] sm:$0x1]
  %v3848 = vadd.f32 %v3836, %v3632
  %v3849 = vadd.f32 %v3841, %v3633
  %3850 = vadd.xlane.f32.xlu0 %v3848
  %v3851 = vpop.xlane.xlu0 %3850
  %3852 = vadd.xlane.f32.xlu0 %v3849
  %v3853 = vpop.xlane.xlu0 %3852
  %v3854 = vmul.f32 %v3851, 0.03125
  %v3855 = vmul.f32 %v3853, 0.03125
  %v3856 = vsub.f32 %v3848, %v3854
  %v3857 = vsub.f32 %v3849, %v3855
  %v3858 = vmul.f32 %v3856, %v60
  %v3859 = vmul.f32 %v3857, %v60
  %v3860 = vmul.f32 %v3858, %v3858
  %v3861 = vmul.f32 %v3859, %v3859
  %3862 = vadd.xlane.f32.xlu0 %v3860
  %v3863 = vpop.xlane.xlu0 %3862
  %3864 = vadd.xlane.f32.xlu0 %v3861
  %v3865 = vpop.xlane.xlu0 %3864
  %v3866 = vmul.f32 %v3863, 0.03125
  %v3867 = vmul.f32 %v3865, 0.03125
  %v3868 = vadd.f32 %v3866, 1e-05
  %v3869 = vadd.f32 %v3867, 1e-05
  %v3870 = vrsqrt.pop %v3868
  %v3871 = vrsqrt.pop %v3869
  %v3872 = vmul.f32 %v3858, %v3870
  %v3873 = vmul.f32 %v3859, %v3871
  %v3875 = vlaneseq
  %v3876 = vshrl.u32 %v3875, 7
  %v3877 = vsub.s32 0, %v3876
  %v3878 = vrot.slane %v3845, %v3877
  %v3880 = vmul.f32 %v3872, %v3878
  %v3881 = vmul.f32 %v3873, %v3878
  %v3883 = vlaneseq
  %v3884 = vshrl.u32 %v3883, 7
  %v3885 = vsub.s32 0, %v3884
  %v3886 = vrot.slane %v3847, %v3885
  %v3888 = vadd.f32 %v3880, %v3886
  %v3889 = vadd.f32 %v3881, %v3886
  %3890 = vst [vmem:[%s17] sm:$0xff] %v3888
  %3891 = vst [vmem:[%s17 + $0x8] sm:$0xff] %v3889
  // Predicated region
  $region70: #{_lambda_.1} parent=0 // pred_check
    _
  $region71: #{_lambda_.1} parent=0 // pred_check_branch
    %3893 = sbr.rel (0) target = $region73
  $region72: #{_lambda_.1} parent=0 // pred_region
    _
  $region73: #{_lambda_.1} parent=0 // pred_fallthru
    _
  // Predicated region
  $region74: #{_lambda_.1} parent=0 // pred_check
    _
  $region75: #{_lambda_.1} parent=0 // pred_check_branch
    %3895 = sbr.rel (0) target = $region77
  $region76: #{_lambda_.1} parent=0 // pred_region
    _
  $region77: #{_lambda_.1} parent=0 // pred_fallthru
    _

</llo_original>
